<compile_context>
chip_gen: v7x
topology: tpu7x:2x2x1
jax: 0.10.0
libtpu: 0.0.40
codegen_flags: <defaults>
</compile_context>

<pallas_src>
import functools

import jax
import jax.numpy as jnp
from jax.experimental import pallas as pl
from jax.experimental.pallas import tpu as pltpu


# ---------------------------------------------------------------------------
# Fused forward kernel: bridge+BN  ->  hoisted input proj  ->  2-layer LSTM
# recurrence (unrolled)  ->  deferred vocab projection (single dense store).
# ---------------------------------------------------------------------------
def _fused_forward_kernel(T, B, E, H, V,
                          feats_ref, wbr_ref, bbr_ref, gamma_ref, beta_ref,
                          emb_ref,
                          wih1_ref, whh1_ref, b1_ref,
                          wih2_ref, whh2_ref, b2_ref,
                          wproj_ref, bproj_ref,
                          o_ref,
                          h2all):
    f32 = jnp.float32

    # ---- encoder bridge Linear + BatchNorm1d (batch statistics, biased var) --
    y = (jnp.dot(feats_ref[...], wbr_ref[...], preferred_element_type=f32)
         + bbr_ref[...])                                            # [B, E]
    mu = jnp.mean(y, axis=0, keepdims=True)
    var = jnp.mean((y - mu) * (y - mu), axis=0, keepdims=True)
    enc = gamma_ref[...] * (y - mu) * jax.lax.rsqrt(var + 1e-5) + beta_ref[...]

    # ---- layer-1 input projection hoisted out of the serial recurrence -------
    # step 0 input = encoder embedding; steps 1..T-1 inputs = caption embeddings
    wih1 = wih1_ref[...]
    b1 = b1_ref[...]
    gin0 = jnp.dot(enc, wih1, preferred_element_type=f32) + b1          # [B, 4H]
    gin_cap = (jnp.dot(emb_ref[...], wih1, preferred_element_type=f32)
               + b1)                                                    # [(T-1)*B, 4H]

    whh1 = whh1_ref[...]
    wih2 = wih2_ref[...]
    whh2 = whh2_ref[...]
    b2 = b2_ref[...]

    def gates(g):
        # PyTorch LSTM gate order: input, forget, cell, output.
        # TODO(synk): with H=32 these are 32-lane sub-slices of a 128-lane vreg;
        # a scaled-up model should keep H a multiple of 128 for aligned slices.
        i_g = jax.nn.sigmoid(g[:, 0 * H:1 * H])
        f_g = jax.nn.sigmoid(g[:, 1 * H:2 * H])
        g_g = jnp.tanh(g[:, 2 * H:3 * H])
        o_g = jax.nn.sigmoid(g[:, 3 * H:4 * H])
        return i_g, f_g, g_g, o_g

    zeros = jnp.zeros((B, H), f32)
    h1, c1, h2, c2 = zeros, zeros, zeros, zeros

    # Fully-unrolled serial recurrence (T is static): only the small hidden-state
    # matmuls remain on the critical path; no per-step output stores.
    for t in range(T):
        gin_t = gin0 if t == 0 else gin_cap[(t - 1) * B:t * B, :]
        g1 = gin_t + jnp.dot(h1, whh1, preferred_element_type=f32)
        i1, f1, gg1, o1 = gates(g1)
        c1 = f1 * c1 + i1 * gg1
        h1 = o1 * jnp.tanh(c1)

        g2 = (jnp.dot(h1, wih2, preferred_element_type=f32)
              + jnp.dot(h2, whh2, preferred_element_type=f32) + b2)
        i2, f2, gg2, o2 = gates(g2)
        c2 = f2 * c2 + i2 * gg2
        h2 = o2 * jnp.tanh(c2)

        h2all[t * B:(t + 1) * B, :] = h2                           # VMEM scratch

    # ---- deferred vocab projection: one matmul + one dense output write ------
    o_ref[...] = (jnp.dot(h2all[...], wproj_ref[...], preferred_element_type=f32)
                  + bproj_ref[...])                                # [T*B, V]


# ---------------------------------------------------------------------------
# BaseLine.forward in JAX (glue) + the single fused Pallas kernel
# ---------------------------------------------------------------------------
def baseline_forward(images, caption, params):
    B = images.shape[0]
    T = caption.shape[1]
    FEAT, E = params["w_bridge"].shape
    H = params["whh1"].shape[0]
    V = params["wproj"].shape[1]

    # TODO(synk): the pretrained, frozen torchvision ResNet-50 backbone cannot be
    # reproduced in-script; stand-in feature extractor = global avg-pool (NCHW)
    # followed by a fixed random projection to 2048 features.
    pooled = jnp.mean(images, axis=(2, 3))                       # [B, 3]
    feats = jax.nn.relu(pooled @ params["w_feat"])               # [B, 2048]

    # Teacher-forced decoder inputs for steps 1..T-1 (step 0 input = encoder
    # embedding, computed inside the kernel).  Time-major, flattened so the
    # hoisted layer-1 projection is one matmul over (T-1)*B rows.
    emb = params["we"][caption[:, :T - 1]]                       # [B, T-1, E]
    emb_tm = jnp.transpose(emb, (1, 0, 2)).reshape((T - 1) * B, E)

    full = lambda shape: pl.BlockSpec(shape, lambda i, _s=shape: (0,) * len(_s))

    kernel = functools.partial(_fused_forward_kernel, T, B, E, H, V)
    scores_flat = pl.pallas_call(
        kernel,
        out_shape=jax.ShapeDtypeStruct((T * B, V), jnp.float32),
        grid=(1,),
        in_specs=[
            full((B, FEAT)), full((FEAT, E)),
            full((1, E)), full((1, E)), full((1, E)),
            full(((T - 1) * B, E)),
            full((E, 4 * H)), full((H, 4 * H)), full((1, 4 * H)),
            full((H, 4 * H)), full((H, 4 * H)), full((1, 4 * H)),
            full((H, V)), full((1, V)),
        ],
        out_specs=full((T * B, V)),
        scratch_shapes=[pltpu.VMEM((T * B, H), jnp.float32)],
        compiler_params=pltpu.CompilerParams(
            dimension_semantics=("arbitrary",)),
    )(feats, params["w_bridge"], params["b_bridge"],
      params["bn_gamma"], params["bn_beta"],
      emb_tm,
      params["wih1"], params["whh1"], params["b1"],
      params["wih2"], params["whh2"], params["b2"],
      params["wproj"], params["bproj"])

    return scores_flat.reshape(T, B, V).transpose(1, 0, 2)       # [B, T, V]


# ---------------------------------------------------------------------------
# Pure-JAX reference for correctness checking
# ---------------------------------------------------------------------------
def baseline_forward_ref(images, caption, p):
    B = images.shape[0]
    T = caption.shape[1]
    pooled = jnp.mean(images, axis=(2, 3))
    feats = jax.nn.relu(pooled @ p["w_feat"])
    y = feats @ p["w_bridge"] + p["b_bridge"][0]
    mu = jnp.mean(y, axis=0, keepdims=True)
    var = jnp.mean((y - mu) ** 2, axis=0, keepdims=True)
    enc = p["bn_gamma"][0] * (y - mu) * jax.lax.rsqrt(var + 1e-5) + p["bn_beta"][0]

    embed_caption = p["we"][caption]
    x_seq = jnp.concatenate([enc[:, None, :], embed_caption[:, :T - 1, :]], axis=1)

    H = p["whh1"].shape[0]

    def cell(xin, h, c, wih, whh, b):
        g = xin @ wih + h @ whh + b[0]
        i_g = jax.nn.sigmoid(g[:, 0 * H:1 * H])
        f_g = jax.nn.sigmoid(g[:, 1 * H:2 * H])
        g_g = jnp.tanh(g[:, 2 * H:3 * H])
        o_g = jax.nn.sigmoid(g[:, 3 * H:4 * H])
        c_new = f_g * c + i_g * g_g
        return o_g * jnp.tanh(c_new), c_new

    def step(carry, x_t):
        h1, c1, h2, c2 = carry
        h1, c1 = cell(x_t, h1, c1, p["wih1"], p["whh1"], p["b1"])
        h2, c2 = cell(h1, h2, c2, p["wih2"], p["whh2"], p["b2"])
        out = h2 @ p["wproj"] + p["bproj"][0]
        return (h1, c1, h2, c2), out

    z = jnp.zeros((B, H), jnp.float32)
    _, outs = jax.lax.scan(step, (z, z, z, z), jnp.transpose(x_seq, (1, 0, 2)))
    return jnp.transpose(outs, (1, 0, 2))


if __name__ == "__main__":
    B, V, E, H, T = 2, 64, 32, 32, 8
    FEAT = 2048

    key = jax.random.PRNGKey(0)
    ks = jax.random.split(key, 16)

    params = {
        "w_feat":   jax.random.normal(ks[2], (3, FEAT), jnp.float32) * 0.1,
        "w_bridge": jax.random.normal(ks[3], (FEAT, E), jnp.float32) * 0.02,
        "b_bridge": jax.random.normal(ks[4], (1, E), jnp.float32) * 0.02,
        "bn_gamma": jnp.ones((1, E), jnp.float32),
        "bn_beta":  jnp.zeros((1, E), jnp.float32),
        "we":       jax.random.normal(ks[5], (V, E), jnp.float32) * 0.1,
        # 2-layer LSTM (PyTorch param layout transposed; b = b_ih + b_hh fused)
        "wih1":  jax.random.normal(ks[6],  (E, 4 * H), jnp.float32) * 0.1,
        "whh1":  jax.random.normal(ks[7],  (H, 4 * H), jnp.float32) * 0.1,
        "b1":    jax.random.normal(ks[8],  (1, 4 * H), jnp.float32) * 0.1,
        "wih2":  jax.random.normal(ks[9],  (H, 4 * H), jnp.float32) * 0.1,
        "whh2":  jax.random.normal(ks[10], (H, 4 * H), jnp.float32) * 0.1,
        "b2":    jax.random.normal(ks[11], (1, 4 * H), jnp.float32) * 0.1,
        "wproj": jax.random.normal(ks[12], (H, V), jnp.float32) * 0.1,
        "bproj": jax.random.normal(ks[13], (1, V), jnp.float32) * 0.1,
    }

    images = jax.random.normal(ks[0], (B, 3, 256, 256), jnp.float32)
    caption = jax.random.randint(ks[1], (B, T), 0, V, dtype=jnp.int32)

    scores = jax.block_until_ready(baseline_forward(images, caption, params))
    assert scores.shape == (B, T, V) and scores.dtype == jnp.float32

    ref = jax.block_until_ready(baseline_forward_ref(images, caption, params))
    if not jnp.allclose(scores, ref, rtol=1e-4, atol=1e-4):
        raise AssertionError("Pallas kernel output does not match JAX reference")

    print("KERNEL_OK")
</pallas_src>

<mosaic_0001>
module attributes {stable_mosaic.version = 11 : i64} {
  func.func @_fused_forward_kernel(%arg0: i32, %arg1: memref<2x2048xf32, #tpu.memory_space<vmem>>, %arg2: memref<2048x32xf32, #tpu.memory_space<vmem>>, %arg3: memref<1x32xf32, #tpu.memory_space<vmem>>, %arg4: memref<1x32xf32, #tpu.memory_space<vmem>>, %arg5: memref<1x32xf32, #tpu.memory_space<vmem>>, %arg6: memref<14x32xf32, #tpu.memory_space<vmem>>, %arg7: memref<32x128xf32, #tpu.memory_space<vmem>>, %arg8: memref<32x128xf32, #tpu.memory_space<vmem>>, %arg9: memref<1x128xf32, #tpu.memory_space<vmem>>, %arg10: memref<32x128xf32, #tpu.memory_space<vmem>>, %arg11: memref<32x128xf32, #tpu.memory_space<vmem>>, %arg12: memref<1x128xf32, #tpu.memory_space<vmem>>, %arg13: memref<32x64xf32, #tpu.memory_space<vmem>>, %arg14: memref<1x64xf32, #tpu.memory_space<vmem>>, %arg15: memref<16x64xf32, #tpu.memory_space<vmem>>, %arg16: memref<16x32xf32, #tpu.memory_space<vmem>>) attributes {dimension_semantics = [#tpu.dimension_semantics<arbitrary>], iteration_bounds = array<i64: 1>, scalar_prefetch = 0 : i64, scratch_operands = 1 : i64, tpu.core_type = #tpu.core_type<tc>, window_params = [{pipeline_mode = #tpu.pipeline_mode<synchronous>, transform_indices = @transform_0, window_bounds = array<i64: 2, 2048>}, {pipeline_mode = #tpu.pipeline_mode<synchronous>, transform_indices = @transform_1, window_bounds = array<i64: 2048, 32>}, {pipeline_mode = #tpu.pipeline_mode<synchronous>, transform_indices = @transform_2, window_bounds = array<i64: 1, 32>}, {pipeline_mode = #tpu.pipeline_mode<synchronous>, transform_indices = @transform_3, window_bounds = array<i64: 1, 32>}, {pipeline_mode = #tpu.pipeline_mode<synchronous>, transform_indices = @transform_4, window_bounds = array<i64: 1, 32>}, {pipeline_mode = #tpu.pipeline_mode<synchronous>, transform_indices = @transform_5, window_bounds = array<i64: 14, 32>}, {pipeline_mode = #tpu.pipeline_mode<synchronous>, transform_indices = @transform_6, window_bounds = array<i64: 32, 128>}, {pipeline_mode = #tpu.pipeline_mode<synchronous>, transform_indices = @transform_7, window_bounds = array<i64: 32, 128>}, {pipeline_mode = #tpu.pipeline_mode<synchronous>, transform_indices = @transform_8, window_bounds = array<i64: 1, 128>}, {pipeline_mode = #tpu.pipeline_mode<synchronous>, transform_indices = @transform_9, window_bounds = array<i64: 32, 128>}, {pipeline_mode = #tpu.pipeline_mode<synchronous>, transform_indices = @transform_10, window_bounds = array<i64: 32, 128>}, {pipeline_mode = #tpu.pipeline_mode<synchronous>, transform_indices = @transform_11, window_bounds = array<i64: 1, 128>}, {pipeline_mode = #tpu.pipeline_mode<synchronous>, transform_indices = @transform_12, window_bounds = array<i64: 32, 64>}, {pipeline_mode = #tpu.pipeline_mode<synchronous>, transform_indices = @transform_13, window_bounds = array<i64: 1, 64>}, {pipeline_mode = #tpu.pipeline_mode<synchronous>, transform_indices = @transform_14, window_bounds = array<i64: 16, 64>}]} {
    %c0 = arith.constant 0 : index
    %c0_0 = arith.constant 0 : index
    %0 = vector.load %arg1[%c0, %c0_0] : memref<2x2048xf32, #tpu.memory_space<vmem>>, vector<2x2048xf32>
    %c0_1 = arith.constant 0 : index
    %c0_2 = arith.constant 0 : index
    %1 = vector.load %arg2[%c0_1, %c0_2] : memref<2048x32xf32, #tpu.memory_space<vmem>>, vector<2048x32xf32>
    %cst = arith.constant dense<0.000000e+00> : vector<2x32xf32>
    %2 = tpu.matmul %0, %1, %cst {dimension_numbers = #tpu.dot_dimension_numbers<[1], [0], [0], [1], [0, 0, 1, 1], [], []>} : vector<2x2048xf32>, vector<2048x32xf32>, vector<2x32xf32> -> vector<2x32xf32>
    %c0_3 = arith.constant 0 : index
    %c0_4 = arith.constant 0 : index
    %3 = vector.load %arg3[%c0_3, %c0_4] : memref<1x32xf32, #tpu.memory_space<vmem>>, vector<1x32xf32>
    %4 = vector.broadcast %3 : vector<1x32xf32> to vector<2x32xf32>
    %5 = arith.addf %2, %4 : vector<2x32xf32>
    %cst_5 = arith.constant dense<0.000000e+00> : vector<32xf32>
    %6 = vector.multi_reduction <add>, %5, %cst_5 [0] : vector<2x32xf32> to vector<32xf32>
    %7 = vector.shape_cast %6 : vector<32xf32> to vector<1x32xf32>
    %cst_6 = arith.constant 2.000000e+00 : f32
    %8 = vector.broadcast %cst_6 : f32 to vector<1x32xf32>
    %9 = arith.divf %7, %8 : vector<1x32xf32>
    %10 = vector.broadcast %9 : vector<1x32xf32> to vector<2x32xf32>
    %11 = arith.subf %5, %10 : vector<2x32xf32>
    %12 = vector.broadcast %9 : vector<1x32xf32> to vector<2x32xf32>
    %13 = arith.subf %5, %12 : vector<2x32xf32>
    %14 = arith.mulf %11, %13 : vector<2x32xf32>
    %cst_7 = arith.constant dense<0.000000e+00> : vector<32xf32>
    %15 = vector.multi_reduction <add>, %14, %cst_7 [0] : vector<2x32xf32> to vector<32xf32>
    %16 = vector.shape_cast %15 : vector<32xf32> to vector<1x32xf32>
    %cst_8 = arith.constant 2.000000e+00 : f32
    %17 = vector.broadcast %cst_8 : f32 to vector<1x32xf32>
    %18 = arith.divf %16, %17 : vector<1x32xf32>
    %c0_9 = arith.constant 0 : index
    %c0_10 = arith.constant 0 : index
    %19 = vector.load %arg4[%c0_9, %c0_10] : memref<1x32xf32, #tpu.memory_space<vmem>>, vector<1x32xf32>
    %20 = vector.broadcast %9 : vector<1x32xf32> to vector<2x32xf32>
    %21 = arith.subf %5, %20 : vector<2x32xf32>
    %22 = vector.broadcast %19 : vector<1x32xf32> to vector<2x32xf32>
    %23 = arith.mulf %22, %21 : vector<2x32xf32>
    %cst_11 = arith.constant 9.99999974E-6 : f32
    %24 = vector.broadcast %cst_11 : f32 to vector<1x32xf32>
    %25 = arith.addf %18, %24 : vector<1x32xf32>
    %26 = math.rsqrt %25 : vector<1x32xf32>
    %27 = vector.broadcast %26 : vector<1x32xf32> to vector<2x32xf32>
    %28 = arith.mulf %23, %27 : vector<2x32xf32>
    %c0_12 = arith.constant 0 : index
    %c0_13 = arith.constant 0 : index
    %29 = vector.load %arg5[%c0_12, %c0_13] : memref<1x32xf32, #tpu.memory_space<vmem>>, vector<1x32xf32>
    %30 = vector.broadcast %29 : vector<1x32xf32> to vector<2x32xf32>
    %31 = arith.addf %28, %30 : vector<2x32xf32>
    %c0_14 = arith.constant 0 : index
    %c0_15 = arith.constant 0 : index
    %32 = vector.load %arg7[%c0_14, %c0_15] : memref<32x128xf32, #tpu.memory_space<vmem>>, vector<32x128xf32>
    %c0_16 = arith.constant 0 : index
    %c0_17 = arith.constant 0 : index
    %33 = vector.load %arg9[%c0_16, %c0_17] : memref<1x128xf32, #tpu.memory_space<vmem>>, vector<1x128xf32>
    %cst_18 = arith.constant dense<0.000000e+00> : vector<2x128xf32>
    %34 = tpu.matmul %31, %32, %cst_18 {dimension_numbers = #tpu.dot_dimension_numbers<[1], [0], [0], [1], [0, 0, 1, 1], [], []>} : vector<2x32xf32>, vector<32x128xf32>, vector<2x128xf32> -> vector<2x128xf32>
    %35 = vector.broadcast %33 : vector<1x128xf32> to vector<2x128xf32>
    %36 = arith.addf %34, %35 : vector<2x128xf32>
    %c0_19 = arith.constant 0 : index
    %c0_20 = arith.constant 0 : index
    %37 = vector.load %arg6[%c0_19, %c0_20] : memref<14x32xf32, #tpu.memory_space<vmem>>, vector<14x32xf32>
    %cst_21 = arith.constant dense<0.000000e+00> : vector<14x128xf32>
    %38 = tpu.matmul %37, %32, %cst_21 {dimension_numbers = #tpu.dot_dimension_numbers<[1], [0], [0], [1], [0, 0, 1, 1], [], []>} : vector<14x32xf32>, vector<32x128xf32>, vector<14x128xf32> -> vector<14x128xf32>
    %39 = vector.broadcast %33 : vector<1x128xf32> to vector<14x128xf32>
    %40 = arith.addf %38, %39 : vector<14x128xf32>
    %c0_22 = arith.constant 0 : index
    %c0_23 = arith.constant 0 : index
    %41 = vector.load %arg8[%c0_22, %c0_23] : memref<32x128xf32, #tpu.memory_space<vmem>>, vector<32x128xf32>
    %c0_24 = arith.constant 0 : index
    %c0_25 = arith.constant 0 : index
    %42 = vector.load %arg10[%c0_24, %c0_25] : memref<32x128xf32, #tpu.memory_space<vmem>>, vector<32x128xf32>
    %c0_26 = arith.constant 0 : index
    %c0_27 = arith.constant 0 : index
    %43 = vector.load %arg11[%c0_26, %c0_27] : memref<32x128xf32, #tpu.memory_space<vmem>>, vector<32x128xf32>
    %c0_28 = arith.constant 0 : index
    %c0_29 = arith.constant 0 : index
    %44 = vector.load %arg12[%c0_28, %c0_29] : memref<1x128xf32, #tpu.memory_space<vmem>>, vector<1x128xf32>
    %cst_30 = arith.constant 0.000000e+00 : f32
    %45 = vector.broadcast %cst_30 : f32 to vector<2x32xf32>
    %cst_31 = arith.constant dense<0.000000e+00> : vector<2x128xf32>
    %46 = tpu.matmul %45, %41, %cst_31 {dimension_numbers = #tpu.dot_dimension_numbers<[1], [0], [0], [1], [0, 0, 1, 1], [], []>} : vector<2x32xf32>, vector<32x128xf32>, vector<2x128xf32> -> vector<2x128xf32>
    %47 = arith.addf %36, %46 : vector<2x128xf32>
    %48 = vector.extract_strided_slice %47 {offsets = [0, 0], sizes = [2, 32], strides = [1, 1]} : vector<2x128xf32> to vector<2x32xf32>
    %49 = arith.negf %48 : vector<2x32xf32>
    %50 = math.exp %49 : vector<2x32xf32>
    %cst_32 = arith.constant 1.000000e+00 : f32
    %51 = vector.broadcast %cst_32 : f32 to vector<2x32xf32>
    %52 = arith.addf %51, %50 : vector<2x32xf32>
    %53 = arith.divf %51, %52 : vector<2x32xf32>
    %54 = vector.extract_strided_slice %47 {offsets = [0, 32], sizes = [2, 32], strides = [1, 1]} : vector<2x128xf32> to vector<2x32xf32>
    %55 = arith.negf %54 : vector<2x32xf32>
    %56 = math.exp %55 : vector<2x32xf32>
    %cst_33 = arith.constant 1.000000e+00 : f32
    %57 = vector.broadcast %cst_33 : f32 to vector<2x32xf32>
    %58 = arith.addf %57, %56 : vector<2x32xf32>
    %59 = arith.divf %57, %58 : vector<2x32xf32>
    %60 = vector.extract_strided_slice %47 {offsets = [0, 64], sizes = [2, 32], strides = [1, 1]} : vector<2x128xf32> to vector<2x32xf32>
    %61 = math.tanh %60 : vector<2x32xf32>
    %62 = vector.extract_strided_slice %47 {offsets = [0, 96], sizes = [2, 32], strides = [1, 1]} : vector<2x128xf32> to vector<2x32xf32>
    %63 = arith.negf %62 : vector<2x32xf32>
    %64 = math.exp %63 : vector<2x32xf32>
    %cst_34 = arith.constant 1.000000e+00 : f32
    %65 = vector.broadcast %cst_34 : f32 to vector<2x32xf32>
    %66 = arith.addf %65, %64 : vector<2x32xf32>
    %67 = arith.divf %65, %66 : vector<2x32xf32>
    %68 = arith.mulf %59, %45 : vector<2x32xf32>
    %69 = arith.mulf %53, %61 : vector<2x32xf32>
    %70 = arith.addf %68, %69 : vector<2x32xf32>
    %71 = math.tanh %70 : vector<2x32xf32>
    %72 = arith.mulf %67, %71 : vector<2x32xf32>
    %cst_35 = arith.constant dense<0.000000e+00> : vector<2x128xf32>
    %73 = tpu.matmul %72, %42, %cst_35 {dimension_numbers = #tpu.dot_dimension_numbers<[1], [0], [0], [1], [0, 0, 1, 1], [], []>} : vector<2x32xf32>, vector<32x128xf32>, vector<2x128xf32> -> vector<2x128xf32>
    %cst_36 = arith.constant dense<0.000000e+00> : vector<2x128xf32>
    %74 = tpu.matmul %45, %43, %cst_36 {dimension_numbers = #tpu.dot_dimension_numbers<[1], [0], [0], [1], [0, 0, 1, 1], [], []>} : vector<2x32xf32>, vector<32x128xf32>, vector<2x128xf32> -> vector<2x128xf32>
    %75 = arith.addf %73, %74 : vector<2x128xf32>
    %76 = vector.broadcast %44 : vector<1x128xf32> to vector<2x128xf32>
    %77 = arith.addf %75, %76 : vector<2x128xf32>
    %78 = vector.extract_strided_slice %77 {offsets = [0, 0], sizes = [2, 32], strides = [1, 1]} : vector<2x128xf32> to vector<2x32xf32>
    %79 = arith.negf %78 : vector<2x32xf32>
    %80 = math.exp %79 : vector<2x32xf32>
    %cst_37 = arith.constant 1.000000e+00 : f32
    %81 = vector.broadcast %cst_37 : f32 to vector<2x32xf32>
    %82 = arith.addf %81, %80 : vector<2x32xf32>
    %83 = arith.divf %81, %82 : vector<2x32xf32>
    %84 = vector.extract_strided_slice %77 {offsets = [0, 32], sizes = [2, 32], strides = [1, 1]} : vector<2x128xf32> to vector<2x32xf32>
    %85 = arith.negf %84 : vector<2x32xf32>
    %86 = math.exp %85 : vector<2x32xf32>
    %cst_38 = arith.constant 1.000000e+00 : f32
    %87 = vector.broadcast %cst_38 : f32 to vector<2x32xf32>
    %88 = arith.addf %87, %86 : vector<2x32xf32>
    %89 = arith.divf %87, %88 : vector<2x32xf32>
    %90 = vector.extract_strided_slice %77 {offsets = [0, 64], sizes = [2, 32], strides = [1, 1]} : vector<2x128xf32> to vector<2x32xf32>
    %91 = math.tanh %90 : vector<2x32xf32>
    %92 = vector.extract_strided_slice %77 {offsets = [0, 96], sizes = [2, 32], strides = [1, 1]} : vector<2x128xf32> to vector<2x32xf32>
    %93 = arith.negf %92 : vector<2x32xf32>
    %94 = math.exp %93 : vector<2x32xf32>
    %cst_39 = arith.constant 1.000000e+00 : f32
    %95 = vector.broadcast %cst_39 : f32 to vector<2x32xf32>
    %96 = arith.addf %95, %94 : vector<2x32xf32>
    %97 = arith.divf %95, %96 : vector<2x32xf32>
    %98 = arith.mulf %89, %45 : vector<2x32xf32>
    %99 = arith.mulf %83, %91 : vector<2x32xf32>
    %100 = arith.addf %98, %99 : vector<2x32xf32>
    %101 = math.tanh %100 : vector<2x32xf32>
    %102 = arith.mulf %97, %101 : vector<2x32xf32>
    %c0_40 = arith.constant 0 : index
    %c0_41 = arith.constant 0 : index
    %103 = vector.load %arg16[%c0_40, %c0_41] : memref<16x32xf32, #tpu.memory_space<vmem>>, vector<2x32xf32>
    tpu.vector_store %arg16[%c0_40, %c0_41], %102 {strides = array<i32>} : memref<16x32xf32, #tpu.memory_space<vmem>>, vector<2x32xf32>,
    %104 = vector.extract_strided_slice %40 {offsets = [0, 0], sizes = [2, 128], strides = [1, 1]} : vector<14x128xf32> to vector<2x128xf32>
    %cst_42 = arith.constant dense<0.000000e+00> : vector<2x128xf32>
    %105 = tpu.matmul %72, %41, %cst_42 {dimension_numbers = #tpu.dot_dimension_numbers<[1], [0], [0], [1], [0, 0, 1, 1], [], []>} : vector<2x32xf32>, vector<32x128xf32>, vector<2x128xf32> -> vector<2x128xf32>
    %106 = arith.addf %104, %105 : vector<2x128xf32>
    %107 = vector.extract_strided_slice %106 {offsets = [0, 0], sizes = [2, 32], strides = [1, 1]} : vector<2x128xf32> to vector<2x32xf32>
    %108 = arith.negf %107 : vector<2x32xf32>
    %109 = math.exp %108 : vector<2x32xf32>
    %cst_43 = arith.constant 1.000000e+00 : f32
    %110 = vector.broadcast %cst_43 : f32 to vector<2x32xf32>
    %111 = arith.addf %110, %109 : vector<2x32xf32>
    %112 = arith.divf %110, %111 : vector<2x32xf32>
    %113 = vector.extract_strided_slice %106 {offsets = [0, 32], sizes = [2, 32], strides = [1, 1]} : vector<2x128xf32> to vector<2x32xf32>
    %114 = arith.negf %113 : vector<2x32xf32>
    %115 = math.exp %114 : vector<2x32xf32>
    %cst_44 = arith.constant 1.000000e+00 : f32
    %116 = vector.broadcast %cst_44 : f32 to vector<2x32xf32>
    %117 = arith.addf %116, %115 : vector<2x32xf32>
    %118 = arith.divf %116, %117 : vector<2x32xf32>
    %119 = vector.extract_strided_slice %106 {offsets = [0, 64], sizes = [2, 32], strides = [1, 1]} : vector<2x128xf32> to vector<2x32xf32>
    %120 = math.tanh %119 : vector<2x32xf32>
    %121 = vector.extract_strided_slice %106 {offsets = [0, 96], sizes = [2, 32], strides = [1, 1]} : vector<2x128xf32> to vector<2x32xf32>
    %122 = arith.negf %121 : vector<2x32xf32>
    %123 = math.exp %122 : vector<2x32xf32>
    %cst_45 = arith.constant 1.000000e+00 : f32
    %124 = vector.broadcast %cst_45 : f32 to vector<2x32xf32>
    %125 = arith.addf %124, %123 : vector<2x32xf32>
    %126 = arith.divf %124, %125 : vector<2x32xf32>
    %127 = arith.mulf %118, %70 : vector<2x32xf32>
    %128 = arith.mulf %112, %120 : vector<2x32xf32>
    %129 = arith.addf %127, %128 : vector<2x32xf32>
    %130 = math.tanh %129 : vector<2x32xf32>
    %131 = arith.mulf %126, %130 : vector<2x32xf32>
    %cst_46 = arith.constant dense<0.000000e+00> : vector<2x128xf32>
    %132 = tpu.matmul %131, %42, %cst_46 {dimension_numbers = #tpu.dot_dimension_numbers<[1], [0], [0], [1], [0, 0, 1, 1], [], []>} : vector<2x32xf32>, vector<32x128xf32>, vector<2x128xf32> -> vector<2x128xf32>
    %cst_47 = arith.constant dense<0.000000e+00> : vector<2x128xf32>
    %133 = tpu.matmul %102, %43, %cst_47 {dimension_numbers = #tpu.dot_dimension_numbers<[1], [0], [0], [1], [0, 0, 1, 1], [], []>} : vector<2x32xf32>, vector<32x128xf32>, vector<2x128xf32> -> vector<2x128xf32>
    %134 = arith.addf %132, %133 : vector<2x128xf32>
    %135 = vector.broadcast %44 : vector<1x128xf32> to vector<2x128xf32>
    %136 = arith.addf %134, %135 : vector<2x128xf32>
    %137 = vector.extract_strided_slice %136 {offsets = [0, 0], sizes = [2, 32], strides = [1, 1]} : vector<2x128xf32> to vector<2x32xf32>
    %138 = arith.negf %137 : vector<2x32xf32>
    %139 = math.exp %138 : vector<2x32xf32>
    %cst_48 = arith.constant 1.000000e+00 : f32
    %140 = vector.broadcast %cst_48 : f32 to vector<2x32xf32>
    %141 = arith.addf %140, %139 : vector<2x32xf32>
    %142 = arith.divf %140, %141 : vector<2x32xf32>
    %143 = vector.extract_strided_slice %136 {offsets = [0, 32], sizes = [2, 32], strides = [1, 1]} : vector<2x128xf32> to vector<2x32xf32>
    %144 = arith.negf %143 : vector<2x32xf32>
    %145 = math.exp %144 : vector<2x32xf32>
    %cst_49 = arith.constant 1.000000e+00 : f32
    %146 = vector.broadcast %cst_49 : f32 to vector<2x32xf32>
    %147 = arith.addf %146, %145 : vector<2x32xf32>
    %148 = arith.divf %146, %147 : vector<2x32xf32>
    %149 = vector.extract_strided_slice %136 {offsets = [0, 64], sizes = [2, 32], strides = [1, 1]} : vector<2x128xf32> to vector<2x32xf32>
    %150 = math.tanh %149 : vector<2x32xf32>
    %151 = vector.extract_strided_slice %136 {offsets = [0, 96], sizes = [2, 32], strides = [1, 1]} : vector<2x128xf32> to vector<2x32xf32>
    %152 = arith.negf %151 : vector<2x32xf32>
    %153 = math.exp %152 : vector<2x32xf32>
    %cst_50 = arith.constant 1.000000e+00 : f32
    %154 = vector.broadcast %cst_50 : f32 to vector<2x32xf32>
    %155 = arith.addf %154, %153 : vector<2x32xf32>
    %156 = arith.divf %154, %155 : vector<2x32xf32>
    %157 = arith.mulf %148, %100 : vector<2x32xf32>
    %158 = arith.mulf %142, %150 : vector<2x32xf32>
    %159 = arith.addf %157, %158 : vector<2x32xf32>
    %160 = math.tanh %159 : vector<2x32xf32>
    %161 = arith.mulf %156, %160 : vector<2x32xf32>
    %c2 = arith.constant 2 : index
    %c0_51 = arith.constant 0 : index
    %162 = vector.load %arg16[%c2, %c0_51] : memref<16x32xf32, #tpu.memory_space<vmem>>, vector<2x32xf32>
    tpu.vector_store %arg16[%c2, %c0_51], %161 {strides = array<i32>} : memref<16x32xf32, #tpu.memory_space<vmem>>, vector<2x32xf32>,
    %163 = vector.extract_strided_slice %40 {offsets = [2, 0], sizes = [2, 128], strides = [1, 1]} : vector<14x128xf32> to vector<2x128xf32>
    %cst_52 = arith.constant dense<0.000000e+00> : vector<2x128xf32>
    %164 = tpu.matmul %131, %41, %cst_52 {dimension_numbers = #tpu.dot_dimension_numbers<[1], [0], [0], [1], [0, 0, 1, 1], [], []>} : vector<2x32xf32>, vector<32x128xf32>, vector<2x128xf32> -> vector<2x128xf32>
    %165 = arith.addf %163, %164 : vector<2x128xf32>
    %166 = vector.extract_strided_slice %165 {offsets = [0, 0], sizes = [2, 32], strides = [1, 1]} : vector<2x128xf32> to vector<2x32xf32>
    %167 = arith.negf %166 : vector<2x32xf32>
    %168 = math.exp %167 : vector<2x32xf32>
    %cst_53 = arith.constant 1.000000e+00 : f32
    %169 = vector.broadcast %cst_53 : f32 to vector<2x32xf32>
    %170 = arith.addf %169, %168 : vector<2x32xf32>
    %171 = arith.divf %169, %170 : vector<2x32xf32>
    %172 = vector.extract_strided_slice %165 {offsets = [0, 32], sizes = [2, 32], strides = [1, 1]} : vector<2x128xf32> to vector<2x32xf32>
    %173 = arith.negf %172 : vector<2x32xf32>
    %174 = math.exp %173 : vector<2x32xf32>
    %cst_54 = arith.constant 1.000000e+00 : f32
    %175 = vector.broadcast %cst_54 : f32 to vector<2x32xf32>
    %176 = arith.addf %175, %174 : vector<2x32xf32>
    %177 = arith.divf %175, %176 : vector<2x32xf32>
    %178 = vector.extract_strided_slice %165 {offsets = [0, 64], sizes = [2, 32], strides = [1, 1]} : vector<2x128xf32> to vector<2x32xf32>
    %179 = math.tanh %178 : vector<2x32xf32>
    %180 = vector.extract_strided_slice %165 {offsets = [0, 96], sizes = [2, 32], strides = [1, 1]} : vector<2x128xf32> to vector<2x32xf32>
    %181 = arith.negf %180 : vector<2x32xf32>
    %182 = math.exp %181 : vector<2x32xf32>
    %cst_55 = arith.constant 1.000000e+00 : f32
    %183 = vector.broadcast %cst_55 : f32 to vector<2x32xf32>
    %184 = arith.addf %183, %182 : vector<2x32xf32>
    %185 = arith.divf %183, %184 : vector<2x32xf32>
    %186 = arith.mulf %177, %129 : vector<2x32xf32>
    %187 = arith.mulf %171, %179 : vector<2x32xf32>
    %188 = arith.addf %186, %187 : vector<2x32xf32>
    %189 = math.tanh %188 : vector<2x32xf32>
    %190 = arith.mulf %185, %189 : vector<2x32xf32>
    %cst_56 = arith.constant dense<0.000000e+00> : vector<2x128xf32>
    %191 = tpu.matmul %190, %42, %cst_56 {dimension_numbers = #tpu.dot_dimension_numbers<[1], [0], [0], [1], [0, 0, 1, 1], [], []>} : vector<2x32xf32>, vector<32x128xf32>, vector<2x128xf32> -> vector<2x128xf32>
    %cst_57 = arith.constant dense<0.000000e+00> : vector<2x128xf32>
    %192 = tpu.matmul %161, %43, %cst_57 {dimension_numbers = #tpu.dot_dimension_numbers<[1], [0], [0], [1], [0, 0, 1, 1], [], []>} : vector<2x32xf32>, vector<32x128xf32>, vector<2x128xf32> -> vector<2x128xf32>
    %193 = arith.addf %191, %192 : vector<2x128xf32>
    %194 = vector.broadcast %44 : vector<1x128xf32> to vector<2x128xf32>
    %195 = arith.addf %193, %194 : vector<2x128xf32>
    %196 = vector.extract_strided_slice %195 {offsets = [0, 0], sizes = [2, 32], strides = [1, 1]} : vector<2x128xf32> to vector<2x32xf32>
    %197 = arith.negf %196 : vector<2x32xf32>
    %198 = math.exp %197 : vector<2x32xf32>
    %cst_58 = arith.constant 1.000000e+00 : f32
    %199 = vector.broadcast %cst_58 : f32 to vector<2x32xf32>
    %200 = arith.addf %199, %198 : vector<2x32xf32>
    %201 = arith.divf %199, %200 : vector<2x32xf32>
    %202 = vector.extract_strided_slice %195 {offsets = [0, 32], sizes = [2, 32], strides = [1, 1]} : vector<2x128xf32> to vector<2x32xf32>
    %203 = arith.negf %202 : vector<2x32xf32>
    %204 = math.exp %203 : vector<2x32xf32>
    %cst_59 = arith.constant 1.000000e+00 : f32
    %205 = vector.broadcast %cst_59 : f32 to vector<2x32xf32>
    %206 = arith.addf %205, %204 : vector<2x32xf32>
    %207 = arith.divf %205, %206 : vector<2x32xf32>
    %208 = vector.extract_strided_slice %195 {offsets = [0, 64], sizes = [2, 32], strides = [1, 1]} : vector<2x128xf32> to vector<2x32xf32>
    %209 = math.tanh %208 : vector<2x32xf32>
    %210 = vector.extract_strided_slice %195 {offsets = [0, 96], sizes = [2, 32], strides = [1, 1]} : vector<2x128xf32> to vector<2x32xf32>
    %211 = arith.negf %210 : vector<2x32xf32>
    %212 = math.exp %211 : vector<2x32xf32>
    %cst_60 = arith.constant 1.000000e+00 : f32
    %213 = vector.broadcast %cst_60 : f32 to vector<2x32xf32>
    %214 = arith.addf %213, %212 : vector<2x32xf32>
    %215 = arith.divf %213, %214 : vector<2x32xf32>
    %216 = arith.mulf %207, %159 : vector<2x32xf32>
    %217 = arith.mulf %201, %209 : vector<2x32xf32>
    %218 = arith.addf %216, %217 : vector<2x32xf32>
    %219 = math.tanh %218 : vector<2x32xf32>
    %220 = arith.mulf %215, %219 : vector<2x32xf32>
    %c4 = arith.constant 4 : index
    %c0_61 = arith.constant 0 : index
    %221 = vector.load %arg16[%c4, %c0_61] : memref<16x32xf32, #tpu.memory_space<vmem>>, vector<2x32xf32>
    tpu.vector_store %arg16[%c4, %c0_61], %220 {strides = array<i32>} : memref<16x32xf32, #tpu.memory_space<vmem>>, vector<2x32xf32>,
    %222 = vector.extract_strided_slice %40 {offsets = [4, 0], sizes = [2, 128], strides = [1, 1]} : vector<14x128xf32> to vector<2x128xf32>
    %cst_62 = arith.constant dense<0.000000e+00> : vector<2x128xf32>
    %223 = tpu.matmul %190, %41, %cst_62 {dimension_numbers = #tpu.dot_dimension_numbers<[1], [0], [0], [1], [0, 0, 1, 1], [], []>} : vector<2x32xf32>, vector<32x128xf32>, vector<2x128xf32> -> vector<2x128xf32>
    %224 = arith.addf %222, %223 : vector<2x128xf32>
    %225 = vector.extract_strided_slice %224 {offsets = [0, 0], sizes = [2, 32], strides = [1, 1]} : vector<2x128xf32> to vector<2x32xf32>
    %226 = arith.negf %225 : vector<2x32xf32>
    %227 = math.exp %226 : vector<2x32xf32>
    %cst_63 = arith.constant 1.000000e+00 : f32
    %228 = vector.broadcast %cst_63 : f32 to vector<2x32xf32>
    %229 = arith.addf %228, %227 : vector<2x32xf32>
    %230 = arith.divf %228, %229 : vector<2x32xf32>
    %231 = vector.extract_strided_slice %224 {offsets = [0, 32], sizes = [2, 32], strides = [1, 1]} : vector<2x128xf32> to vector<2x32xf32>
    %232 = arith.negf %231 : vector<2x32xf32>
    %233 = math.exp %232 : vector<2x32xf32>
    %cst_64 = arith.constant 1.000000e+00 : f32
    %234 = vector.broadcast %cst_64 : f32 to vector<2x32xf32>
    %235 = arith.addf %234, %233 : vector<2x32xf32>
    %236 = arith.divf %234, %235 : vector<2x32xf32>
    %237 = vector.extract_strided_slice %224 {offsets = [0, 64], sizes = [2, 32], strides = [1, 1]} : vector<2x128xf32> to vector<2x32xf32>
    %238 = math.tanh %237 : vector<2x32xf32>
    %239 = vector.extract_strided_slice %224 {offsets = [0, 96], sizes = [2, 32], strides = [1, 1]} : vector<2x128xf32> to vector<2x32xf32>
    %240 = arith.negf %239 : vector<2x32xf32>
    %241 = math.exp %240 : vector<2x32xf32>
    %cst_65 = arith.constant 1.000000e+00 : f32
    %242 = vector.broadcast %cst_65 : f32 to vector<2x32xf32>
    %243 = arith.addf %242, %241 : vector<2x32xf32>
    %244 = arith.divf %242, %243 : vector<2x32xf32>
    %245 = arith.mulf %236, %188 : vector<2x32xf32>
    %246 = arith.mulf %230, %238 : vector<2x32xf32>
    %247 = arith.addf %245, %246 : vector<2x32xf32>
    %248 = math.tanh %247 : vector<2x32xf32>
    %249 = arith.mulf %244, %248 : vector<2x32xf32>
    %cst_66 = arith.constant dense<0.000000e+00> : vector<2x128xf32>
    %250 = tpu.matmul %249, %42, %cst_66 {dimension_numbers = #tpu.dot_dimension_numbers<[1], [0], [0], [1], [0, 0, 1, 1], [], []>} : vector<2x32xf32>, vector<32x128xf32>, vector<2x128xf32> -> vector<2x128xf32>
    %cst_67 = arith.constant dense<0.000000e+00> : vector<2x128xf32>
    %251 = tpu.matmul %220, %43, %cst_67 {dimension_numbers = #tpu.dot_dimension_numbers<[1], [0], [0], [1], [0, 0, 1, 1], [], []>} : vector<2x32xf32>, vector<32x128xf32>, vector<2x128xf32> -> vector<2x128xf32>
    %252 = arith.addf %250, %251 : vector<2x128xf32>
    %253 = vector.broadcast %44 : vector<1x128xf32> to vector<2x128xf32>
    %254 = arith.addf %252, %253 : vector<2x128xf32>
    %255 = vector.extract_strided_slice %254 {offsets = [0, 0], sizes = [2, 32], strides = [1, 1]} : vector<2x128xf32> to vector<2x32xf32>
    %256 = arith.negf %255 : vector<2x32xf32>
    %257 = math.exp %256 : vector<2x32xf32>
    %cst_68 = arith.constant 1.000000e+00 : f32
    %258 = vector.broadcast %cst_68 : f32 to vector<2x32xf32>
    %259 = arith.addf %258, %257 : vector<2x32xf32>
    %260 = arith.divf %258, %259 : vector<2x32xf32>
    %261 = vector.extract_strided_slice %254 {offsets = [0, 32], sizes = [2, 32], strides = [1, 1]} : vector<2x128xf32> to vector<2x32xf32>
    %262 = arith.negf %261 : vector<2x32xf32>
    %263 = math.exp %262 : vector<2x32xf32>
    %cst_69 = arith.constant 1.000000e+00 : f32
    %264 = vector.broadcast %cst_69 : f32 to vector<2x32xf32>
    %265 = arith.addf %264, %263 : vector<2x32xf32>
    %266 = arith.divf %264, %265 : vector<2x32xf32>
    %267 = vector.extract_strided_slice %254 {offsets = [0, 64], sizes = [2, 32], strides = [1, 1]} : vector<2x128xf32> to vector<2x32xf32>
    %268 = math.tanh %267 : vector<2x32xf32>
    %269 = vector.extract_strided_slice %254 {offsets = [0, 96], sizes = [2, 32], strides = [1, 1]} : vector<2x128xf32> to vector<2x32xf32>
    %270 = arith.negf %269 : vector<2x32xf32>
    %271 = math.exp %270 : vector<2x32xf32>
    %cst_70 = arith.constant 1.000000e+00 : f32
    %272 = vector.broadcast %cst_70 : f32 to vector<2x32xf32>
    %273 = arith.addf %272, %271 : vector<2x32xf32>
    %274 = arith.divf %272, %273 : vector<2x32xf32>
    %275 = arith.mulf %266, %218 : vector<2x32xf32>
    %276 = arith.mulf %260, %268 : vector<2x32xf32>
    %277 = arith.addf %275, %276 : vector<2x32xf32>
    %278 = math.tanh %277 : vector<2x32xf32>
    %279 = arith.mulf %274, %278 : vector<2x32xf32>
    %c6 = arith.constant 6 : index
    %c0_71 = arith.constant 0 : index
    %280 = vector.load %arg16[%c6, %c0_71] : memref<16x32xf32, #tpu.memory_space<vmem>>, vector<2x32xf32>
    tpu.vector_store %arg16[%c6, %c0_71], %279 {strides = array<i32>} : memref<16x32xf32, #tpu.memory_space<vmem>>, vector<2x32xf32>,
    %281 = vector.extract_strided_slice %40 {offsets = [6, 0], sizes = [2, 128], strides = [1, 1]} : vector<14x128xf32> to vector<2x128xf32>
    %cst_72 = arith.constant dense<0.000000e+00> : vector<2x128xf32>
    %282 = tpu.matmul %249, %41, %cst_72 {dimension_numbers = #tpu.dot_dimension_numbers<[1], [0], [0], [1], [0, 0, 1, 1], [], []>} : vector<2x32xf32>, vector<32x128xf32>, vector<2x128xf32> -> vector<2x128xf32>
    %283 = arith.addf %281, %282 : vector<2x128xf32>
    %284 = vector.extract_strided_slice %283 {offsets = [0, 0], sizes = [2, 32], strides = [1, 1]} : vector<2x128xf32> to vector<2x32xf32>
    %285 = arith.negf %284 : vector<2x32xf32>
    %286 = math.exp %285 : vector<2x32xf32>
    %cst_73 = arith.constant 1.000000e+00 : f32
    %287 = vector.broadcast %cst_73 : f32 to vector<2x32xf32>
    %288 = arith.addf %287, %286 : vector<2x32xf32>
    %289 = arith.divf %287, %288 : vector<2x32xf32>
    %290 = vector.extract_strided_slice %283 {offsets = [0, 32], sizes = [2, 32], strides = [1, 1]} : vector<2x128xf32> to vector<2x32xf32>
    %291 = arith.negf %290 : vector<2x32xf32>
    %292 = math.exp %291 : vector<2x32xf32>
    %cst_74 = arith.constant 1.000000e+00 : f32
    %293 = vector.broadcast %cst_74 : f32 to vector<2x32xf32>
    %294 = arith.addf %293, %292 : vector<2x32xf32>
    %295 = arith.divf %293, %294 : vector<2x32xf32>
    %296 = vector.extract_strided_slice %283 {offsets = [0, 64], sizes = [2, 32], strides = [1, 1]} : vector<2x128xf32> to vector<2x32xf32>
    %297 = math.tanh %296 : vector<2x32xf32>
    %298 = vector.extract_strided_slice %283 {offsets = [0, 96], sizes = [2, 32], strides = [1, 1]} : vector<2x128xf32> to vector<2x32xf32>
    %299 = arith.negf %298 : vector<2x32xf32>
    %300 = math.exp %299 : vector<2x32xf32>
    %cst_75 = arith.constant 1.000000e+00 : f32
    %301 = vector.broadcast %cst_75 : f32 to vector<2x32xf32>
    %302 = arith.addf %301, %300 : vector<2x32xf32>
    %303 = arith.divf %301, %302 : vector<2x32xf32>
    %304 = arith.mulf %295, %247 : vector<2x32xf32>
    %305 = arith.mulf %289, %297 : vector<2x32xf32>
    %306 = arith.addf %304, %305 : vector<2x32xf32>
    %307 = math.tanh %306 : vector<2x32xf32>
    %308 = arith.mulf %303, %307 : vector<2x32xf32>
    %cst_76 = arith.constant dense<0.000000e+00> : vector<2x128xf32>
    %309 = tpu.matmul %308, %42, %cst_76 {dimension_numbers = #tpu.dot_dimension_numbers<[1], [0], [0], [1], [0, 0, 1, 1], [], []>} : vector<2x32xf32>, vector<32x128xf32>, vector<2x128xf32> -> vector<2x128xf32>
    %cst_77 = arith.constant dense<0.000000e+00> : vector<2x128xf32>
    %310 = tpu.matmul %279, %43, %cst_77 {dimension_numbers = #tpu.dot_dimension_numbers<[1], [0], [0], [1], [0, 0, 1, 1], [], []>} : vector<2x32xf32>, vector<32x128xf32>, vector<2x128xf32> -> vector<2x128xf32>
    %311 = arith.addf %309, %310 : vector<2x128xf32>
    %312 = vector.broadcast %44 : vector<1x128xf32> to vector<2x128xf32>
    %313 = arith.addf %311, %312 : vector<2x128xf32>
    %314 = vector.extract_strided_slice %313 {offsets = [0, 0], sizes = [2, 32], strides = [1, 1]} : vector<2x128xf32> to vector<2x32xf32>
    %315 = arith.negf %314 : vector<2x32xf32>
    %316 = math.exp %315 : vector<2x32xf32>
    %cst_78 = arith.constant 1.000000e+00 : f32
    %317 = vector.broadcast %cst_78 : f32 to vector<2x32xf32>
    %318 = arith.addf %317, %316 : vector<2x32xf32>
    %319 = arith.divf %317, %318 : vector<2x32xf32>
    %320 = vector.extract_strided_slice %313 {offsets = [0, 32], sizes = [2, 32], strides = [1, 1]} : vector<2x128xf32> to vector<2x32xf32>
    %321 = arith.negf %320 : vector<2x32xf32>
    %322 = math.exp %321 : vector<2x32xf32>
    %cst_79 = arith.constant 1.000000e+00 : f32
    %323 = vector.broadcast %cst_79 : f32 to vector<2x32xf32>
    %324 = arith.addf %323, %322 : vector<2x32xf32>
    %325 = arith.divf %323, %324 : vector<2x32xf32>
    %326 = vector.extract_strided_slice %313 {offsets = [0, 64], sizes = [2, 32], strides = [1, 1]} : vector<2x128xf32> to vector<2x32xf32>
    %327 = math.tanh %326 : vector<2x32xf32>
    %328 = vector.extract_strided_slice %313 {offsets = [0, 96], sizes = [2, 32], strides = [1, 1]} : vector<2x128xf32> to vector<2x32xf32>
    %329 = arith.negf %328 : vector<2x32xf32>
    %330 = math.exp %329 : vector<2x32xf32>
    %cst_80 = arith.constant 1.000000e+00 : f32
    %331 = vector.broadcast %cst_80 : f32 to vector<2x32xf32>
    %332 = arith.addf %331, %330 : vector<2x32xf32>
    %333 = arith.divf %331, %332 : vector<2x32xf32>
    %334 = arith.mulf %325, %277 : vector<2x32xf32>
    %335 = arith.mulf %319, %327 : vector<2x32xf32>
    %336 = arith.addf %334, %335 : vector<2x32xf32>
    %337 = math.tanh %336 : vector<2x32xf32>
    %338 = arith.mulf %333, %337 : vector<2x32xf32>
    %c8 = arith.constant 8 : index
    %c0_81 = arith.constant 0 : index
    %339 = vector.load %arg16[%c8, %c0_81] : memref<16x32xf32, #tpu.memory_space<vmem>>, vector<2x32xf32>
    tpu.vector_store %arg16[%c8, %c0_81], %338 {strides = array<i32>} : memref<16x32xf32, #tpu.memory_space<vmem>>, vector<2x32xf32>,
    %340 = vector.extract_strided_slice %40 {offsets = [8, 0], sizes = [2, 128], strides = [1, 1]} : vector<14x128xf32> to vector<2x128xf32>
    %cst_82 = arith.constant dense<0.000000e+00> : vector<2x128xf32>
    %341 = tpu.matmul %308, %41, %cst_82 {dimension_numbers = #tpu.dot_dimension_numbers<[1], [0], [0], [1], [0, 0, 1, 1], [], []>} : vector<2x32xf32>, vector<32x128xf32>, vector<2x128xf32> -> vector<2x128xf32>
    %342 = arith.addf %340, %341 : vector<2x128xf32>
    %343 = vector.extract_strided_slice %342 {offsets = [0, 0], sizes = [2, 32], strides = [1, 1]} : vector<2x128xf32> to vector<2x32xf32>
    %344 = arith.negf %343 : vector<2x32xf32>
    %345 = math.exp %344 : vector<2x32xf32>
    %cst_83 = arith.constant 1.000000e+00 : f32
    %346 = vector.broadcast %cst_83 : f32 to vector<2x32xf32>
    %347 = arith.addf %346, %345 : vector<2x32xf32>
    %348 = arith.divf %346, %347 : vector<2x32xf32>
    %349 = vector.extract_strided_slice %342 {offsets = [0, 32], sizes = [2, 32], strides = [1, 1]} : vector<2x128xf32> to vector<2x32xf32>
    %350 = arith.negf %349 : vector<2x32xf32>
    %351 = math.exp %350 : vector<2x32xf32>
    %cst_84 = arith.constant 1.000000e+00 : f32
    %352 = vector.broadcast %cst_84 : f32 to vector<2x32xf32>
    %353 = arith.addf %352, %351 : vector<2x32xf32>
    %354 = arith.divf %352, %353 : vector<2x32xf32>
    %355 = vector.extract_strided_slice %342 {offsets = [0, 64], sizes = [2, 32], strides = [1, 1]} : vector<2x128xf32> to vector<2x32xf32>
    %356 = math.tanh %355 : vector<2x32xf32>
    %357 = vector.extract_strided_slice %342 {offsets = [0, 96], sizes = [2, 32], strides = [1, 1]} : vector<2x128xf32> to vector<2x32xf32>
    %358 = arith.negf %357 : vector<2x32xf32>
    %359 = math.exp %358 : vector<2x32xf32>
    %cst_85 = arith.constant 1.000000e+00 : f32
    %360 = vector.broadcast %cst_85 : f32 to vector<2x32xf32>
    %361 = arith.addf %360, %359 : vector<2x32xf32>
    %362 = arith.divf %360, %361 : vector<2x32xf32>
    %363 = arith.mulf %354, %306 : vector<2x32xf32>
    %364 = arith.mulf %348, %356 : vector<2x32xf32>
    %365 = arith.addf %363, %364 : vector<2x32xf32>
    %366 = math.tanh %365 : vector<2x32xf32>
    %367 = arith.mulf %362, %366 : vector<2x32xf32>
    %cst_86 = arith.constant dense<0.000000e+00> : vector<2x128xf32>
    %368 = tpu.matmul %367, %42, %cst_86 {dimension_numbers = #tpu.dot_dimension_numbers<[1], [0], [0], [1], [0, 0, 1, 1], [], []>} : vector<2x32xf32>, vector<32x128xf32>, vector<2x128xf32> -> vector<2x128xf32>
    %cst_87 = arith.constant dense<0.000000e+00> : vector<2x128xf32>
    %369 = tpu.matmul %338, %43, %cst_87 {dimension_numbers = #tpu.dot_dimension_numbers<[1], [0], [0], [1], [0, 0, 1, 1], [], []>} : vector<2x32xf32>, vector<32x128xf32>, vector<2x128xf32> -> vector<2x128xf32>
    %370 = arith.addf %368, %369 : vector<2x128xf32>
    %371 = vector.broadcast %44 : vector<1x128xf32> to vector<2x128xf32>
    %372 = arith.addf %370, %371 : vector<2x128xf32>
    %373 = vector.extract_strided_slice %372 {offsets = [0, 0], sizes = [2, 32], strides = [1, 1]} : vector<2x128xf32> to vector<2x32xf32>
    %374 = arith.negf %373 : vector<2x32xf32>
    %375 = math.exp %374 : vector<2x32xf32>
    %cst_88 = arith.constant 1.000000e+00 : f32
    %376 = vector.broadcast %cst_88 : f32 to vector<2x32xf32>
    %377 = arith.addf %376, %375 : vector<2x32xf32>
    %378 = arith.divf %376, %377 : vector<2x32xf32>
    %379 = vector.extract_strided_slice %372 {offsets = [0, 32], sizes = [2, 32], strides = [1, 1]} : vector<2x128xf32> to vector<2x32xf32>
    %380 = arith.negf %379 : vector<2x32xf32>
    %381 = math.exp %380 : vector<2x32xf32>
    %cst_89 = arith.constant 1.000000e+00 : f32
    %382 = vector.broadcast %cst_89 : f32 to vector<2x32xf32>
    %383 = arith.addf %382, %381 : vector<2x32xf32>
    %384 = arith.divf %382, %383 : vector<2x32xf32>
    %385 = vector.extract_strided_slice %372 {offsets = [0, 64], sizes = [2, 32], strides = [1, 1]} : vector<2x128xf32> to vector<2x32xf32>
    %386 = math.tanh %385 : vector<2x32xf32>
    %387 = vector.extract_strided_slice %372 {offsets = [0, 96], sizes = [2, 32], strides = [1, 1]} : vector<2x128xf32> to vector<2x32xf32>
    %388 = arith.negf %387 : vector<2x32xf32>
    %389 = math.exp %388 : vector<2x32xf32>
    %cst_90 = arith.constant 1.000000e+00 : f32
    %390 = vector.broadcast %cst_90 : f32 to vector<2x32xf32>
    %391 = arith.addf %390, %389 : vector<2x32xf32>
    %392 = arith.divf %390, %391 : vector<2x32xf32>
    %393 = arith.mulf %384, %336 : vector<2x32xf32>
    %394 = arith.mulf %378, %386 : vector<2x32xf32>
    %395 = arith.addf %393, %394 : vector<2x32xf32>
    %396 = math.tanh %395 : vector<2x32xf32>
    %397 = arith.mulf %392, %396 : vector<2x32xf32>
    %c10 = arith.constant 10 : index
    %c0_91 = arith.constant 0 : index
    %398 = vector.load %arg16[%c10, %c0_91] : memref<16x32xf32, #tpu.memory_space<vmem>>, vector<2x32xf32>
    tpu.vector_store %arg16[%c10, %c0_91], %397 {strides = array<i32>} : memref<16x32xf32, #tpu.memory_space<vmem>>, vector<2x32xf32>,
    %399 = vector.extract_strided_slice %40 {offsets = [10, 0], sizes = [2, 128], strides = [1, 1]} : vector<14x128xf32> to vector<2x128xf32>
    %cst_92 = arith.constant dense<0.000000e+00> : vector<2x128xf32>
    %400 = tpu.matmul %367, %41, %cst_92 {dimension_numbers = #tpu.dot_dimension_numbers<[1], [0], [0], [1], [0, 0, 1, 1], [], []>} : vector<2x32xf32>, vector<32x128xf32>, vector<2x128xf32> -> vector<2x128xf32>
    %401 = arith.addf %399, %400 : vector<2x128xf32>
    %402 = vector.extract_strided_slice %401 {offsets = [0, 0], sizes = [2, 32], strides = [1, 1]} : vector<2x128xf32> to vector<2x32xf32>
    %403 = arith.negf %402 : vector<2x32xf32>
    %404 = math.exp %403 : vector<2x32xf32>
    %cst_93 = arith.constant 1.000000e+00 : f32
    %405 = vector.broadcast %cst_93 : f32 to vector<2x32xf32>
    %406 = arith.addf %405, %404 : vector<2x32xf32>
    %407 = arith.divf %405, %406 : vector<2x32xf32>
    %408 = vector.extract_strided_slice %401 {offsets = [0, 32], sizes = [2, 32], strides = [1, 1]} : vector<2x128xf32> to vector<2x32xf32>
    %409 = arith.negf %408 : vector<2x32xf32>
    %410 = math.exp %409 : vector<2x32xf32>
    %cst_94 = arith.constant 1.000000e+00 : f32
    %411 = vector.broadcast %cst_94 : f32 to vector<2x32xf32>
    %412 = arith.addf %411, %410 : vector<2x32xf32>
    %413 = arith.divf %411, %412 : vector<2x32xf32>
    %414 = vector.extract_strided_slice %401 {offsets = [0, 64], sizes = [2, 32], strides = [1, 1]} : vector<2x128xf32> to vector<2x32xf32>
    %415 = math.tanh %414 : vector<2x32xf32>
    %416 = vector.extract_strided_slice %401 {offsets = [0, 96], sizes = [2, 32], strides = [1, 1]} : vector<2x128xf32> to vector<2x32xf32>
    %417 = arith.negf %416 : vector<2x32xf32>
    %418 = math.exp %417 : vector<2x32xf32>
    %cst_95 = arith.constant 1.000000e+00 : f32
    %419 = vector.broadcast %cst_95 : f32 to vector<2x32xf32>
    %420 = arith.addf %419, %418 : vector<2x32xf32>
    %421 = arith.divf %419, %420 : vector<2x32xf32>
    %422 = arith.mulf %413, %365 : vector<2x32xf32>
    %423 = arith.mulf %407, %415 : vector<2x32xf32>
    %424 = arith.addf %422, %423 : vector<2x32xf32>
    %425 = math.tanh %424 : vector<2x32xf32>
    %426 = arith.mulf %421, %425 : vector<2x32xf32>
    %cst_96 = arith.constant dense<0.000000e+00> : vector<2x128xf32>
    %427 = tpu.matmul %426, %42, %cst_96 {dimension_numbers = #tpu.dot_dimension_numbers<[1], [0], [0], [1], [0, 0, 1, 1], [], []>} : vector<2x32xf32>, vector<32x128xf32>, vector<2x128xf32> -> vector<2x128xf32>
    %cst_97 = arith.constant dense<0.000000e+00> : vector<2x128xf32>
    %428 = tpu.matmul %397, %43, %cst_97 {dimension_numbers = #tpu.dot_dimension_numbers<[1], [0], [0], [1], [0, 0, 1, 1], [], []>} : vector<2x32xf32>, vector<32x128xf32>, vector<2x128xf32> -> vector<2x128xf32>
    %429 = arith.addf %427, %428 : vector<2x128xf32>
    %430 = vector.broadcast %44 : vector<1x128xf32> to vector<2x128xf32>
    %431 = arith.addf %429, %430 : vector<2x128xf32>
    %432 = vector.extract_strided_slice %431 {offsets = [0, 0], sizes = [2, 32], strides = [1, 1]} : vector<2x128xf32> to vector<2x32xf32>
    %433 = arith.negf %432 : vector<2x32xf32>
    %434 = math.exp %433 : vector<2x32xf32>
    %cst_98 = arith.constant 1.000000e+00 : f32
    %435 = vector.broadcast %cst_98 : f32 to vector<2x32xf32>
    %436 = arith.addf %435, %434 : vector<2x32xf32>
    %437 = arith.divf %435, %436 : vector<2x32xf32>
    %438 = vector.extract_strided_slice %431 {offsets = [0, 32], sizes = [2, 32], strides = [1, 1]} : vector<2x128xf32> to vector<2x32xf32>
    %439 = arith.negf %438 : vector<2x32xf32>
    %440 = math.exp %439 : vector<2x32xf32>
    %cst_99 = arith.constant 1.000000e+00 : f32
    %441 = vector.broadcast %cst_99 : f32 to vector<2x32xf32>
    %442 = arith.addf %441, %440 : vector<2x32xf32>
    %443 = arith.divf %441, %442 : vector<2x32xf32>
    %444 = vector.extract_strided_slice %431 {offsets = [0, 64], sizes = [2, 32], strides = [1, 1]} : vector<2x128xf32> to vector<2x32xf32>
    %445 = math.tanh %444 : vector<2x32xf32>
    %446 = vector.extract_strided_slice %431 {offsets = [0, 96], sizes = [2, 32], strides = [1, 1]} : vector<2x128xf32> to vector<2x32xf32>
    %447 = arith.negf %446 : vector<2x32xf32>
    %448 = math.exp %447 : vector<2x32xf32>
    %cst_100 = arith.constant 1.000000e+00 : f32
    %449 = vector.broadcast %cst_100 : f32 to vector<2x32xf32>
    %450 = arith.addf %449, %448 : vector<2x32xf32>
    %451 = arith.divf %449, %450 : vector<2x32xf32>
    %452 = arith.mulf %443, %395 : vector<2x32xf32>
    %453 = arith.mulf %437, %445 : vector<2x32xf32>
    %454 = arith.addf %452, %453 : vector<2x32xf32>
    %455 = math.tanh %454 : vector<2x32xf32>
    %456 = arith.mulf %451, %455 : vector<2x32xf32>
    %c12 = arith.constant 12 : index
    %c0_101 = arith.constant 0 : index
    %457 = vector.load %arg16[%c12, %c0_101] : memref<16x32xf32, #tpu.memory_space<vmem>>, vector<2x32xf32>
    tpu.vector_store %arg16[%c12, %c0_101], %456 {strides = array<i32>} : memref<16x32xf32, #tpu.memory_space<vmem>>, vector<2x32xf32>,
    %458 = vector.extract_strided_slice %40 {offsets = [12, 0], sizes = [2, 128], strides = [1, 1]} : vector<14x128xf32> to vector<2x128xf32>
    %cst_102 = arith.constant dense<0.000000e+00> : vector<2x128xf32>
    %459 = tpu.matmul %426, %41, %cst_102 {dimension_numbers = #tpu.dot_dimension_numbers<[1], [0], [0], [1], [0, 0, 1, 1], [], []>} : vector<2x32xf32>, vector<32x128xf32>, vector<2x128xf32> -> vector<2x128xf32>
    %460 = arith.addf %458, %459 : vector<2x128xf32>
    %461 = vector.extract_strided_slice %460 {offsets = [0, 0], sizes = [2, 32], strides = [1, 1]} : vector<2x128xf32> to vector<2x32xf32>
    %462 = arith.negf %461 : vector<2x32xf32>
    %463 = math.exp %462 : vector<2x32xf32>
    %cst_103 = arith.constant 1.000000e+00 : f32
    %464 = vector.broadcast %cst_103 : f32 to vector<2x32xf32>
    %465 = arith.addf %464, %463 : vector<2x32xf32>
    %466 = arith.divf %464, %465 : vector<2x32xf32>
    %467 = vector.extract_strided_slice %460 {offsets = [0, 32], sizes = [2, 32], strides = [1, 1]} : vector<2x128xf32> to vector<2x32xf32>
    %468 = arith.negf %467 : vector<2x32xf32>
    %469 = math.exp %468 : vector<2x32xf32>
    %cst_104 = arith.constant 1.000000e+00 : f32
    %470 = vector.broadcast %cst_104 : f32 to vector<2x32xf32>
    %471 = arith.addf %470, %469 : vector<2x32xf32>
    %472 = arith.divf %470, %471 : vector<2x32xf32>
    %473 = vector.extract_strided_slice %460 {offsets = [0, 64], sizes = [2, 32], strides = [1, 1]} : vector<2x128xf32> to vector<2x32xf32>
    %474 = math.tanh %473 : vector<2x32xf32>
    %475 = vector.extract_strided_slice %460 {offsets = [0, 96], sizes = [2, 32], strides = [1, 1]} : vector<2x128xf32> to vector<2x32xf32>
    %476 = arith.negf %475 : vector<2x32xf32>
    %477 = math.exp %476 : vector<2x32xf32>
    %cst_105 = arith.constant 1.000000e+00 : f32
    %478 = vector.broadcast %cst_105 : f32 to vector<2x32xf32>
    %479 = arith.addf %478, %477 : vector<2x32xf32>
    %480 = arith.divf %478, %479 : vector<2x32xf32>
    %481 = arith.mulf %472, %424 : vector<2x32xf32>
    %482 = arith.mulf %466, %474 : vector<2x32xf32>
    %483 = arith.addf %481, %482 : vector<2x32xf32>
    %484 = math.tanh %483 : vector<2x32xf32>
    %485 = arith.mulf %480, %484 : vector<2x32xf32>
    %cst_106 = arith.constant dense<0.000000e+00> : vector<2x128xf32>
    %486 = tpu.matmul %485, %42, %cst_106 {dimension_numbers = #tpu.dot_dimension_numbers<[1], [0], [0], [1], [0, 0, 1, 1], [], []>} : vector<2x32xf32>, vector<32x128xf32>, vector<2x128xf32> -> vector<2x128xf32>
    %cst_107 = arith.constant dense<0.000000e+00> : vector<2x128xf32>
    %487 = tpu.matmul %456, %43, %cst_107 {dimension_numbers = #tpu.dot_dimension_numbers<[1], [0], [0], [1], [0, 0, 1, 1], [], []>} : vector<2x32xf32>, vector<32x128xf32>, vector<2x128xf32> -> vector<2x128xf32>
    %488 = arith.addf %486, %487 : vector<2x128xf32>
    %489 = vector.broadcast %44 : vector<1x128xf32> to vector<2x128xf32>
    %490 = arith.addf %488, %489 : vector<2x128xf32>
    %491 = vector.extract_strided_slice %490 {offsets = [0, 0], sizes = [2, 32], strides = [1, 1]} : vector<2x128xf32> to vector<2x32xf32>
    %492 = arith.negf %491 : vector<2x32xf32>
    %493 = math.exp %492 : vector<2x32xf32>
    %cst_108 = arith.constant 1.000000e+00 : f32
    %494 = vector.broadcast %cst_108 : f32 to vector<2x32xf32>
    %495 = arith.addf %494, %493 : vector<2x32xf32>
    %496 = arith.divf %494, %495 : vector<2x32xf32>
    %497 = vector.extract_strided_slice %490 {offsets = [0, 32], sizes = [2, 32], strides = [1, 1]} : vector<2x128xf32> to vector<2x32xf32>
    %498 = arith.negf %497 : vector<2x32xf32>
    %499 = math.exp %498 : vector<2x32xf32>
    %cst_109 = arith.constant 1.000000e+00 : f32
    %500 = vector.broadcast %cst_109 : f32 to vector<2x32xf32>
    %501 = arith.addf %500, %499 : vector<2x32xf32>
    %502 = arith.divf %500, %501 : vector<2x32xf32>
    %503 = vector.extract_strided_slice %490 {offsets = [0, 64], sizes = [2, 32], strides = [1, 1]} : vector<2x128xf32> to vector<2x32xf32>
    %504 = math.tanh %503 : vector<2x32xf32>
    %505 = vector.extract_strided_slice %490 {offsets = [0, 96], sizes = [2, 32], strides = [1, 1]} : vector<2x128xf32> to vector<2x32xf32>
    %506 = arith.negf %505 : vector<2x32xf32>
    %507 = math.exp %506 : vector<2x32xf32>
    %cst_110 = arith.constant 1.000000e+00 : f32
    %508 = vector.broadcast %cst_110 : f32 to vector<2x32xf32>
    %509 = arith.addf %508, %507 : vector<2x32xf32>
    %510 = arith.divf %508, %509 : vector<2x32xf32>
    %511 = arith.mulf %502, %454 : vector<2x32xf32>
    %512 = arith.mulf %496, %504 : vector<2x32xf32>
    %513 = arith.addf %511, %512 : vector<2x32xf32>
    %514 = math.tanh %513 : vector<2x32xf32>
    %515 = arith.mulf %510, %514 : vector<2x32xf32>
    %c14 = arith.constant 14 : index
    %c0_111 = arith.constant 0 : index
    %516 = vector.load %arg16[%c14, %c0_111] : memref<16x32xf32, #tpu.memory_space<vmem>>, vector<2x32xf32>
    tpu.vector_store %arg16[%c14, %c0_111], %515 {strides = array<i32>} : memref<16x32xf32, #tpu.memory_space<vmem>>, vector<2x32xf32>,
    %c0_112 = arith.constant 0 : index
    %c0_113 = arith.constant 0 : index
    %517 = vector.load %arg16[%c0_112, %c0_113] : memref<16x32xf32, #tpu.memory_space<vmem>>, vector<16x32xf32>
    %c0_114 = arith.constant 0 : index
    %c0_115 = arith.constant 0 : index
    %518 = vector.load %arg13[%c0_114, %c0_115] : memref<32x64xf32, #tpu.memory_space<vmem>>, vector<32x64xf32>
    %cst_116 = arith.constant dense<0.000000e+00> : vector<16x64xf32>
    %519 = tpu.matmul %517, %518, %cst_116 {dimension_numbers = #tpu.dot_dimension_numbers<[1], [0], [0], [1], [0, 0, 1, 1], [], []>} : vector<16x32xf32>, vector<32x64xf32>, vector<16x64xf32> -> vector<16x64xf32>
    %c0_117 = arith.constant 0 : index
    %c0_118 = arith.constant 0 : index
    %520 = vector.load %arg14[%c0_117, %c0_118] : memref<1x64xf32, #tpu.memory_space<vmem>>, vector<1x64xf32>
    %521 = vector.broadcast %520 : vector<1x64xf32> to vector<16x64xf32>
    %522 = arith.addf %519, %521 : vector<16x64xf32>
    %c0_119 = arith.constant 0 : index
    %c0_120 = arith.constant 0 : index
    %523 = vector.load %arg15[%c0_119, %c0_120] : memref<16x64xf32, #tpu.memory_space<vmem>>, vector<16x64xf32>
    tpu.vector_store %arg15[%c0_119, %c0_120], %522 {strides = array<i32>} : memref<16x64xf32, #tpu.memory_space<vmem>>, vector<16x64xf32>,
    return
  }
  func.func @transform_0(%arg0: i32) -> (i32, i32) {
    %c0_i32 = arith.constant 0 : i32
    %c0_i32_0 = arith.constant 0 : i32
    %c0_i32_1 = arith.constant 0 : i32
    return %c0_i32, %c0_i32_0 : i32, i32
  }
  func.func @transform_1(%arg0: i32) -> (i32, i32) {
    %c0_i32 = arith.constant 0 : i32
    %c0_i32_0 = arith.constant 0 : i32
    %c0_i32_1 = arith.constant 0 : i32
    return %c0_i32, %c0_i32_0 : i32, i32
  }
  func.func @transform_2(%arg0: i32) -> (i32, i32) {
    %c0_i32 = arith.constant 0 : i32
    %c0_i32_0 = arith.constant 0 : i32
    %c0_i32_1 = arith.constant 0 : i32
    return %c0_i32, %c0_i32_0 : i32, i32
  }
  func.func @transform_3(%arg0: i32) -> (i32, i32) {
    %c0_i32 = arith.constant 0 : i32
    %c0_i32_0 = arith.constant 0 : i32
    %c0_i32_1 = arith.constant 0 : i32
    return %c0_i32, %c0_i32_0 : i32, i32
  }
  func.func @transform_4(%arg0: i32) -> (i32, i32) {
    %c0_i32 = arith.constant 0 : i32
    %c0_i32_0 = arith.constant 0 : i32
    %c0_i32_1 = arith.constant 0 : i32
    return %c0_i32, %c0_i32_0 : i32, i32
  }
  func.func @transform_5(%arg0: i32) -> (i32, i32) {
    %c0_i32 = arith.constant 0 : i32
    %c0_i32_0 = arith.constant 0 : i32
    %c0_i32_1 = arith.constant 0 : i32
    return %c0_i32, %c0_i32_0 : i32, i32
  }
  func.func @transform_6(%arg0: i32) -> (i32, i32) {
    %c0_i32 = arith.constant 0 : i32
    %c0_i32_0 = arith.constant 0 : i32
    %c0_i32_1 = arith.constant 0 : i32
    return %c0_i32, %c0_i32_0 : i32, i32
  }
  func.func @transform_7(%arg0: i32) -> (i32, i32) {
    %c0_i32 = arith.constant 0 : i32
    %c0_i32_0 = arith.constant 0 : i32
    %c0_i32_1 = arith.constant 0 : i32
    return %c0_i32, %c0_i32_0 : i32, i32
  }
  func.func @transform_8(%arg0: i32) -> (i32, i32) {
    %c0_i32 = arith.constant 0 : i32
    %c0_i32_0 = arith.constant 0 : i32
    %c0_i32_1 = arith.constant 0 : i32
    return %c0_i32, %c0_i32_0 : i32, i32
  }
  func.func @transform_9(%arg0: i32) -> (i32, i32) {
    %c0_i32 = arith.constant 0 : i32
    %c0_i32_0 = arith.constant 0 : i32
    %c0_i32_1 = arith.constant 0 : i32
    return %c0_i32, %c0_i32_0 : i32, i32
  }
  func.func @transform_10(%arg0: i32) -> (i32, i32) {
    %c0_i32 = arith.constant 0 : i32
    %c0_i32_0 = arith.constant 0 : i32
    %c0_i32_1 = arith.constant 0 : i32
    return %c0_i32, %c0_i32_0 : i32, i32
  }
  func.func @transform_11(%arg0: i32) -> (i32, i32) {
    %c0_i32 = arith.constant 0 : i32
    %c0_i32_0 = arith.constant 0 : i32
    %c0_i32_1 = arith.constant 0 : i32
    return %c0_i32, %c0_i32_0 : i32, i32
  }
  func.func @transform_12(%arg0: i32) -> (i32, i32) {
    %c0_i32 = arith.constant 0 : i32
    %c0_i32_0 = arith.constant 0 : i32
    %c0_i32_1 = arith.constant 0 : i32
    return %c0_i32, %c0_i32_0 : i32, i32
  }
  func.func @transform_13(%arg0: i32) -> (i32, i32) {
    %c0_i32 = arith.constant 0 : i32
    %c0_i32_0 = arith.constant 0 : i32
    %c0_i32_1 = arith.constant 0 : i32
    return %c0_i32, %c0_i32_0 : i32, i32
  }
  func.func @transform_14(%arg0: i32) -> (i32, i32) {
    %c0_i32 = arith.constant 0 : i32
    %c0_i32_0 = arith.constant 0 : i32
    %c0_i32_1 = arith.constant 0 : i32
    return %c0_i32, %c0_i32_0 : i32, i32
  }
}

</mosaic_0001>

<llo_original>
// kernel: tpu_custom_call.1
$region0: #{tpu_custom_call.1}
  #allocation0 [shape = 'u32[]', space=smem, size = 0x4, offset = 0x4, fixed_abs, tag = 'smem constant byte address 0x4 - core index']
  #allocation1 [shape = 'u32[144,128]{1,0:T(1,128)}', space=vmem, size = 0x12000, scoped, tag = 'internal scratch']
  #allocation2 [shape = 'f32[16,32]{1,0:T(8,128)}', space=vmem, size = 0x2000, scoped, tag = 'scratch operand']
  %s0 = inlined_call_operand.vmem [shape: f32[2,2048], index: 0, kind: input, shape index: {}]
  %s1 = inlined_call_operand.vmem [shape: f32[2048,32], index: 1, kind: input, shape index: {}]
  %s2 = inlined_call_operand.vmem [shape: f32[1,32], index: 2, kind: input, shape index: {}]
  %s3 = inlined_call_operand.vmem [shape: f32[1,32], index: 3, kind: input, shape index: {}]
  %s4 = inlined_call_operand.vmem [shape: f32[1,32], index: 4, kind: input, shape index: {}]
  %s5 = inlined_call_operand.vmem [shape: f32[14,32], index: 5, kind: input, shape index: {}]
  %s6 = inlined_call_operand.vmem [shape: f32[32,128], index: 6, kind: input, shape index: {}]
  %s7 = inlined_call_operand.vmem [shape: f32[32,128], index: 7, kind: input, shape index: {}]
  %s8 = inlined_call_operand.vmem [shape: f32[1,128], index: 8, kind: input, shape index: {}]
  %s9 = inlined_call_operand.vmem [shape: f32[32,128], index: 9, kind: input, shape index: {}]
  %s10 = inlined_call_operand.vmem [shape: f32[32,128], index: 10, kind: input, shape index: {}]
  %s11 = inlined_call_operand.vmem [shape: f32[1,128], index: 11, kind: input, shape index: {}]
  %s12 = inlined_call_operand.vmem [shape: f32[32,64], index: 12, kind: input, shape index: {}]
  %s13 = inlined_call_operand.vmem [shape: f32[1,64], index: 13, kind: input, shape index: {}]
  %s14 = inlined_call_operand.hbm [shape: f32[16,64], index: 14, kind: output, shape index: {}]
  %s15 = sld [smem:[#allocation0]]
  $region66: #{tpu_custom_call.1} parent=0
    _
  %s17 = ssub.s32 1, %s15
  %s18 = scalar_select 0, %s17, %s15
  $region1: #{tpu_custom_call.1} parent=0
    #allocation3 [shape = 'u8[8192]{0}', space=vmem, size = 0x2000, scoped, tag = 'output window, operand 0, single buffered']
    #allocation4 [shape = 's32[1]{0}', space=sflag, size = 0x4, scoped, tag = 'scoped memory for tpu_custom_call.1']
    %19 = vsyncpa [#allocation4], 0
    // Predicated region
    $region2: #{tpu_custom_call.1} parent=1 // pred_check
      _
    $region3: #{tpu_custom_call.1} parent=1 // pred_check_branch
      %21 = sbr.rel (0) target = $region5
    $region4: #{tpu_custom_call.1} parent=1 // pred_region
      _
    $region5: #{tpu_custom_call.1} parent=1 // pred_fallthru
      _
    // Predicated region
    $region6: #{tpu_custom_call.1} parent=1 // pred_check
      _
    $region7: #{tpu_custom_call.1} parent=1 // pred_check_branch
      %23 = sbr.rel (0) target = $region9
    $region8: #{tpu_custom_call.1} parent=1 // pred_region
      _
    $region9: #{tpu_custom_call.1} parent=1 // pred_fallthru
      _
    // Predicated region
    $region10: #{tpu_custom_call.1} parent=1 // pred_check
      _
    $region11: #{tpu_custom_call.1} parent=1 // pred_check_branch
      %25 = sbr.rel (0) target = $region13
    $region12: #{tpu_custom_call.1} parent=1 // pred_region
      _
    $region13: #{tpu_custom_call.1} parent=1 // pred_fallthru
      _
    // Predicated region
    $region14: #{tpu_custom_call.1} parent=1 // pred_check
      _
    $region15: #{tpu_custom_call.1} parent=1 // pred_check_branch
      %27 = sbr.rel (0) target = $region17
    $region16: #{tpu_custom_call.1} parent=1 // pred_region
      _
    $region17: #{tpu_custom_call.1} parent=1 // pred_fallthru
      _
    // Predicated region
    $region18: #{tpu_custom_call.1} parent=1 // pred_check
      _
    $region19: #{tpu_custom_call.1} parent=1 // pred_check_branch
      %29 = sbr.rel (0) target = $region21
    $region20: #{tpu_custom_call.1} parent=1 // pred_region
      _
    $region21: #{tpu_custom_call.1} parent=1 // pred_fallthru
      _
    // Predicated region
    $region22: #{tpu_custom_call.1} parent=1 // pred_check
      _
    $region23: #{tpu_custom_call.1} parent=1 // pred_check_branch
      %31 = sbr.rel (0) target = $region25
    $region24: #{tpu_custom_call.1} parent=1 // pred_region
      _
    $region25: #{tpu_custom_call.1} parent=1 // pred_fallthru
      _
    // Predicated region
    $region26: #{tpu_custom_call.1} parent=1 // pred_check
      _
    $region27: #{tpu_custom_call.1} parent=1 // pred_check_branch
      %33 = sbr.rel (0) target = $region29
    $region28: #{tpu_custom_call.1} parent=1 // pred_region
      _
    $region29: #{tpu_custom_call.1} parent=1 // pred_fallthru
      _
    // Predicated region
    $region30: #{tpu_custom_call.1} parent=1 // pred_check
      _
    $region31: #{tpu_custom_call.1} parent=1 // pred_check_branch
      %35 = sbr.rel (0) target = $region33
    $region32: #{tpu_custom_call.1} parent=1 // pred_region
      _
    $region33: #{tpu_custom_call.1} parent=1 // pred_fallthru
      _
    // Predicated region
    $region34: #{tpu_custom_call.1} parent=1 // pred_check
      _
    $region35: #{tpu_custom_call.1} parent=1 // pred_check_branch
      %37 = sbr.rel (0) target = $region37
    $region36: #{tpu_custom_call.1} parent=1 // pred_region
      _
    $region37: #{tpu_custom_call.1} parent=1 // pred_fallthru
      _
    // Predicated region
    $region38: #{tpu_custom_call.1} parent=1 // pred_check
      _
    $region39: #{tpu_custom_call.1} parent=1 // pred_check_branch
      %39 = sbr.rel (0) target = $region41
    $region40: #{tpu_custom_call.1} parent=1 // pred_region
      _
    $region41: #{tpu_custom_call.1} parent=1 // pred_fallthru
      _
    // Predicated region
    $region42: #{tpu_custom_call.1} parent=1 // pred_check
      _
    $region43: #{tpu_custom_call.1} parent=1 // pred_check_branch
      %41 = sbr.rel (0) target = $region45
    $region44: #{tpu_custom_call.1} parent=1 // pred_region
      _
    $region45: #{tpu_custom_call.1} parent=1 // pred_fallthru
      _
    // Predicated region
    $region46: #{tpu_custom_call.1} parent=1 // pred_check
      _
    $region47: #{tpu_custom_call.1} parent=1 // pred_check_branch
      %43 = sbr.rel (0) target = $region49
    $region48: #{tpu_custom_call.1} parent=1 // pred_region
      _
    $region49: #{tpu_custom_call.1} parent=1 // pred_fallthru
      _
    // Predicated region
    $region50: #{tpu_custom_call.1} parent=1 // pred_check
      _
    $region51: #{tpu_custom_call.1} parent=1 // pred_check_branch
      %45 = sbr.rel (0) target = $region53
    $region52: #{tpu_custom_call.1} parent=1 // pred_region
      _
    $region53: #{tpu_custom_call.1} parent=1 // pred_fallthru
      _
    // Predicated region
    $region54: #{tpu_custom_call.1} parent=1 // pred_check
      _
    $region55: #{tpu_custom_call.1} parent=1 // pred_check_branch
      %47 = sbr.rel (0) target = $region57
    $region56: #{tpu_custom_call.1} parent=1 // pred_region
      _
    $region57: #{tpu_custom_call.1} parent=1 // pred_fallthru
      _
    %v48 = vld [vmem:[%s0] sm:$0xff]
    %v49 = vld [vmem:[%s0 + $0x8] sm:$0xff]
    %v50 = vld [vmem:[%s0 + $0x10] sm:$0xff]
    %v51 = vld [vmem:[%s0 + $0x18] sm:$0xff]
    %v52 = vld [vmem:[%s1] sm:$0xff]
    %v53 = vld [vmem:[%s1 + $0x8] sm:$0xff]
    %v54 = vld [vmem:[%s1 + $0x10] sm:$0xff]
    %v55 = vld [vmem:[%s1 + $0x18] sm:$0xff]
    %v56 = vld [vmem:[%s1 + $0x20] sm:$0xff]
    %v57 = vld [vmem:[%s1 + $0x28] sm:$0xff]
    %v58 = vld [vmem:[%s1 + $0x30] sm:$0xff]
    %v59 = vld [vmem:[%s1 + $0x38] sm:$0xff]
    %v60 = vld [vmem:[%s1 + $0x40] sm:$0xff]
    %v61 = vld [vmem:[%s1 + $0x48] sm:$0xff]
    %v62 = vld [vmem:[%s1 + $0x50] sm:$0xff]
    %v63 = vld [vmem:[%s1 + $0x58] sm:$0xff]
    %v64 = vld [vmem:[%s1 + $0x60] sm:$0xff]
    %v65 = vld [vmem:[%s1 + $0x68] sm:$0xff]
    %v66 = vld [vmem:[%s1 + $0x70] sm:$0xff]
    %v67 = vld [vmem:[%s1 + $0x78] sm:$0xff]
    %v68 = vld [vmem:[%s1 + $0x80] sm:$0xff]
    %v69 = vld [vmem:[%s1 + $0x88] sm:$0xff]
    %v70 = vld [vmem:[%s1 + $0x90] sm:$0xff]
    %v71 = vld [vmem:[%s1 + $0x98] sm:$0xff]
    %v72 = vld [vmem:[%s1 + $0xa0] sm:$0xff]
    %v73 = vld [vmem:[%s1 + $0xa8] sm:$0xff]
    %v74 = vld [vmem:[%s1 + $0xb0] sm:$0xff]
    %v75 = vld [vmem:[%s1 + $0xb8] sm:$0xff]
    %v76 = vld [vmem:[%s1 + $0xc0] sm:$0xff]
    %v77 = vld [vmem:[%s1 + $0xc8] sm:$0xff]
    %v78 = vld [vmem:[%s1 + $0xd0] sm:$0xff]
    %v79 = vld [vmem:[%s1 + $0xd8] sm:$0xff]
    %v80 = vld [vmem:[%s1 + $0xe0] sm:$0xff]
    %v81 = vld [vmem:[%s1 + $0xe8] sm:$0xff]
    %v82 = vld [vmem:[%s1 + $0xf0] sm:$0xff]
    %v83 = vld [vmem:[%s1 + $0xf8] sm:$0xff]
    %v84 = vld [vmem:[%s1 + $0x100] sm:$0xff]
    %v85 = vld [vmem:[%s1 + $0x108] sm:$0xff]
    %v86 = vld [vmem:[%s1 + $0x110] sm:$0xff]
    %v87 = vld [vmem:[%s1 + $0x118] sm:$0xff]
    %v88 = vld [vmem:[%s1 + $0x120] sm:$0xff]
    %v89 = vld [vmem:[%s1 + $0x128] sm:$0xff]
    %v90 = vld [vmem:[%s1 + $0x130] sm:$0xff]
    %v91 = vld [vmem:[%s1 + $0x138] sm:$0xff]
    %v92 = vld [vmem:[%s1 + $0x140] sm:$0xff]
    %v93 = vld [vmem:[%s1 + $0x148] sm:$0xff]
    %v94 = vld [vmem:[%s1 + $0x150] sm:$0xff]
    %v95 = vld [vmem:[%s1 + $0x158] sm:$0xff]
    %v96 = vld [vmem:[%s1 + $0x160] sm:$0xff]
    %v97 = vld [vmem:[%s1 + $0x168] sm:$0xff]
    %v98 = vld [vmem:[%s1 + $0x170] sm:$0xff]
    %v99 = vld [vmem:[%s1 + $0x178] sm:$0xff]
    %v100 = vld [vmem:[%s1 + $0x180] sm:$0xff]
    %v101 = vld [vmem:[%s1 + $0x188] sm:$0xff]
    %v102 = vld [vmem:[%s1 + $0x190] sm:$0xff]
    %v103 = vld [vmem:[%s1 + $0x198] sm:$0xff]
    %v104 = vld [vmem:[%s1 + $0x1a0] sm:$0xff]
    %v105 = vld [vmem:[%s1 + $0x1a8] sm:$0xff]
    %v106 = vld [vmem:[%s1 + $0x1b0] sm:$0xff]
    %v107 = vld [vmem:[%s1 + $0x1b8] sm:$0xff]
    %v108 = vld [vmem:[%s1 + $0x1c0] sm:$0xff]
    %v109 = vld [vmem:[%s1 + $0x1c8] sm:$0xff]
    %v110 = vld [vmem:[%s1 + $0x1d0] sm:$0xff]
    %v111 = vld [vmem:[%s1 + $0x1d8] sm:$0xff]
    %v112 = vld [vmem:[%s1 + $0x1e0] sm:$0xff]
    %v113 = vld [vmem:[%s1 + $0x1e8] sm:$0xff]
    %v114 = vld [vmem:[%s1 + $0x1f0] sm:$0xff]
    %v115 = vld [vmem:[%s1 + $0x1f8] sm:$0xff]
    %v116 = vld [vmem:[%s1 + $0x200] sm:$0xff]
    %v117 = vld [vmem:[%s1 + $0x208] sm:$0xff]
    %v118 = vld [vmem:[%s1 + $0x210] sm:$0xff]
    %v119 = vld [vmem:[%s1 + $0x218] sm:$0xff]
    %v120 = vld [vmem:[%s1 + $0x220] sm:$0xff]
    %v121 = vld [vmem:[%s1 + $0x228] sm:$0xff]
    %v122 = vld [vmem:[%s1 + $0x230] sm:$0xff]
    %v123 = vld [vmem:[%s1 + $0x238] sm:$0xff]
    %v124 = vld [vmem:[%s1 + $0x240] sm:$0xff]
    %v125 = vld [vmem:[%s1 + $0x248] sm:$0xff]
    %v126 = vld [vmem:[%s1 + $0x250] sm:$0xff]
    %v127 = vld [vmem:[%s1 + $0x258] sm:$0xff]
    %v128 = vld [vmem:[%s1 + $0x260] sm:$0xff]
    %v129 = vld [vmem:[%s1 + $0x268] sm:$0xff]
    %v130 = vld [vmem:[%s1 + $0x270] sm:$0xff]
    %v131 = vld [vmem:[%s1 + $0x278] sm:$0xff]
    %v132 = vld [vmem:[%s1 + $0x280] sm:$0xff]
    %v133 = vld [vmem:[%s1 + $0x288] sm:$0xff]
    %v134 = vld [vmem:[%s1 + $0x290] sm:$0xff]
    %v135 = vld [vmem:[%s1 + $0x298] sm:$0xff]
    %v136 = vld [vmem:[%s1 + $0x2a0] sm:$0xff]
    %v137 = vld [vmem:[%s1 + $0x2a8] sm:$0xff]
    %v138 = vld [vmem:[%s1 + $0x2b0] sm:$0xff]
    %v139 = vld [vmem:[%s1 + $0x2b8] sm:$0xff]
    %v140 = vld [vmem:[%s1 + $0x2c0] sm:$0xff]
    %v141 = vld [vmem:[%s1 + $0x2c8] sm:$0xff]
    %v142 = vld [vmem:[%s1 + $0x2d0] sm:$0xff]
    %v143 = vld [vmem:[%s1 + $0x2d8] sm:$0xff]
    %v144 = vld [vmem:[%s1 + $0x2e0] sm:$0xff]
    %v145 = vld [vmem:[%s1 + $0x2e8] sm:$0xff]
    %v146 = vld [vmem:[%s1 + $0x2f0] sm:$0xff]
    %v147 = vld [vmem:[%s1 + $0x2f8] sm:$0xff]
    %v148 = vld [vmem:[%s1 + $0x300] sm:$0xff]
    %v149 = vld [vmem:[%s1 + $0x308] sm:$0xff]
    %v150 = vld [vmem:[%s1 + $0x310] sm:$0xff]
    %v151 = vld [vmem:[%s1 + $0x318] sm:$0xff]
    %v152 = vld [vmem:[%s1 + $0x320] sm:$0xff]
    %v153 = vld [vmem:[%s1 + $0x328] sm:$0xff]
    %v154 = vld [vmem:[%s1 + $0x330] sm:$0xff]
    %v155 = vld [vmem:[%s1 + $0x338] sm:$0xff]
    %v156 = vld [vmem:[%s1 + $0x340] sm:$0xff]
    %v157 = vld [vmem:[%s1 + $0x348] sm:$0xff]
    %v158 = vld [vmem:[%s1 + $0x350] sm:$0xff]
    %v159 = vld [vmem:[%s1 + $0x358] sm:$0xff]
    %v160 = vld [vmem:[%s1 + $0x360] sm:$0xff]
    %v161 = vld [vmem:[%s1 + $0x368] sm:$0xff]
    %v162 = vld [vmem:[%s1 + $0x370] sm:$0xff]
    %v163 = vld [vmem:[%s1 + $0x378] sm:$0xff]
    %v164 = vld [vmem:[%s1 + $0x380] sm:$0xff]
    %v165 = vld [vmem:[%s1 + $0x388] sm:$0xff]
    %v166 = vld [vmem:[%s1 + $0x390] sm:$0xff]
    %v167 = vld [vmem:[%s1 + $0x398] sm:$0xff]
    %v168 = vld [vmem:[%s1 + $0x3a0] sm:$0xff]
    %v169 = vld [vmem:[%s1 + $0x3a8] sm:$0xff]
    %v170 = vld [vmem:[%s1 + $0x3b0] sm:$0xff]
    %v171 = vld [vmem:[%s1 + $0x3b8] sm:$0xff]
    %v172 = vld [vmem:[%s1 + $0x3c0] sm:$0xff]
    %v173 = vld [vmem:[%s1 + $0x3c8] sm:$0xff]
    %v174 = vld [vmem:[%s1 + $0x3d0] sm:$0xff]
    %v175 = vld [vmem:[%s1 + $0x3d8] sm:$0xff]
    %v176 = vld [vmem:[%s1 + $0x3e0] sm:$0xff]
    %v177 = vld [vmem:[%s1 + $0x3e8] sm:$0xff]
    %v178 = vld [vmem:[%s1 + $0x3f0] sm:$0xff]
    %v179 = vld [vmem:[%s1 + $0x3f8] sm:$0xff]
    %v180 = vld [vmem:[%s1 + $0x400] sm:$0xff]
    %v181 = vld [vmem:[%s1 + $0x408] sm:$0xff]
    %v182 = vld [vmem:[%s1 + $0x410] sm:$0xff]
    %v183 = vld [vmem:[%s1 + $0x418] sm:$0xff]
    %v184 = vld [vmem:[%s1 + $0x420] sm:$0xff]
    %v185 = vld [vmem:[%s1 + $0x428] sm:$0xff]
    %v186 = vld [vmem:[%s1 + $0x430] sm:$0xff]
    %v187 = vld [vmem:[%s1 + $0x438] sm:$0xff]
    %v188 = vld [vmem:[%s1 + $0x440] sm:$0xff]
    %v189 = vld [vmem:[%s1 + $0x448] sm:$0xff]
    %v190 = vld [vmem:[%s1 + $0x450] sm:$0xff]
    %v191 = vld [vmem:[%s1 + $0x458] sm:$0xff]
    %v192 = vld [vmem:[%s1 + $0x460] sm:$0xff]
    %v193 = vld [vmem:[%s1 + $0x468] sm:$0xff]
    %v194 = vld [vmem:[%s1 + $0x470] sm:$0xff]
    %v195 = vld [vmem:[%s1 + $0x478] sm:$0xff]
    %v196 = vld [vmem:[%s1 + $0x480] sm:$0xff]
    %v197 = vld [vmem:[%s1 + $0x488] sm:$0xff]
    %v198 = vld [vmem:[%s1 + $0x490] sm:$0xff]
    %v199 = vld [vmem:[%s1 + $0x498] sm:$0xff]
    %v200 = vld [vmem:[%s1 + $0x4a0] sm:$0xff]
    %v201 = vld [vmem:[%s1 + $0x4a8] sm:$0xff]
    %v202 = vld [vmem:[%s1 + $0x4b0] sm:$0xff]
    %v203 = vld [vmem:[%s1 + $0x4b8] sm:$0xff]
    %v204 = vld [vmem:[%s1 + $0x4c0] sm:$0xff]
    %v205 = vld [vmem:[%s1 + $0x4c8] sm:$0xff]
    %v206 = vld [vmem:[%s1 + $0x4d0] sm:$0xff]
    %v207 = vld [vmem:[%s1 + $0x4d8] sm:$0xff]
    %v208 = vld [vmem:[%s1 + $0x4e0] sm:$0xff]
    %v209 = vld [vmem:[%s1 + $0x4e8] sm:$0xff]
    %v210 = vld [vmem:[%s1 + $0x4f0] sm:$0xff]
    %v211 = vld [vmem:[%s1 + $0x4f8] sm:$0xff]
    %v212 = vld [vmem:[%s1 + $0x500] sm:$0xff]
    %v213 = vld [vmem:[%s1 + $0x508] sm:$0xff]
    %v214 = vld [vmem:[%s1 + $0x510] sm:$0xff]
    %v215 = vld [vmem:[%s1 + $0x518] sm:$0xff]
    %v216 = vld [vmem:[%s1 + $0x520] sm:$0xff]
    %v217 = vld [vmem:[%s1 + $0x528] sm:$0xff]
    %v218 = vld [vmem:[%s1 + $0x530] sm:$0xff]
    %v219 = vld [vmem:[%s1 + $0x538] sm:$0xff]
    %v220 = vld [vmem:[%s1 + $0x540] sm:$0xff]
    %v221 = vld [vmem:[%s1 + $0x548] sm:$0xff]
    %v222 = vld [vmem:[%s1 + $0x550] sm:$0xff]
    %v223 = vld [vmem:[%s1 + $0x558] sm:$0xff]
    %v224 = vld [vmem:[%s1 + $0x560] sm:$0xff]
    %v225 = vld [vmem:[%s1 + $0x568] sm:$0xff]
    %v226 = vld [vmem:[%s1 + $0x570] sm:$0xff]
    %v227 = vld [vmem:[%s1 + $0x578] sm:$0xff]
    %v228 = vld [vmem:[%s1 + $0x580] sm:$0xff]
    %v229 = vld [vmem:[%s1 + $0x588] sm:$0xff]
    %v230 = vld [vmem:[%s1 + $0x590] sm:$0xff]
    %v231 = vld [vmem:[%s1 + $0x598] sm:$0xff]
    %v232 = vld [vmem:[%s1 + $0x5a0] sm:$0xff]
    %v233 = vld [vmem:[%s1 + $0x5a8] sm:$0xff]
    %v234 = vld [vmem:[%s1 + $0x5b0] sm:$0xff]
    %v235 = vld [vmem:[%s1 + $0x5b8] sm:$0xff]
    %v236 = vld [vmem:[%s1 + $0x5c0] sm:$0xff]
    %v237 = vld [vmem:[%s1 + $0x5c8] sm:$0xff]
    %v238 = vld [vmem:[%s1 + $0x5d0] sm:$0xff]
    %v239 = vld [vmem:[%s1 + $0x5d8] sm:$0xff]
    %v240 = vld [vmem:[%s1 + $0x5e0] sm:$0xff]
    %v241 = vld [vmem:[%s1 + $0x5e8] sm:$0xff]
    %v242 = vld [vmem:[%s1 + $0x5f0] sm:$0xff]
    %v243 = vld [vmem:[%s1 + $0x5f8] sm:$0xff]
    %v244 = vld [vmem:[%s1 + $0x600] sm:$0xff]
    %v245 = vld [vmem:[%s1 + $0x608] sm:$0xff]
    %v246 = vld [vmem:[%s1 + $0x610] sm:$0xff]
    %v247 = vld [vmem:[%s1 + $0x618] sm:$0xff]
    %v248 = vld [vmem:[%s1 + $0x620] sm:$0xff]
    %v249 = vld [vmem:[%s1 + $0x628] sm:$0xff]
    %v250 = vld [vmem:[%s1 + $0x630] sm:$0xff]
    %v251 = vld [vmem:[%s1 + $0x638] sm:$0xff]
    %v252 = vld [vmem:[%s1 + $0x640] sm:$0xff]
    %v253 = vld [vmem:[%s1 + $0x648] sm:$0xff]
    %v254 = vld [vmem:[%s1 + $0x650] sm:$0xff]
    %v255 = vld [vmem:[%s1 + $0x658] sm:$0xff]
    %v256 = vld [vmem:[%s1 + $0x660] sm:$0xff]
    %v257 = vld [vmem:[%s1 + $0x668] sm:$0xff]
    %v258 = vld [vmem:[%s1 + $0x670] sm:$0xff]
    %v259 = vld [vmem:[%s1 + $0x678] sm:$0xff]
    %v260 = vld [vmem:[%s1 + $0x680] sm:$0xff]
    %v261 = vld [vmem:[%s1 + $0x688] sm:$0xff]
    %v262 = vld [vmem:[%s1 + $0x690] sm:$0xff]
    %v263 = vld [vmem:[%s1 + $0x698] sm:$0xff]
    %v264 = vld [vmem:[%s1 + $0x6a0] sm:$0xff]
    %v265 = vld [vmem:[%s1 + $0x6a8] sm:$0xff]
    %v266 = vld [vmem:[%s1 + $0x6b0] sm:$0xff]
    %v267 = vld [vmem:[%s1 + $0x6b8] sm:$0xff]
    %v268 = vld [vmem:[%s1 + $0x6c0] sm:$0xff]
    %v269 = vld [vmem:[%s1 + $0x6c8] sm:$0xff]
    %v270 = vld [vmem:[%s1 + $0x6d0] sm:$0xff]
    %v271 = vld [vmem:[%s1 + $0x6d8] sm:$0xff]
    %v272 = vld [vmem:[%s1 + $0x6e0] sm:$0xff]
    %v273 = vld [vmem:[%s1 + $0x6e8] sm:$0xff]
    %v274 = vld [vmem:[%s1 + $0x6f0] sm:$0xff]
    %v275 = vld [vmem:[%s1 + $0x6f8] sm:$0xff]
    %v276 = vld [vmem:[%s1 + $0x700] sm:$0xff]
    %v277 = vld [vmem:[%s1 + $0x708] sm:$0xff]
    %v278 = vld [vmem:[%s1 + $0x710] sm:$0xff]
    %v279 = vld [vmem:[%s1 + $0x718] sm:$0xff]
    %v280 = vld [vmem:[%s1 + $0x720] sm:$0xff]
    %v281 = vld [vmem:[%s1 + $0x728] sm:$0xff]
    %v282 = vld [vmem:[%s1 + $0x730] sm:$0xff]
    %v283 = vld [vmem:[%s1 + $0x738] sm:$0xff]
    %v284 = vld [vmem:[%s1 + $0x740] sm:$0xff]
    %v285 = vld [vmem:[%s1 + $0x748] sm:$0xff]
    %v286 = vld [vmem:[%s1 + $0x750] sm:$0xff]
    %v287 = vld [vmem:[%s1 + $0x758] sm:$0xff]
    %v288 = vld [vmem:[%s1 + $0x760] sm:$0xff]
    %v289 = vld [vmem:[%s1 + $0x768] sm:$0xff]
    %v290 = vld [vmem:[%s1 + $0x770] sm:$0xff]
    %v291 = vld [vmem:[%s1 + $0x778] sm:$0xff]
    %v292 = vld [vmem:[%s1 + $0x780] sm:$0xff]
    %v293 = vld [vmem:[%s1 + $0x788] sm:$0xff]
    %v294 = vld [vmem:[%s1 + $0x790] sm:$0xff]
    %v295 = vld [vmem:[%s1 + $0x798] sm:$0xff]
    %v296 = vld [vmem:[%s1 + $0x7a0] sm:$0xff]
    %v297 = vld [vmem:[%s1 + $0x7a8] sm:$0xff]
    %v298 = vld [vmem:[%s1 + $0x7b0] sm:$0xff]
    %v299 = vld [vmem:[%s1 + $0x7b8] sm:$0xff]
    %v300 = vld [vmem:[%s1 + $0x7c0] sm:$0xff]
    %v301 = vld [vmem:[%s1 + $0x7c8] sm:$0xff]
    %v302 = vld [vmem:[%s1 + $0x7d0] sm:$0xff]
    %v303 = vld [vmem:[%s1 + $0x7d8] sm:$0xff]
    %v304 = vld [vmem:[%s1 + $0x7e0] sm:$0xff]
    %v305 = vld [vmem:[%s1 + $0x7e8] sm:$0xff]
    %v306 = vld [vmem:[%s1 + $0x7f0] sm:$0xff]
    %v307 = vld [vmem:[%s1 + $0x7f8] sm:$0xff]
    %v308 = vld [vmem:[%s2] sm:$0x1]
    %v310 = vlaneseq
    %v311 = vshrl.u32 %v310, 7
    %v312 = vsub.s32 0, %v311
    %v313 = vrot.slane %v308, %v312
    %v319 = vcombine.high %v48, %v48
    %v321 = vunpack.c.l.s4 1983009808
    %v322 = vunpack.c.0.s8 %v321
    %v323 = vlaneseq
    %v324 = vshrl.u32 %v323, 7
    %v325 = vsub.s32 %v322, %v324
    %v326 = vrot.slane %v48, %v325
    %v328 = vunpack.c.l.s4 1983009808
    %v329 = vunpack.c.0.s8 %v328
    %v330 = vlaneseq
    %v331 = vshrl.u32 %v330, 7
    %v332 = vsub.s32 %v329, %v331
    %v333 = vrot.slane %v319, %v332
    %v334 = vcombine.high %v326, %v326
    %v335 = vcombine.high %v333, %v333
    %v336 = vcombine.high %v49, %v49
    %v338 = vunpack.c.l.s4 1983009808
    %v339 = vunpack.c.0.s8 %v338
    %v340 = vlaneseq
    %v341 = vshrl.u32 %v340, 7
    %v342 = vsub.s32 %v339, %v341
    %v343 = vrot.slane %v49, %v342
    %v345 = vunpack.c.l.s4 1983009808
    %v346 = vunpack.c.0.s8 %v345
    %v347 = vlaneseq
    %v348 = vshrl.u32 %v347, 7
    %v349 = vsub.s32 %v346, %v348
    %v350 = vrot.slane %v336, %v349
    %v351 = vcombine.high %v343, %v343
    %v352 = vcombine.high %v350, %v350
    %v353 = vcombine.high %v50, %v50
    %v355 = vunpack.c.l.s4 1983009808
    %v356 = vunpack.c.0.s8 %v355
    %v357 = vlaneseq
    %v358 = vshrl.u32 %v357, 7
    %v359 = vsub.s32 %v356, %v358
    %v360 = vrot.slane %v50, %v359
    %v362 = vunpack.c.l.s4 1983009808
    %v363 = vunpack.c.0.s8 %v362
    %v364 = vlaneseq
    %v365 = vshrl.u32 %v364, 7
    %v366 = vsub.s32 %v363, %v365
    %v367 = vrot.slane %v353, %v366
    %v368 = vcombine.high %v360, %v360
    %v369 = vcombine.high %v367, %v367
    %v370 = vcombine.high %v51, %v51
    %v372 = vunpack.c.l.s4 1983009808
    %v373 = vunpack.c.0.s8 %v372
    %v374 = vlaneseq
    %v375 = vshrl.u32 %v374, 7
    %v376 = vsub.s32 %v373, %v375
    %v377 = vrot.slane %v51, %v376
    %v379 = vunpack.c.l.s4 1983009808
    %v380 = vunpack.c.0.s8 %v379
    %v381 = vlaneseq
    %v382 = vshrl.u32 %v381, 7
    %v383 = vsub.s32 %v380, %v382
    %v384 = vrot.slane %v370, %v383
    %v385 = vcombine.high %v377, %v377
    %v386 = vcombine.high %v384, %v384
    %403 = vmatprep.subr.mxu0 0.0
    %404 = vmatpush1.msra.mxu0 %v52
    %405 = vmatprep.subr.mxu0 0.0
    %406 = vmatpush1.msra.mxu0 %v53
    %407 = vmatprep.subr.mxu0 0.0
    %408 = vmatpush1.msra.mxu0 %v54
    %409 = vmatprep.subr.mxu0 0.0
    %410 = vmatpush1.msra.mxu0 %v55
    %411 = vmatprep.subr.mxu0 0.0
    %412 = vmatpush1.msra.mxu0 %v56
    %413 = vmatprep.subr.mxu0 0.0
    %414 = vmatpush1.msra.mxu0 %v57
    %415 = vmatprep.subr.mxu0 0.0
    %416 = vmatpush1.msra.mxu0 %v58
    %417 = vmatprep.subr.mxu0 0.0
    %418 = vmatpush1.msra.mxu0 %v59
    %419 = vmatprep.subr.mxu0 0.0
    %420 = vmatpush1.msra.mxu0 %v60
    %421 = vmatprep.subr.mxu0 0.0
    %422 = vmatpush1.msra.mxu0 %v61
    %423 = vmatprep.subr.mxu0 0.0
    %424 = vmatpush1.msra.mxu0 %v62
    %425 = vmatprep.subr.mxu0 0.0
    %426 = vmatpush1.msra.mxu0 %v63
    %427 = vmatprep.subr.mxu0 0.0
    %428 = vmatpush1.msra.mxu0 %v64
    %429 = vmatprep.subr.mxu0 0.0
    %430 = vmatpush1.msra.mxu0 %v65
    %431 = vmatprep.subr.mxu0 0.0
    %432 = vmatpush1.msra.mxu0 %v66
    %433 = vmatprep.subr.mxu0 0.0
    %434 = vmatpush1.msra.mxu0 %v67
    %435 = vmatprep.subr.mxu0 0.0
    %436 = vmatpush1.msra.mxu0 %v68
    %437 = vmatprep.subr.mxu0 0.0
    %438 = vmatpush1.msra.mxu0 %v69
    %439 = vmatprep.subr.mxu0 0.0
    %440 = vmatpush1.msra.mxu0 %v70
    %441 = vmatprep.subr.mxu0 0.0
    %442 = vmatpush1.msra.mxu0 %v71
    %443 = vmatprep.subr.mxu0 0.0
    %444 = vmatpush1.msra.mxu0 %v72
    %445 = vmatprep.subr.mxu0 0.0
    %446 = vmatpush1.msra.mxu0 %v73
    %447 = vmatprep.subr.mxu0 0.0
    %448 = vmatpush1.msra.mxu0 %v74
    %449 = vmatprep.subr.mxu0 0.0
    %450 = vmatpush1.msra.mxu0 %v75
    %451 = vmatprep.subr.mxu0 0.0
    %452 = vmatpush1.msra.mxu0 %v76
    %453 = vmatprep.subr.mxu0 0.0
    %454 = vmatpush1.msra.mxu0 %v77
    %455 = vmatprep.subr.mxu0 0.0
    %456 = vmatpush1.msra.mxu0 %v78
    %457 = vmatprep.subr.mxu0 0.0
    %458 = vmatpush1.msra.mxu0 %v79
    %459 = vmatprep.subr.mxu0 0.0
    %460 = vmatpush1.msra.mxu0 %v80
    %461 = vmatprep.subr.mxu0 0.0
    %462 = vmatpush1.msra.mxu0 %v81
    %463 = vmatprep.subr.mxu0 0.0
    %464 = vmatpush1.msra.mxu0 %v82
    %465 = vmatprep.subr.mxu0 0.0
    %466 = vmatpush1.msra.mxu0 %v83
    %467 = vmatprep.mubr.f32.mxu0 %v334
    %468 = vmatmul.mubr.f32.gmra.mrb[0].mxu0 %v326
    %v469 = vpop.f32.mrb[0].mxu0
    %v470 = vadd.f32 %v313, %v469
    %v471 = vpop.f32.mrb[0].mxu0
    %472 = vdwg.mxu0
    %473 = vmatprep.subr.mxu0 0.0
    %474 = vmatpush1.msra.mxu0 %v84
    %475 = vmatprep.subr.mxu0 0.0
    %476 = vmatpush1.msra.mxu0 %v85
    %477 = vmatprep.subr.mxu0 0.0
    %478 = vmatpush1.msra.mxu0 %v86
    %479 = vmatprep.subr.mxu0 0.0
    %480 = vmatpush1.msra.mxu0 %v87
    %481 = vmatprep.subr.mxu0 0.0
    %482 = vmatpush1.msra.mxu0 %v88
    %483 = vmatprep.subr.mxu0 0.0
    %484 = vmatpush1.msra.mxu0 %v89
    %485 = vmatprep.subr.mxu0 0.0
    %486 = vmatpush1.msra.mxu0 %v90
    %487 = vmatprep.subr.mxu0 0.0
    %488 = vmatpush1.msra.mxu0 %v91
    %489 = vmatprep.subr.mxu0 0.0
    %490 = vmatpush1.msra.mxu0 %v92
    %491 = vmatprep.subr.mxu0 0.0
    %492 = vmatpush1.msra.mxu0 %v93
    %493 = vmatprep.subr.mxu0 0.0
    %494 = vmatpush1.msra.mxu0 %v94
    %495 = vmatprep.subr.mxu0 0.0
    %496 = vmatpush1.msra.mxu0 %v95
    %497 = vmatprep.subr.mxu0 0.0
    %498 = vmatpush1.msra.mxu0 %v96
    %499 = vmatprep.subr.mxu0 0.0
    %500 = vmatpush1.msra.mxu0 %v97
    %501 = vmatprep.subr.mxu0 0.0
    %502 = vmatpush1.msra.mxu0 %v98
    %503 = vmatprep.subr.mxu0 0.0
    %504 = vmatpush1.msra.mxu0 %v99
    %505 = vmatprep.subr.mxu0 0.0
    %506 = vmatpush1.msra.mxu0 %v100
    %507 = vmatprep.subr.mxu0 0.0
    %508 = vmatpush1.msra.mxu0 %v101
    %509 = vmatprep.subr.mxu0 0.0
    %510 = vmatpush1.msra.mxu0 %v102
    %511 = vmatprep.subr.mxu0 0.0
    %512 = vmatpush1.msra.mxu0 %v103
    %513 = vmatprep.subr.mxu0 0.0
    %514 = vmatpush1.msra.mxu0 %v104
    %515 = vmatprep.subr.mxu0 0.0
    %516 = vmatpush1.msra.mxu0 %v105
    %517 = vmatprep.subr.mxu0 0.0
    %518 = vmatpush1.msra.mxu0 %v106
    %519 = vmatprep.subr.mxu0 0.0
    %520 = vmatpush1.msra.mxu0 %v107
    %521 = vmatprep.subr.mxu0 0.0
    %522 = vmatpush1.msra.mxu0 %v108
    %523 = vmatprep.subr.mxu0 0.0
    %524 = vmatpush1.msra.mxu0 %v109
    %525 = vmatprep.subr.mxu0 0.0
    %526 = vmatpush1.msra.mxu0 %v110
    %527 = vmatprep.subr.mxu0 0.0
    %528 = vmatpush1.msra.mxu0 %v111
    %529 = vmatprep.subr.mxu0 0.0
    %530 = vmatpush1.msra.mxu0 %v112
    %531 = vmatprep.subr.mxu0 0.0
    %532 = vmatpush1.msra.mxu0 %v113
    %533 = vmatprep.subr.mxu0 0.0
    %534 = vmatpush1.msra.mxu0 %v114
    %535 = vmatprep.subr.mxu0 0.0
    %536 = vmatpush1.msra.mxu0 %v115
    %537 = vmatprep.mubr.f32.mxu0 %v335
    %538 = vmatmul.mubr.f32.gmra.mrb[0].mxu0 %v333
    %v539 = vpop.f32.mrb[0].mxu0
    %v540 = vadd.f32 %v470, %v539
    %v541 = vpop.f32.mrb[0].mxu0
    %542 = vdwg.mxu0
    %543 = vmatprep.subr.mxu0 0.0
    %544 = vmatpush1.msra.mxu0 %v116
    %545 = vmatprep.subr.mxu0 0.0
    %546 = vmatpush1.msra.mxu0 %v117
    %547 = vmatprep.subr.mxu0 0.0
    %548 = vmatpush1.msra.mxu0 %v118
    %549 = vmatprep.subr.mxu0 0.0
    %550 = vmatpush1.msra.mxu0 %v119
    %551 = vmatprep.subr.mxu0 0.0
    %552 = vmatpush1.msra.mxu0 %v120
    %553 = vmatprep.subr.mxu0 0.0
    %554 = vmatpush1.msra.mxu0 %v121
    %555 = vmatprep.subr.mxu0 0.0
    %556 = vmatpush1.msra.mxu0 %v122
    %557 = vmatprep.subr.mxu0 0.0
    %558 = vmatpush1.msra.mxu0 %v123
    %559 = vmatprep.subr.mxu0 0.0
    %560 = vmatpush1.msra.mxu0 %v124
    %561 = vmatprep.subr.mxu0 0.0
    %562 = vmatpush1.msra.mxu0 %v125
    %563 = vmatprep.subr.mxu0 0.0
    %564 = vmatpush1.msra.mxu0 %v126
    %565 = vmatprep.subr.mxu0 0.0
    %566 = vmatpush1.msra.mxu0 %v127
    %567 = vmatprep.subr.mxu0 0.0
    %568 = vmatpush1.msra.mxu0 %v128
    %569 = vmatprep.subr.mxu0 0.0
    %570 = vmatpush1.msra.mxu0 %v129
    %571 = vmatprep.subr.mxu0 0.0
    %572 = vmatpush1.msra.mxu0 %v130
    %573 = vmatprep.subr.mxu0 0.0
    %574 = vmatpush1.msra.mxu0 %v131
    %575 = vmatprep.subr.mxu0 0.0
    %576 = vmatpush1.msra.mxu0 %v132
    %577 = vmatprep.subr.mxu0 0.0
    %578 = vmatpush1.msra.mxu0 %v133
    %579 = vmatprep.subr.mxu0 0.0
    %580 = vmatpush1.msra.mxu0 %v134
    %581 = vmatprep.subr.mxu0 0.0
    %582 = vmatpush1.msra.mxu0 %v135
    %583 = vmatprep.subr.mxu0 0.0
    %584 = vmatpush1.msra.mxu0 %v136
    %585 = vmatprep.subr.mxu0 0.0
    %586 = vmatpush1.msra.mxu0 %v137
    %587 = vmatprep.subr.mxu0 0.0
    %588 = vmatpush1.msra.mxu0 %v138
    %589 = vmatprep.subr.mxu0 0.0
    %590 = vmatpush1.msra.mxu0 %v139
    %591 = vmatprep.subr.mxu0 0.0
    %592 = vmatpush1.msra.mxu0 %v140
    %593 = vmatprep.subr.mxu0 0.0
    %594 = vmatpush1.msra.mxu0 %v141
    %595 = vmatprep.subr.mxu0 0.0
    %596 = vmatpush1.msra.mxu0 %v142
    %597 = vmatprep.subr.mxu0 0.0
    %598 = vmatpush1.msra.mxu0 %v143
    %599 = vmatprep.subr.mxu0 0.0
    %600 = vmatpush1.msra.mxu0 %v144
    %601 = vmatprep.subr.mxu0 0.0
    %602 = vmatpush1.msra.mxu0 %v145
    %603 = vmatprep.subr.mxu0 0.0
    %604 = vmatpush1.msra.mxu0 %v146
    %605 = vmatprep.subr.mxu0 0.0
    %606 = vmatpush1.msra.mxu0 %v147
    %607 = vmatprep.mubr.f32.mxu0 %v351
    %608 = vmatmul.mubr.f32.gmra.mrb[0].mxu0 %v343
    %v609 = vpop.f32.mrb[0].mxu0
    %v610 = vadd.f32 %v540, %v609
    %v611 = vpop.f32.mrb[0].mxu0
    %612 = vdwg.mxu0
    %613 = vmatprep.subr.mxu0 0.0
    %614 = vmatpush1.msra.mxu0 %v148
    %615 = vmatprep.subr.mxu0 0.0
    %616 = vmatpush1.msra.mxu0 %v149
    %617 = vmatprep.subr.mxu0 0.0
    %618 = vmatpush1.msra.mxu0 %v150
    %619 = vmatprep.subr.mxu0 0.0
    %620 = vmatpush1.msra.mxu0 %v151
    %621 = vmatprep.subr.mxu0 0.0
    %622 = vmatpush1.msra.mxu0 %v152
    %623 = vmatprep.subr.mxu0 0.0
    %624 = vmatpush1.msra.mxu0 %v153
    %625 = vmatprep.subr.mxu0 0.0
    %626 = vmatpush1.msra.mxu0 %v154
    %627 = vmatprep.subr.mxu0 0.0
    %628 = vmatpush1.msra.mxu0 %v155
    %629 = vmatprep.subr.mxu0 0.0
    %630 = vmatpush1.msra.mxu0 %v156
    %631 = vmatprep.subr.mxu0 0.0
    %632 = vmatpush1.msra.mxu0 %v157
    %633 = vmatprep.subr.mxu0 0.0
    %634 = vmatpush1.msra.mxu0 %v158
    %635 = vmatprep.subr.mxu0 0.0
    %636 = vmatpush1.msra.mxu0 %v159
    %637 = vmatprep.subr.mxu0 0.0
    %638 = vmatpush1.msra.mxu0 %v160
    %639 = vmatprep.subr.mxu0 0.0
    %640 = vmatpush1.msra.mxu0 %v161
    %641 = vmatprep.subr.mxu0 0.0
    %642 = vmatpush1.msra.mxu0 %v162
    %643 = vmatprep.subr.mxu0 0.0
    %644 = vmatpush1.msra.mxu0 %v163
    %645 = vmatprep.subr.mxu0 0.0
    %646 = vmatpush1.msra.mxu0 %v164
    %647 = vmatprep.subr.mxu0 0.0
    %648 = vmatpush1.msra.mxu0 %v165
    %649 = vmatprep.subr.mxu0 0.0
    %650 = vmatpush1.msra.mxu0 %v166
    %651 = vmatprep.subr.mxu0 0.0
    %652 = vmatpush1.msra.mxu0 %v167
    %653 = vmatprep.subr.mxu0 0.0
    %654 = vmatpush1.msra.mxu0 %v168
    %655 = vmatprep.subr.mxu0 0.0
    %656 = vmatpush1.msra.mxu0 %v169
    %657 = vmatprep.subr.mxu0 0.0
    %658 = vmatpush1.msra.mxu0 %v170
    %659 = vmatprep.subr.mxu0 0.0
    %660 = vmatpush1.msra.mxu0 %v171
    %661 = vmatprep.subr.mxu0 0.0
    %662 = vmatpush1.msra.mxu0 %v172
    %663 = vmatprep.subr.mxu0 0.0
    %664 = vmatpush1.msra.mxu0 %v173
    %665 = vmatprep.subr.mxu0 0.0
    %666 = vmatpush1.msra.mxu0 %v174
    %667 = vmatprep.subr.mxu0 0.0
    %668 = vmatpush1.msra.mxu0 %v175
    %669 = vmatprep.subr.mxu0 0.0
    %670 = vmatpush1.msra.mxu0 %v176
    %671 = vmatprep.subr.mxu0 0.0
    %672 = vmatpush1.msra.mxu0 %v177
    %673 = vmatprep.subr.mxu0 0.0
    %674 = vmatpush1.msra.mxu0 %v178
    %675 = vmatprep.subr.mxu0 0.0
    %676 = vmatpush1.msra.mxu0 %v179
    %677 = vmatprep.mubr.f32.mxu0 %v352
    %678 = vmatmul.mubr.f32.gmra.mrb[0].mxu0 %v350
    %v679 = vpop.f32.mrb[0].mxu0
    %v680 = vadd.f32 %v610, %v679
    %v681 = vpop.f32.mrb[0].mxu0
    %682 = vdwg.mxu0
    %683 = vmatprep.subr.mxu0 0.0
    %684 = vmatpush1.msra.mxu0 %v180
    %685 = vmatprep.subr.mxu0 0.0
    %686 = vmatpush1.msra.mxu0 %v181
    %687 = vmatprep.subr.mxu0 0.0
    %688 = vmatpush1.msra.mxu0 %v182
    %689 = vmatprep.subr.mxu0 0.0
    %690 = vmatpush1.msra.mxu0 %v183
    %691 = vmatprep.subr.mxu0 0.0
    %692 = vmatpush1.msra.mxu0 %v184
    %693 = vmatprep.subr.mxu0 0.0
    %694 = vmatpush1.msra.mxu0 %v185
    %695 = vmatprep.subr.mxu0 0.0
    %696 = vmatpush1.msra.mxu0 %v186
    %697 = vmatprep.subr.mxu0 0.0
    %698 = vmatpush1.msra.mxu0 %v187
    %699 = vmatprep.subr.mxu0 0.0
    %700 = vmatpush1.msra.mxu0 %v188
    %701 = vmatprep.subr.mxu0 0.0
    %702 = vmatpush1.msra.mxu0 %v189
    %703 = vmatprep.subr.mxu0 0.0
    %704 = vmatpush1.msra.mxu0 %v190
    %705 = vmatprep.subr.mxu0 0.0
    %706 = vmatpush1.msra.mxu0 %v191
    %707 = vmatprep.subr.mxu0 0.0
    %708 = vmatpush1.msra.mxu0 %v192
    %709 = vmatprep.subr.mxu0 0.0
    %710 = vmatpush1.msra.mxu0 %v193
    %711 = vmatprep.subr.mxu0 0.0
    %712 = vmatpush1.msra.mxu0 %v194
    %713 = vmatprep.subr.mxu0 0.0
    %714 = vmatpush1.msra.mxu0 %v195
    %715 = vmatprep.subr.mxu0 0.0
    %716 = vmatpush1.msra.mxu0 %v196
    %717 = vmatprep.subr.mxu0 0.0
    %718 = vmatpush1.msra.mxu0 %v197
    %719 = vmatprep.subr.mxu0 0.0
    %720 = vmatpush1.msra.mxu0 %v198
    %721 = vmatprep.subr.mxu0 0.0
    %722 = vmatpush1.msra.mxu0 %v199
    %723 = vmatprep.subr.mxu0 0.0
    %724 = vmatpush1.msra.mxu0 %v200
    %725 = vmatprep.subr.mxu0 0.0
    %726 = vmatpush1.msra.mxu0 %v201
    %727 = vmatprep.subr.mxu0 0.0
    %728 = vmatpush1.msra.mxu0 %v202
    %729 = vmatprep.subr.mxu0 0.0
    %730 = vmatpush1.msra.mxu0 %v203
    %731 = vmatprep.subr.mxu0 0.0
    %732 = vmatpush1.msra.mxu0 %v204
    %733 = vmatprep.subr.mxu0 0.0
    %734 = vmatpush1.msra.mxu0 %v205
    %735 = vmatprep.subr.mxu0 0.0
    %736 = vmatpush1.msra.mxu0 %v206
    %737 = vmatprep.subr.mxu0 0.0
    %738 = vmatpush1.msra.mxu0 %v207
    %739 = vmatprep.subr.mxu0 0.0
    %740 = vmatpush1.msra.mxu0 %v208
    %741 = vmatprep.subr.mxu0 0.0
    %742 = vmatpush1.msra.mxu0 %v209
    %743 = vmatprep.subr.mxu0 0.0
    %744 = vmatpush1.msra.mxu0 %v210
    %745 = vmatprep.subr.mxu0 0.0
    %746 = vmatpush1.msra.mxu0 %v211
    %747 = vmatprep.mubr.f32.mxu0 %v368
    %748 = vmatmul.mubr.f32.gmra.mrb[0].mxu0 %v360
    %v749 = vpop.f32.mrb[0].mxu0
    %v750 = vadd.f32 %v680, %v749
    %v751 = vpop.f32.mrb[0].mxu0
    %752 = vdwg.mxu0
    %753 = vmatprep.subr.mxu0 0.0
    %754 = vmatpush1.msra.mxu0 %v212
    %755 = vmatprep.subr.mxu0 0.0
    %756 = vmatpush1.msra.mxu0 %v213
    %757 = vmatprep.subr.mxu0 0.0
    %758 = vmatpush1.msra.mxu0 %v214
    %759 = vmatprep.subr.mxu0 0.0
    %760 = vmatpush1.msra.mxu0 %v215
    %761 = vmatprep.subr.mxu0 0.0
    %762 = vmatpush1.msra.mxu0 %v216
    %763 = vmatprep.subr.mxu0 0.0
    %764 = vmatpush1.msra.mxu0 %v217
    %765 = vmatprep.subr.mxu0 0.0
    %766 = vmatpush1.msra.mxu0 %v218
    %767 = vmatprep.subr.mxu0 0.0
    %768 = vmatpush1.msra.mxu0 %v219
    %769 = vmatprep.subr.mxu0 0.0
    %770 = vmatpush1.msra.mxu0 %v220
    %771 = vmatprep.subr.mxu0 0.0
    %772 = vmatpush1.msra.mxu0 %v221
    %773 = vmatprep.subr.mxu0 0.0
    %774 = vmatpush1.msra.mxu0 %v222
    %775 = vmatprep.subr.mxu0 0.0
    %776 = vmatpush1.msra.mxu0 %v223
    %777 = vmatprep.subr.mxu0 0.0
    %778 = vmatpush1.msra.mxu0 %v224
    %779 = vmatprep.subr.mxu0 0.0
    %780 = vmatpush1.msra.mxu0 %v225
    %781 = vmatprep.subr.mxu0 0.0
    %782 = vmatpush1.msra.mxu0 %v226
    %783 = vmatprep.subr.mxu0 0.0
    %784 = vmatpush1.msra.mxu0 %v227
    %785 = vmatprep.subr.mxu0 0.0
    %786 = vmatpush1.msra.mxu0 %v228
    %787 = vmatprep.subr.mxu0 0.0
    %788 = vmatpush1.msra.mxu0 %v229
    %789 = vmatprep.subr.mxu0 0.0
    %790 = vmatpush1.msra.mxu0 %v230
    %791 = vmatprep.subr.mxu0 0.0
    %792 = vmatpush1.msra.mxu0 %v231
    %793 = vmatprep.subr.mxu0 0.0
    %794 = vmatpush1.msra.mxu0 %v232
    %795 = vmatprep.subr.mxu0 0.0
    %796 = vmatpush1.msra.mxu0 %v233
    %797 = vmatprep.subr.mxu0 0.0
    %798 = vmatpush1.msra.mxu0 %v234
    %799 = vmatprep.subr.mxu0 0.0
    %800 = vmatpush1.msra.mxu0 %v235
    %801 = vmatprep.subr.mxu0 0.0
    %802 = vmatpush1.msra.mxu0 %v236
    %803 = vmatprep.subr.mxu0 0.0
    %804 = vmatpush1.msra.mxu0 %v237
    %805 = vmatprep.subr.mxu0 0.0
    %806 = vmatpush1.msra.mxu0 %v238
    %807 = vmatprep.subr.mxu0 0.0
    %808 = vmatpush1.msra.mxu0 %v239
    %809 = vmatprep.subr.mxu0 0.0
    %810 = vmatpush1.msra.mxu0 %v240
    %811 = vmatprep.subr.mxu0 0.0
    %812 = vmatpush1.msra.mxu0 %v241
    %813 = vmatprep.subr.mxu0 0.0
    %814 = vmatpush1.msra.mxu0 %v242
    %815 = vmatprep.subr.mxu0 0.0
    %816 = vmatpush1.msra.mxu0 %v243
    %817 = vmatprep.mubr.f32.mxu0 %v369
    %818 = vmatmul.mubr.f32.gmra.mrb[0].mxu0 %v367
    %v819 = vpop.f32.mrb[0].mxu0
    %v820 = vadd.f32 %v750, %v819
    %v821 = vpop.f32.mrb[0].mxu0
    %822 = vdwg.mxu0
    %823 = vmatprep.subr.mxu0 0.0
    %824 = vmatpush1.msra.mxu0 %v244
    %825 = vmatprep.subr.mxu0 0.0
    %826 = vmatpush1.msra.mxu0 %v245
    %827 = vmatprep.subr.mxu0 0.0
    %828 = vmatpush1.msra.mxu0 %v246
    %829 = vmatprep.subr.mxu0 0.0
    %830 = vmatpush1.msra.mxu0 %v247
    %831 = vmatprep.subr.mxu0 0.0
    %832 = vmatpush1.msra.mxu0 %v248
    %833 = vmatprep.subr.mxu0 0.0
    %834 = vmatpush1.msra.mxu0 %v249
    %835 = vmatprep.subr.mxu0 0.0
    %836 = vmatpush1.msra.mxu0 %v250
    %837 = vmatprep.subr.mxu0 0.0
    %838 = vmatpush1.msra.mxu0 %v251
    %839 = vmatprep.subr.mxu0 0.0
    %840 = vmatpush1.msra.mxu0 %v252
    %841 = vmatprep.subr.mxu0 0.0
    %842 = vmatpush1.msra.mxu0 %v253
    %843 = vmatprep.subr.mxu0 0.0
    %844 = vmatpush1.msra.mxu0 %v254
    %845 = vmatprep.subr.mxu0 0.0
    %846 = vmatpush1.msra.mxu0 %v255
    %847 = vmatprep.subr.mxu0 0.0
    %848 = vmatpush1.msra.mxu0 %v256
    %849 = vmatprep.subr.mxu0 0.0
    %850 = vmatpush1.msra.mxu0 %v257
    %851 = vmatprep.subr.mxu0 0.0
    %852 = vmatpush1.msra.mxu0 %v258
    %853 = vmatprep.subr.mxu0 0.0
    %854 = vmatpush1.msra.mxu0 %v259
    %855 = vmatprep.subr.mxu0 0.0
    %856 = vmatpush1.msra.mxu0 %v260
    %857 = vmatprep.subr.mxu0 0.0
    %858 = vmatpush1.msra.mxu0 %v261
    %859 = vmatprep.subr.mxu0 0.0
    %860 = vmatpush1.msra.mxu0 %v262
    %861 = vmatprep.subr.mxu0 0.0
    %862 = vmatpush1.msra.mxu0 %v263
    %863 = vmatprep.subr.mxu0 0.0
    %864 = vmatpush1.msra.mxu0 %v264
    %865 = vmatprep.subr.mxu0 0.0
    %866 = vmatpush1.msra.mxu0 %v265
    %867 = vmatprep.subr.mxu0 0.0
    %868 = vmatpush1.msra.mxu0 %v266
    %869 = vmatprep.subr.mxu0 0.0
    %870 = vmatpush1.msra.mxu0 %v267
    %871 = vmatprep.subr.mxu0 0.0
    %872 = vmatpush1.msra.mxu0 %v268
    %873 = vmatprep.subr.mxu0 0.0
    %874 = vmatpush1.msra.mxu0 %v269
    %875 = vmatprep.subr.mxu0 0.0
    %876 = vmatpush1.msra.mxu0 %v270
    %877 = vmatprep.subr.mxu0 0.0
    %878 = vmatpush1.msra.mxu0 %v271
    %879 = vmatprep.subr.mxu0 0.0
    %880 = vmatpush1.msra.mxu0 %v272
    %881 = vmatprep.subr.mxu0 0.0
    %882 = vmatpush1.msra.mxu0 %v273
    %883 = vmatprep.subr.mxu0 0.0
    %884 = vmatpush1.msra.mxu0 %v274
    %885 = vmatprep.subr.mxu0 0.0
    %886 = vmatpush1.msra.mxu0 %v275
    %887 = vmatprep.mubr.f32.mxu0 %v385
    %888 = vmatmul.mubr.f32.gmra.mrb[0].mxu0 %v377
    %v889 = vpop.f32.mrb[0].mxu0
    %v890 = vadd.f32 %v820, %v889
    %v891 = vpop.f32.mrb[0].mxu0
    %892 = vdwg.mxu0
    %893 = vmatprep.subr.mxu0 0.0
    %894 = vmatpush1.msra.mxu0 %v276
    %895 = vmatprep.subr.mxu0 0.0
    %896 = vmatpush1.msra.mxu0 %v277
    %897 = vmatprep.subr.mxu0 0.0
    %898 = vmatpush1.msra.mxu0 %v278
    %899 = vmatprep.subr.mxu0 0.0
    %900 = vmatpush1.msra.mxu0 %v279
    %901 = vmatprep.subr.mxu0 0.0
    %902 = vmatpush1.msra.mxu0 %v280
    %903 = vmatprep.subr.mxu0 0.0
    %904 = vmatpush1.msra.mxu0 %v281
    %905 = vmatprep.subr.mxu0 0.0
    %906 = vmatpush1.msra.mxu0 %v282
    %907 = vmatprep.subr.mxu0 0.0
    %908 = vmatpush1.msra.mxu0 %v283
    %909 = vmatprep.subr.mxu0 0.0
    %910 = vmatpush1.msra.mxu0 %v284
    %911 = vmatprep.subr.mxu0 0.0
    %912 = vmatpush1.msra.mxu0 %v285
    %913 = vmatprep.subr.mxu0 0.0
    %914 = vmatpush1.msra.mxu0 %v286
    %915 = vmatprep.subr.mxu0 0.0
    %916 = vmatpush1.msra.mxu0 %v287
    %917 = vmatprep.subr.mxu0 0.0
    %918 = vmatpush1.msra.mxu0 %v288
    %919 = vmatprep.subr.mxu0 0.0
    %920 = vmatpush1.msra.mxu0 %v289
    %921 = vmatprep.subr.mxu0 0.0
    %922 = vmatpush1.msra.mxu0 %v290
    %923 = vmatprep.subr.mxu0 0.0
    %924 = vmatpush1.msra.mxu0 %v291
    %925 = vmatprep.subr.mxu0 0.0
    %926 = vmatpush1.msra.mxu0 %v292
    %927 = vmatprep.subr.mxu0 0.0
    %928 = vmatpush1.msra.mxu0 %v293
    %929 = vmatprep.subr.mxu0 0.0
    %930 = vmatpush1.msra.mxu0 %v294
    %931 = vmatprep.subr.mxu0 0.0
    %932 = vmatpush1.msra.mxu0 %v295
    %933 = vmatprep.subr.mxu0 0.0
    %934 = vmatpush1.msra.mxu0 %v296
    %935 = vmatprep.subr.mxu0 0.0
    %936 = vmatpush1.msra.mxu0 %v297
    %937 = vmatprep.subr.mxu0 0.0
    %938 = vmatpush1.msra.mxu0 %v298
    %939 = vmatprep.subr.mxu0 0.0
    %940 = vmatpush1.msra.mxu0 %v299
    %941 = vmatprep.subr.mxu0 0.0
    %942 = vmatpush1.msra.mxu0 %v300
    %943 = vmatprep.subr.mxu0 0.0
    %944 = vmatpush1.msra.mxu0 %v301
    %945 = vmatprep.subr.mxu0 0.0
    %946 = vmatpush1.msra.mxu0 %v302
    %947 = vmatprep.subr.mxu0 0.0
    %948 = vmatpush1.msra.mxu0 %v303
    %949 = vmatprep.subr.mxu0 0.0
    %950 = vmatpush1.msra.mxu0 %v304
    %951 = vmatprep.subr.mxu0 0.0
    %952 = vmatpush1.msra.mxu0 %v305
    %953 = vmatprep.subr.mxu0 0.0
    %954 = vmatpush1.msra.mxu0 %v306
    %955 = vmatprep.subr.mxu0 0.0
    %956 = vmatpush1.msra.mxu0 %v307
    %957 = vmatprep.mubr.f32.mxu0 %v386
    %958 = vmatmul.mubr.f32.gmra.mrb[0].mxu0 %v384
    %v959 = vpop.f32.mrb[0].mxu0
    %v960 = vadd.f32 %v890, %v959
    %v961 = vpop.f32.mrb[0].mxu0
    %962 = vdwg.mxu0
    %vm963 = vcmask 254976
    %v964 = vsel %vm963, %v960, 0.0
    %v965 = vrot.slane %v964, 4
    %v966 = vadd.f32 %v964, %v965
    %v967 = vrot.slane %v966, 2
    %v968 = vadd.f32 %v966, %v967
    %v969 = vrot.slane %v968, 1
    %v970 = vadd.f32 %v968, %v969
    %v971 = vrcp.pop 2.0
    %v972 = vmul.f32 %v970, %v971
    %v973 = vsub.f32 %v960, %v972
    %v974 = vmul.f32 %v973, %v973
    %v975 = vsel %vm963, %v974, 0.0
    %v976 = vrot.slane %v975, 4
    %v977 = vadd.f32 %v975, %v976
    %v978 = vrot.slane %v977, 2
    %v979 = vadd.f32 %v977, %v978
    %v980 = vrot.slane %v979, 1
    %v981 = vadd.f32 %v979, %v980
    %v982 = vmul.f32 %v981, %v971
    %v983 = vld [vmem:[%s3] sm:$0x1]
    %v985 = vlaneseq
    %v986 = vshrl.u32 %v985, 7
    %v987 = vsub.s32 0, %v986
    %v988 = vrot.slane %v983, %v987
    %v990 = vmul.f32 %v988, %v973
    %v991 = vadd.f32 %v982, 1e-05
    %v992 = vrsqrt.pop %v991
    %v993 = vmul.f32 %v990, %v992
    %v994 = vld [vmem:[%s4] sm:$0x1]
    %v996 = vlaneseq
    %v997 = vshrl.u32 %v996, 7
    %v998 = vsub.s32 0, %v997
    %v999 = vrot.slane %v994, %v998
    %v1001 = vadd.f32 %v993, %v999
    %v1002 = vld [vmem:[%s6] sm:$0xff]
    %v1003 = vld [vmem:[%s6 + $0x8] sm:$0xff]
    %v1004 = vld [vmem:[%s6 + $0x10] sm:$0xff]
    %v1005 = vld [vmem:[%s6 + $0x18] sm:$0xff]
    %v1006 = vld [vmem:[%s8] sm:$0x1]
    %v1008 = vlaneseq
    %v1009 = vshrl.u32 %v1008, 7
    %v1010 = vsub.s32 0, %v1009
    %v1011 = vrot.slane %v1006, %v1010
    %vm1013 = vcmask 261120
    %v1015 = vsel %vm1013, %v1001, 0
    %1017 = vmatprep.subr.mxu0 0.0
    %1018 = vmatpush1.msra.mxu0 %v1002
    %1019 = vmatprep.subr.mxu0 0.0
    %1020 = vmatpush1.msra.mxu0 %v1003
    %1021 = vmatprep.subr.mxu0 0.0
    %1022 = vmatpush1.msra.mxu0 %v1004
    %1023 = vmatprep.subr.mxu0 0.0
    %1024 = vmatpush1.msra.mxu0 %v1005
    %1025 = vmatprep.subr.mxu0 0.0
    %1026 = vmatpush1.msra.mxu0 0.0
    %1027 = vmatprep.subr.mxu0 0.0
    %1028 = vmatpush1.msra.mxu0 0.0
    %1029 = vmatprep.subr.mxu0 0.0
    %1030 = vmatpush1.msra.mxu0 0.0
    %1031 = vmatprep.subr.mxu0 0.0
    %1032 = vmatpush1.msra.mxu0 0.0
    %1033 = vmatprep.subr.mxu0 0.0
    %1034 = vmatpush1.msra.mxu0 0.0
    %1035 = vmatprep.subr.mxu0 0.0
    %1036 = vmatpush1.msra.mxu0 0.0
    %1037 = vmatprep.subr.mxu0 0.0
    %1038 = vmatpush1.msra.mxu0 0.0
    %1039 = vmatprep.subr.mxu0 0.0
    %1040 = vmatpush1.msra.mxu0 0.0
    %1041 = vmatprep.subr.mxu0 0.0
    %1042 = vmatpush1.msra.mxu0 0.0
    %1043 = vmatprep.subr.mxu0 0.0
    %1044 = vmatpush1.msra.mxu0 0.0
    %1045 = vmatprep.subr.mxu0 0.0
    %1046 = vmatpush1.msra.mxu0 0.0
    %1047 = vmatprep.subr.mxu0 0.0
    %1048 = vmatpush1.msra.mxu0 0.0
    %1049 = vmatprep.subr.mxu0 0.0
    %1050 = vmatpush1.msra.mxu0 0.0
    %1051 = vmatprep.subr.mxu0 0.0
    %1052 = vmatpush1.msra.mxu0 0.0
    %1053 = vmatprep.subr.mxu0 0.0
    %1054 = vmatpush1.msra.mxu0 0.0
    %1055 = vmatprep.subr.mxu0 0.0
    %1056 = vmatpush1.msra.mxu0 0.0
    %1057 = vmatprep.subr.mxu0 0.0
    %1058 = vmatpush1.msra.mxu0 0.0
    %1059 = vmatprep.subr.mxu0 0.0
    %1060 = vmatpush1.msra.mxu0 0.0
    %1061 = vmatprep.subr.mxu0 0.0
    %1062 = vmatpush1.msra.mxu0 0.0
    %1063 = vmatprep.subr.mxu0 0.0
    %1064 = vmatpush1.msra.mxu0 0.0
    %1065 = vmatprep.subr.mxu0 0.0
    %1066 = vmatpush1.msra.mxu0 0.0
    %1067 = vmatprep.subr.mxu0 0.0
    %1068 = vmatpush1.msra.mxu0 0.0
    %1069 = vmatprep.subr.mxu0 0.0
    %1070 = vmatpush1.msra.mxu0 0.0
    %1071 = vmatprep.subr.mxu0 0.0
    %1072 = vmatpush1.msra.mxu0 0.0
    %1073 = vmatprep.subr.mxu0 0.0
    %1074 = vmatpush1.msra.mxu0 0.0
    %1075 = vmatprep.subr.mxu0 0.0
    %1076 = vmatpush1.msra.mxu0 0.0
    %1077 = vmatprep.subr.mxu0 0.0
    %1078 = vmatpush1.msra.mxu0 0.0
    %1079 = vmatprep.subr.mxu0 0.0
    %1080 = vmatpush1.msra.mxu0 0.0
    %1081 = vmatprep.mubr.f32.mxu0 0.0
    %1082 = vmatmul.mubr.f32.gmra.mrb[0].mxu0 %v1015
    %v1083 = vpop.f32.mrb[0].mxu0
    %v1084 = vadd.f32 %v1011, %v1083
    %v1085 = vpop.f32.mrb[0].mxu0
    %1086 = vdwg.mxu0
    %v1087 = vld [vmem:[%s5] sm:$0xff]
    %v1088 = vld [vmem:[%s5 + $0x8] sm:$0x3f]
    %v1090 = vsel %vm1013, %v1087, 0
    %v1093 = vsel %vm1013, %v1088, 0
    %1095 = vmatprep.subr.mxu0 0.0
    %1096 = vmatpush1.msra.mxu0 %v1002
    %1097 = vmatprep.subr.mxu0 0.0
    %1098 = vmatpush1.msra.mxu0 %v1003
    %1099 = vmatprep.subr.mxu0 0.0
    %1100 = vmatpush1.msra.mxu0 %v1004
    %1101 = vmatprep.subr.mxu0 0.0
    %1102 = vmatpush1.msra.mxu0 %v1005
    %1103 = vmatprep.subr.mxu0 0.0
    %1104 = vmatpush1.msra.mxu0 0.0
    %1105 = vmatprep.subr.mxu0 0.0
    %1106 = vmatpush1.msra.mxu0 0.0
    %1107 = vmatprep.subr.mxu0 0.0
    %1108 = vmatpush1.msra.mxu0 0.0
    %1109 = vmatprep.subr.mxu0 0.0
    %1110 = vmatpush1.msra.mxu0 0.0
    %1111 = vmatprep.subr.mxu0 0.0
    %1112 = vmatpush1.msra.mxu0 0.0
    %1113 = vmatprep.subr.mxu0 0.0
    %1114 = vmatpush1.msra.mxu0 0.0
    %1115 = vmatprep.subr.mxu0 0.0
    %1116 = vmatpush1.msra.mxu0 0.0
    %1117 = vmatprep.subr.mxu0 0.0
    %1118 = vmatpush1.msra.mxu0 0.0
    %1119 = vmatprep.subr.mxu0 0.0
    %1120 = vmatpush1.msra.mxu0 0.0
    %1121 = vmatprep.subr.mxu0 0.0
    %1122 = vmatpush1.msra.mxu0 0.0
    %1123 = vmatprep.subr.mxu0 0.0
    %1124 = vmatpush1.msra.mxu0 0.0
    %1125 = vmatprep.subr.mxu0 0.0
    %1126 = vmatpush1.msra.mxu0 0.0
    %1127 = vmatprep.subr.mxu0 0.0
    %1128 = vmatpush1.msra.mxu0 0.0
    %1129 = vmatprep.subr.mxu0 0.0
    %1130 = vmatpush1.msra.mxu0 0.0
    %1131 = vmatprep.subr.mxu0 0.0
    %1132 = vmatpush1.msra.mxu0 0.0
    %1133 = vmatprep.subr.mxu0 0.0
    %1134 = vmatpush1.msra.mxu0 0.0
    %1135 = vmatprep.subr.mxu0 0.0
    %1136 = vmatpush1.msra.mxu0 0.0
    %1137 = vmatprep.subr.mxu0 0.0
    %1138 = vmatpush1.msra.mxu0 0.0
    %1139 = vmatprep.subr.mxu0 0.0
    %1140 = vmatpush1.msra.mxu0 0.0
    %1141 = vmatprep.subr.mxu0 0.0
    %1142 = vmatpush1.msra.mxu0 0.0
    %1143 = vmatprep.subr.mxu0 0.0
    %1144 = vmatpush1.msra.mxu0 0.0
    %1145 = vmatprep.subr.mxu0 0.0
    %1146 = vmatpush1.msra.mxu0 0.0
    %1147 = vmatprep.subr.mxu0 0.0
    %1148 = vmatpush1.msra.mxu0 0.0
    %1149 = vmatprep.subr.mxu0 0.0
    %1150 = vmatpush1.msra.mxu0 0.0
    %1151 = vmatprep.subr.mxu0 0.0
    %1152 = vmatpush1.msra.mxu0 0.0
    %1153 = vmatprep.subr.mxu0 0.0
    %1154 = vmatpush1.msra.mxu0 0.0
    %1155 = vmatprep.subr.mxu0 0.0
    %1156 = vmatpush1.msra.mxu0 0.0
    %1157 = vmatprep.subr.mxu0 0.0
    %1158 = vmatpush1.msra.mxu0 0.0
    %1159 = vmatprep.mubr.f32.mxu0 0.0
    %1160 = vmatmul.mubr.f32.gmra.mrb[0].mxu0 %v1090
    %v1161 = vpop.f32.mrb[0].mxu0
    %v1162 = vadd.f32 %v1011, %v1161
    %v1163 = vpop.f32.mrb[0].mxu0
    %1164 = vmatprep.mubr.f32.mxu0 0.0
    %1165 = vmatmul.mubr.f32.gmra.mrb[0].mxu0 %v1093
    %v1166 = vpop.f32.mrb[0].mxu0
    %v1167 = vadd.f32 %v1011, %v1166
    %v1168 = vpop.f32.mrb[0].mxu0
    %1169 = vdwg.mxu0
    %v1170 = vld [vmem:[%s7] sm:$0xff]
    %v1171 = vld [vmem:[%s7 + $0x8] sm:$0xff]
    %v1172 = vld [vmem:[%s7 + $0x10] sm:$0xff]
    %v1173 = vld [vmem:[%s7 + $0x18] sm:$0xff]
    %v1174 = vld [vmem:[%s9] sm:$0xff]
    %v1175 = vld [vmem:[%s9 + $0x8] sm:$0xff]
    %v1176 = vld [vmem:[%s9 + $0x10] sm:$0xff]
    %v1177 = vld [vmem:[%s9 + $0x18] sm:$0xff]
    %v1178 = vld [vmem:[%s10] sm:$0xff]
    %v1179 = vld [vmem:[%s10 + $0x8] sm:$0xff]
    %v1180 = vld [vmem:[%s10 + $0x10] sm:$0xff]
    %v1181 = vld [vmem:[%s10 + $0x18] sm:$0xff]
    %v1182 = vld [vmem:[%s11] sm:$0x1]
    %v1184 = vsel %vm1013, 0.0, 0
    %1186 = vmatprep.subr.mxu0 0.0
    %1187 = vmatpush1.msra.mxu0 %v1170
    %1188 = vmatprep.subr.mxu0 0.0
    %1189 = vmatpush1.msra.mxu0 %v1171
    %1190 = vmatprep.subr.mxu0 0.0
    %1191 = vmatpush1.msra.mxu0 %v1172
    %1192 = vmatprep.subr.mxu0 0.0
    %1193 = vmatpush1.msra.mxu0 %v1173
    %1194 = vmatprep.subr.mxu0 0.0
    %1195 = vmatpush1.msra.mxu0 0.0
    %1196 = vmatprep.subr.mxu0 0.0
    %1197 = vmatpush1.msra.mxu0 0.0
    %1198 = vmatprep.subr.mxu0 0.0
    %1199 = vmatpush1.msra.mxu0 0.0
    %1200 = vmatprep.subr.mxu0 0.0
    %1201 = vmatpush1.msra.mxu0 0.0
    %1202 = vmatprep.subr.mxu0 0.0
    %1203 = vmatpush1.msra.mxu0 0.0
    %1204 = vmatprep.subr.mxu0 0.0
    %1205 = vmatpush1.msra.mxu0 0.0
    %1206 = vmatprep.subr.mxu0 0.0
    %1207 = vmatpush1.msra.mxu0 0.0
    %1208 = vmatprep.subr.mxu0 0.0
    %1209 = vmatpush1.msra.mxu0 0.0
    %1210 = vmatprep.subr.mxu0 0.0
    %1211 = vmatpush1.msra.mxu0 0.0
    %1212 = vmatprep.subr.mxu0 0.0
    %1213 = vmatpush1.msra.mxu0 0.0
    %1214 = vmatprep.subr.mxu0 0.0
    %1215 = vmatpush1.msra.mxu0 0.0
    %1216 = vmatprep.subr.mxu0 0.0
    %1217 = vmatpush1.msra.mxu0 0.0
    %1218 = vmatprep.subr.mxu0 0.0
    %1219 = vmatpush1.msra.mxu0 0.0
    %1220 = vmatprep.subr.mxu0 0.0
    %1221 = vmatpush1.msra.mxu0 0.0
    %1222 = vmatprep.subr.mxu0 0.0
    %1223 = vmatpush1.msra.mxu0 0.0
    %1224 = vmatprep.subr.mxu0 0.0
    %1225 = vmatpush1.msra.mxu0 0.0
    %1226 = vmatprep.subr.mxu0 0.0
    %1227 = vmatpush1.msra.mxu0 0.0
    %1228 = vmatprep.subr.mxu0 0.0
    %1229 = vmatpush1.msra.mxu0 0.0
    %1230 = vmatprep.subr.mxu0 0.0
    %1231 = vmatpush1.msra.mxu0 0.0
    %1232 = vmatprep.subr.mxu0 0.0
    %1233 = vmatpush1.msra.mxu0 0.0
    %1234 = vmatprep.subr.mxu0 0.0
    %1235 = vmatpush1.msra.mxu0 0.0
    %1236 = vmatprep.subr.mxu0 0.0
    %1237 = vmatpush1.msra.mxu0 0.0
    %1238 = vmatprep.subr.mxu0 0.0
    %1239 = vmatpush1.msra.mxu0 0.0
    %1240 = vmatprep.subr.mxu0 0.0
    %1241 = vmatpush1.msra.mxu0 0.0
    %1242 = vmatprep.subr.mxu0 0.0
    %1243 = vmatpush1.msra.mxu0 0.0
    %1244 = vmatprep.subr.mxu0 0.0
    %1245 = vmatpush1.msra.mxu0 0.0
    %1246 = vmatprep.subr.mxu0 0.0
    %1247 = vmatpush1.msra.mxu0 0.0
    %1248 = vmatprep.subr.mxu0 0.0
    %1249 = vmatpush1.msra.mxu0 0.0
    %1250 = vmatprep.mubr.f32.mxu0 0.0
    %1251 = vmatmul.mubr.f32.gmra.mrb[0].mxu0 %v1184
    %v1252 = vpop.f32.mrb[0].mxu0
    %v1253 = vadd.f32 0.0, %v1252
    %v1254 = vpop.f32.mrb[0].mxu0
    %1255 = vdwg.mxu0
    %v1256 = vadd.f32 %v1084, %v1253
    %v1257 = vxor.u32 %v1256, 2147483648
    %v1258 = vmul.f32 %v1257, 1.442695
    %v1259 = vpow.pop %v1258
    %v1260 = vadd.f32 %v1259, 1.0
    %v1261 = vrcp.pop %v1260
    %v1262 = vmul.f32 1.0, %v1261
    %v1263 = vtanh.pop %v1256
    %v1264 = vmul.f32 %v1262, 0.0
    %1266 = vrot.lane.b32.xlu0 %v1263, 64
    %v1267 = vpop.permute.xlu0 %1266
    %v1269 = vmul.f32 %v1262, %v1267
    %1271 = vrot.lane.b32.xlu0 %v1269, 32
    %v1272 = vpop.permute.xlu0 %1271
    %v1274 = vadd.f32 %v1264, %v1272
    %v1275 = vtanh.pop %v1274
    %1277 = vrot.lane.b32.xlu0 %v1275, 64
    %v1278 = vpop.permute.xlu0 %1277
    %v1280 = vmul.f32 %v1262, %v1278
    %1281 = vmatprep.subr.mxu0 0.0
    %1282 = vmatpush1.msra.mxu0 %v1178
    %1283 = vmatprep.subr.mxu0 0.0
    %1284 = vmatpush1.msra.mxu0 %v1179
    %1285 = vmatprep.subr.mxu0 0.0
    %1286 = vmatpush1.msra.mxu0 %v1180
    %1287 = vmatprep.subr.mxu0 0.0
    %1288 = vmatpush1.msra.mxu0 %v1181
    %1289 = vmatprep.subr.mxu0 0.0
    %1290 = vmatpush1.msra.mxu0 0.0
    %1291 = vmatprep.subr.mxu0 0.0
    %1292 = vmatpush1.msra.mxu0 0.0
    %1293 = vmatprep.subr.mxu0 0.0
    %1294 = vmatpush1.msra.mxu0 0.0
    %1295 = vmatprep.subr.mxu0 0.0
    %1296 = vmatpush1.msra.mxu0 0.0
    %1297 = vmatprep.subr.mxu0 0.0
    %1298 = vmatpush1.msra.mxu0 0.0
    %1299 = vmatprep.subr.mxu0 0.0
    %1300 = vmatpush1.msra.mxu0 0.0
    %1301 = vmatprep.subr.mxu0 0.0
    %1302 = vmatpush1.msra.mxu0 0.0
    %1303 = vmatprep.subr.mxu0 0.0
    %1304 = vmatpush1.msra.mxu0 0.0
    %1305 = vmatprep.subr.mxu0 0.0
    %1306 = vmatpush1.msra.mxu0 0.0
    %1307 = vmatprep.subr.mxu0 0.0
    %1308 = vmatpush1.msra.mxu0 0.0
    %1309 = vmatprep.subr.mxu0 0.0
    %1310 = vmatpush1.msra.mxu0 0.0
    %1311 = vmatprep.subr.mxu0 0.0
    %1312 = vmatpush1.msra.mxu0 0.0
    %1313 = vmatprep.subr.mxu0 0.0
    %1314 = vmatpush1.msra.mxu0 0.0
    %1315 = vmatprep.subr.mxu0 0.0
    %1316 = vmatpush1.msra.mxu0 0.0
    %1317 = vmatprep.subr.mxu0 0.0
    %1318 = vmatpush1.msra.mxu0 0.0
    %1319 = vmatprep.subr.mxu0 0.0
    %1320 = vmatpush1.msra.mxu0 0.0
    %1321 = vmatprep.subr.mxu0 0.0
    %1322 = vmatpush1.msra.mxu0 0.0
    %1323 = vmatprep.subr.mxu0 0.0
    %1324 = vmatpush1.msra.mxu0 0.0
    %1325 = vmatprep.subr.mxu0 0.0
    %1326 = vmatpush1.msra.mxu0 0.0
    %1327 = vmatprep.subr.mxu0 0.0
    %1328 = vmatpush1.msra.mxu0 0.0
    %1329 = vmatprep.subr.mxu0 0.0
    %1330 = vmatpush1.msra.mxu0 0.0
    %1331 = vmatprep.subr.mxu0 0.0
    %1332 = vmatpush1.msra.mxu0 0.0
    %1333 = vmatprep.subr.mxu0 0.0
    %1334 = vmatpush1.msra.mxu0 0.0
    %1335 = vmatprep.subr.mxu0 0.0
    %1336 = vmatpush1.msra.mxu0 0.0
    %1337 = vmatprep.subr.mxu0 0.0
    %1338 = vmatpush1.msra.mxu0 0.0
    %1339 = vmatprep.subr.mxu0 0.0
    %1340 = vmatpush1.msra.mxu0 0.0
    %1341 = vmatprep.subr.mxu0 0.0
    %1342 = vmatpush1.msra.mxu0 0.0
    %1343 = vmatprep.subr.mxu0 0.0
    %1344 = vmatpush1.msra.mxu0 0.0
    %1345 = vmatprep.mubr.f32.mxu0 0.0
    %1346 = vmatmul.mubr.f32.gmra.mrb[0].mxu0 %v1184
    %v1347 = vpop.f32.mrb[0].mxu0
    %v1348 = vadd.f32 0.0, %v1347
    %v1349 = vpop.f32.mrb[0].mxu0
    %1350 = vdwg.mxu0
    %1352 = vrot.lane.b32.xlu0 %v1280, 32
    %v1353 = vpop.permute.xlu0 %1352
    %v1354 = vsel %vm1013, %v1353, 0
    %1356 = vmatprep.subr.mxu0 0.0
    %1357 = vmatpush1.msra.mxu0 %v1174
    %1358 = vmatprep.subr.mxu0 0.0
    %1359 = vmatpush1.msra.mxu0 %v1175
    %1360 = vmatprep.subr.mxu0 0.0
    %1361 = vmatpush1.msra.mxu0 %v1176
    %1362 = vmatprep.subr.mxu0 0.0
    %1363 = vmatpush1.msra.mxu0 %v1177
    %1364 = vmatprep.subr.mxu0 0.0
    %1365 = vmatpush1.msra.mxu0 0.0
    %1366 = vmatprep.subr.mxu0 0.0
    %1367 = vmatpush1.msra.mxu0 0.0
    %1368 = vmatprep.subr.mxu0 0.0
    %1369 = vmatpush1.msra.mxu0 0.0
    %1370 = vmatprep.subr.mxu0 0.0
    %1371 = vmatpush1.msra.mxu0 0.0
    %1372 = vmatprep.subr.mxu0 0.0
    %1373 = vmatpush1.msra.mxu0 0.0
    %1374 = vmatprep.subr.mxu0 0.0
    %1375 = vmatpush1.msra.mxu0 0.0
    %1376 = vmatprep.subr.mxu0 0.0
    %1377 = vmatpush1.msra.mxu0 0.0
    %1378 = vmatprep.subr.mxu0 0.0
    %1379 = vmatpush1.msra.mxu0 0.0
    %1380 = vmatprep.subr.mxu0 0.0
    %1381 = vmatpush1.msra.mxu0 0.0
    %1382 = vmatprep.subr.mxu0 0.0
    %1383 = vmatpush1.msra.mxu0 0.0
    %1384 = vmatprep.subr.mxu0 0.0
    %1385 = vmatpush1.msra.mxu0 0.0
    %1386 = vmatprep.subr.mxu0 0.0
    %1387 = vmatpush1.msra.mxu0 0.0
    %1388 = vmatprep.subr.mxu0 0.0
    %1389 = vmatpush1.msra.mxu0 0.0
    %1390 = vmatprep.subr.mxu0 0.0
    %1391 = vmatpush1.msra.mxu0 0.0
    %1392 = vmatprep.subr.mxu0 0.0
    %1393 = vmatpush1.msra.mxu0 0.0
    %1394 = vmatprep.subr.mxu0 0.0
    %1395 = vmatpush1.msra.mxu0 0.0
    %1396 = vmatprep.subr.mxu0 0.0
    %1397 = vmatpush1.msra.mxu0 0.0
    %1398 = vmatprep.subr.mxu0 0.0
    %1399 = vmatpush1.msra.mxu0 0.0
    %1400 = vmatprep.subr.mxu0 0.0
    %1401 = vmatpush1.msra.mxu0 0.0
    %1402 = vmatprep.subr.mxu0 0.0
    %1403 = vmatpush1.msra.mxu0 0.0
    %1404 = vmatprep.subr.mxu0 0.0
    %1405 = vmatpush1.msra.mxu0 0.0
    %1406 = vmatprep.subr.mxu0 0.0
    %1407 = vmatpush1.msra.mxu0 0.0
    %1408 = vmatprep.subr.mxu0 0.0
    %1409 = vmatpush1.msra.mxu0 0.0
    %1410 = vmatprep.subr.mxu0 0.0
    %1411 = vmatpush1.msra.mxu0 0.0
    %1412 = vmatprep.subr.mxu0 0.0
    %1413 = vmatpush1.msra.mxu0 0.0
    %1414 = vmatprep.subr.mxu0 0.0
    %1415 = vmatpush1.msra.mxu0 0.0
    %1416 = vmatprep.subr.mxu0 0.0
    %1417 = vmatpush1.msra.mxu0 0.0
    %1418 = vmatprep.subr.mxu0 0.0
    %1419 = vmatpush1.msra.mxu0 0.0
    %1420 = vmatprep.mubr.f32.mxu0 0.0
    %1421 = vmatmul.mubr.f32.gmra.mrb[0].mxu0 %v1354
    %v1422 = vpop.f32.mrb[0].mxu0
    %v1423 = vadd.f32 %v1348, %v1422
    %v1424 = vpop.f32.mrb[0].mxu0
    %1425 = vdwg.mxu0
    %v1427 = vlaneseq
    %v1428 = vshrl.u32 %v1427, 7
    %v1429 = vsub.s32 0, %v1428
    %v1430 = vrot.slane %v1182, %v1429
    %v1432 = vadd.f32 %v1423, %v1430
    %v1433 = vxor.u32 %v1432, 2147483648
    %v1434 = vmul.f32 %v1433, 1.442695
    %v1435 = vpow.pop %v1434
    %v1436 = vadd.f32 %v1435, 1.0
    %v1437 = vrcp.pop %v1436
    %v1438 = vmul.f32 1.0, %v1437
    %v1439 = vtanh.pop %v1432
    %v1440 = vmul.f32 %v1438, 0.0
    %1442 = vrot.lane.b32.xlu0 %v1439, 64
    %v1443 = vpop.permute.xlu0 %1442
    %v1445 = vmul.f32 %v1438, %v1443
    %1447 = vrot.lane.b32.xlu0 %v1445, 32
    %v1448 = vpop.permute.xlu0 %1447
    %v1450 = vadd.f32 %v1440, %v1448
    %v1451 = vtanh.pop %v1450
    %1453 = vrot.lane.b32.xlu0 %v1451, 64
    %v1454 = vpop.permute.xlu0 %1453
    %v1456 = vmul.f32 %v1438, %v1454
    %1458 = vrot.lane.b32.xlu0 %v1456, 32
    %v1459 = vpop.permute.xlu0 %1458
    %1461 = vst.msk [vmem:[#allocation2] sm:$0x3] %vm963, %v1459
    %1462 = vmatprep.subr.mxu0 0.0
    %1463 = vmatpush1.msra.mxu0 %v1170
    %1464 = vmatprep.subr.mxu0 0.0
    %1465 = vmatpush1.msra.mxu0 %v1171
    %1466 = vmatprep.subr.mxu0 0.0
    %1467 = vmatpush1.msra.mxu0 %v1172
    %1468 = vmatprep.subr.mxu0 0.0
    %1469 = vmatpush1.msra.mxu0 %v1173
    %1470 = vmatprep.subr.mxu0 0.0
    %1471 = vmatpush1.msra.mxu0 0.0
    %1472 = vmatprep.subr.mxu0 0.0
    %1473 = vmatpush1.msra.mxu0 0.0
    %1474 = vmatprep.subr.mxu0 0.0
    %1475 = vmatpush1.msra.mxu0 0.0
    %1476 = vmatprep.subr.mxu0 0.0
    %1477 = vmatpush1.msra.mxu0 0.0
    %1478 = vmatprep.subr.mxu0 0.0
    %1479 = vmatpush1.msra.mxu0 0.0
    %1480 = vmatprep.subr.mxu0 0.0
    %1481 = vmatpush1.msra.mxu0 0.0
    %1482 = vmatprep.subr.mxu0 0.0
    %1483 = vmatpush1.msra.mxu0 0.0
    %1484 = vmatprep.subr.mxu0 0.0
    %1485 = vmatpush1.msra.mxu0 0.0
    %1486 = vmatprep.subr.mxu0 0.0
    %1487 = vmatpush1.msra.mxu0 0.0
    %1488 = vmatprep.subr.mxu0 0.0
    %1489 = vmatpush1.msra.mxu0 0.0
    %1490 = vmatprep.subr.mxu0 0.0
    %1491 = vmatpush1.msra.mxu0 0.0
    %1492 = vmatprep.subr.mxu0 0.0
    %1493 = vmatpush1.msra.mxu0 0.0
    %1494 = vmatprep.subr.mxu0 0.0
    %1495 = vmatpush1.msra.mxu0 0.0
    %1496 = vmatprep.subr.mxu0 0.0
    %1497 = vmatpush1.msra.mxu0 0.0
    %1498 = vmatprep.subr.mxu0 0.0
    %1499 = vmatpush1.msra.mxu0 0.0
    %1500 = vmatprep.subr.mxu0 0.0
    %1501 = vmatpush1.msra.mxu0 0.0
    %1502 = vmatprep.subr.mxu0 0.0
    %1503 = vmatpush1.msra.mxu0 0.0
    %1504 = vmatprep.subr.mxu0 0.0
    %1505 = vmatpush1.msra.mxu0 0.0
    %1506 = vmatprep.subr.mxu0 0.0
    %1507 = vmatpush1.msra.mxu0 0.0
    %1508 = vmatprep.subr.mxu0 0.0
    %1509 = vmatpush1.msra.mxu0 0.0
    %1510 = vmatprep.subr.mxu0 0.0
    %1511 = vmatpush1.msra.mxu0 0.0
    %1512 = vmatprep.subr.mxu0 0.0
    %1513 = vmatpush1.msra.mxu0 0.0
    %1514 = vmatprep.subr.mxu0 0.0
    %1515 = vmatpush1.msra.mxu0 0.0
    %1516 = vmatprep.subr.mxu0 0.0
    %1517 = vmatpush1.msra.mxu0 0.0
    %1518 = vmatprep.subr.mxu0 0.0
    %1519 = vmatpush1.msra.mxu0 0.0
    %1520 = vmatprep.subr.mxu0 0.0
    %1521 = vmatpush1.msra.mxu0 0.0
    %1522 = vmatprep.subr.mxu0 0.0
    %1523 = vmatpush1.msra.mxu0 0.0
    %1524 = vmatprep.subr.mxu0 0.0
    %1525 = vmatpush1.msra.mxu0 0.0
    %1526 = vmatprep.mubr.f32.mxu0 0.0
    %1527 = vmatmul.mubr.f32.gmra.mrb[0].mxu0 %v1354
    %v1528 = vpop.f32.mrb[0].mxu0
    %v1529 = vadd.f32 0.0, %v1528
    %v1530 = vpop.f32.mrb[0].mxu0
    %1531 = vdwg.mxu0
    %v1532 = vadd.f32 %v1162, %v1529
    %v1533 = vxor.u32 %v1532, 2147483648
    %v1534 = vmul.f32 %v1533, 1.442695
    %v1535 = vpow.pop %v1534
    %v1536 = vadd.f32 %v1535, 1.0
    %v1537 = vrcp.pop %v1536
    %v1538 = vmul.f32 1.0, %v1537
    %v1539 = vtanh.pop %v1532
    %v1540 = vmul.f32 %v1538, %v1274
    %1542 = vrot.lane.b32.xlu0 %v1539, 64
    %v1543 = vpop.permute.xlu0 %1542
    %v1545 = vmul.f32 %v1538, %v1543
    %1547 = vrot.lane.b32.xlu0 %v1545, 32
    %v1548 = vpop.permute.xlu0 %1547
    %v1550 = vadd.f32 %v1540, %v1548
    %v1551 = vtanh.pop %v1550
    %1553 = vrot.lane.b32.xlu0 %v1551, 64
    %v1554 = vpop.permute.xlu0 %1553
    %v1556 = vmul.f32 %v1538, %v1554
    %v1557 = vsel %vm1013, %v1459, 0
    %1559 = vmatprep.subr.mxu0 0.0
    %1560 = vmatpush1.msra.mxu0 %v1178
    %1561 = vmatprep.subr.mxu0 0.0
    %1562 = vmatpush1.msra.mxu0 %v1179
    %1563 = vmatprep.subr.mxu0 0.0
    %1564 = vmatpush1.msra.mxu0 %v1180
    %1565 = vmatprep.subr.mxu0 0.0
    %1566 = vmatpush1.msra.mxu0 %v1181
    %1567 = vmatprep.subr.mxu0 0.0
    %1568 = vmatpush1.msra.mxu0 0.0
    %1569 = vmatprep.subr.mxu0 0.0
    %1570 = vmatpush1.msra.mxu0 0.0
    %1571 = vmatprep.subr.mxu0 0.0
    %1572 = vmatpush1.msra.mxu0 0.0
    %1573 = vmatprep.subr.mxu0 0.0
    %1574 = vmatpush1.msra.mxu0 0.0
    %1575 = vmatprep.subr.mxu0 0.0
    %1576 = vmatpush1.msra.mxu0 0.0
    %1577 = vmatprep.subr.mxu0 0.0
    %1578 = vmatpush1.msra.mxu0 0.0
    %1579 = vmatprep.subr.mxu0 0.0
    %1580 = vmatpush1.msra.mxu0 0.0
    %1581 = vmatprep.subr.mxu0 0.0
    %1582 = vmatpush1.msra.mxu0 0.0
    %1583 = vmatprep.subr.mxu0 0.0
    %1584 = vmatpush1.msra.mxu0 0.0
    %1585 = vmatprep.subr.mxu0 0.0
    %1586 = vmatpush1.msra.mxu0 0.0
    %1587 = vmatprep.subr.mxu0 0.0
    %1588 = vmatpush1.msra.mxu0 0.0
    %1589 = vmatprep.subr.mxu0 0.0
    %1590 = vmatpush1.msra.mxu0 0.0
    %1591 = vmatprep.subr.mxu0 0.0
    %1592 = vmatpush1.msra.mxu0 0.0
    %1593 = vmatprep.subr.mxu0 0.0
    %1594 = vmatpush1.msra.mxu0 0.0
    %1595 = vmatprep.subr.mxu0 0.0
    %1596 = vmatpush1.msra.mxu0 0.0
    %1597 = vmatprep.subr.mxu0 0.0
    %1598 = vmatpush1.msra.mxu0 0.0
    %1599 = vmatprep.subr.mxu0 0.0
    %1600 = vmatpush1.msra.mxu0 0.0
    %1601 = vmatprep.subr.mxu0 0.0
    %1602 = vmatpush1.msra.mxu0 0.0
    %1603 = vmatprep.subr.mxu0 0.0
    %1604 = vmatpush1.msra.mxu0 0.0
    %1605 = vmatprep.subr.mxu0 0.0
    %1606 = vmatpush1.msra.mxu0 0.0
    %1607 = vmatprep.subr.mxu0 0.0
    %1608 = vmatpush1.msra.mxu0 0.0
    %1609 = vmatprep.subr.mxu0 0.0
    %1610 = vmatpush1.msra.mxu0 0.0
    %1611 = vmatprep.subr.mxu0 0.0
    %1612 = vmatpush1.msra.mxu0 0.0
    %1613 = vmatprep.subr.mxu0 0.0
    %1614 = vmatpush1.msra.mxu0 0.0
    %1615 = vmatprep.subr.mxu0 0.0
    %1616 = vmatpush1.msra.mxu0 0.0
    %1617 = vmatprep.subr.mxu0 0.0
    %1618 = vmatpush1.msra.mxu0 0.0
    %1619 = vmatprep.subr.mxu0 0.0
    %1620 = vmatpush1.msra.mxu0 0.0
    %1621 = vmatprep.subr.mxu0 0.0
    %1622 = vmatpush1.msra.mxu0 0.0
    %1623 = vmatprep.mubr.f32.mxu0 0.0
    %1624 = vmatmul.mubr.f32.gmra.mrb[0].mxu0 %v1557
    %v1625 = vpop.f32.mrb[0].mxu0
    %v1626 = vadd.f32 0.0, %v1625
    %v1627 = vpop.f32.mrb[0].mxu0
    %1628 = vdwg.mxu0
    %1630 = vrot.lane.b32.xlu0 %v1556, 32
    %v1631 = vpop.permute.xlu0 %1630
    %v1632 = vsel %vm1013, %v1631, 0
    %1634 = vmatprep.subr.mxu0 0.0
    %1635 = vmatpush1.msra.mxu0 %v1174
    %1636 = vmatprep.subr.mxu0 0.0
    %1637 = vmatpush1.msra.mxu0 %v1175
    %1638 = vmatprep.subr.mxu0 0.0
    %1639 = vmatpush1.msra.mxu0 %v1176
    %1640 = vmatprep.subr.mxu0 0.0
    %1641 = vmatpush1.msra.mxu0 %v1177
    %1642 = vmatprep.subr.mxu0 0.0
    %1643 = vmatpush1.msra.mxu0 0.0
    %1644 = vmatprep.subr.mxu0 0.0
    %1645 = vmatpush1.msra.mxu0 0.0
    %1646 = vmatprep.subr.mxu0 0.0
    %1647 = vmatpush1.msra.mxu0 0.0
    %1648 = vmatprep.subr.mxu0 0.0
    %1649 = vmatpush1.msra.mxu0 0.0
    %1650 = vmatprep.subr.mxu0 0.0
    %1651 = vmatpush1.msra.mxu0 0.0
    %1652 = vmatprep.subr.mxu0 0.0
    %1653 = vmatpush1.msra.mxu0 0.0
    %1654 = vmatprep.subr.mxu0 0.0
    %1655 = vmatpush1.msra.mxu0 0.0
    %1656 = vmatprep.subr.mxu0 0.0
    %1657 = vmatpush1.msra.mxu0 0.0
    %1658 = vmatprep.subr.mxu0 0.0
    %1659 = vmatpush1.msra.mxu0 0.0
    %1660 = vmatprep.subr.mxu0 0.0
    %1661 = vmatpush1.msra.mxu0 0.0
    %1662 = vmatprep.subr.mxu0 0.0
    %1663 = vmatpush1.msra.mxu0 0.0
    %1664 = vmatprep.subr.mxu0 0.0
    %1665 = vmatpush1.msra.mxu0 0.0
    %1666 = vmatprep.subr.mxu0 0.0
    %1667 = vmatpush1.msra.mxu0 0.0
    %1668 = vmatprep.subr.mxu0 0.0
    %1669 = vmatpush1.msra.mxu0 0.0
    %1670 = vmatprep.subr.mxu0 0.0
    %1671 = vmatpush1.msra.mxu0 0.0
    %1672 = vmatprep.subr.mxu0 0.0
    %1673 = vmatpush1.msra.mxu0 0.0
    %1674 = vmatprep.subr.mxu0 0.0
    %1675 = vmatpush1.msra.mxu0 0.0
    %1676 = vmatprep.subr.mxu0 0.0
    %1677 = vmatpush1.msra.mxu0 0.0
    %1678 = vmatprep.subr.mxu0 0.0
    %1679 = vmatpush1.msra.mxu0 0.0
    %1680 = vmatprep.subr.mxu0 0.0
    %1681 = vmatpush1.msra.mxu0 0.0
    %1682 = vmatprep.subr.mxu0 0.0
    %1683 = vmatpush1.msra.mxu0 0.0
    %1684 = vmatprep.subr.mxu0 0.0
    %1685 = vmatpush1.msra.mxu0 0.0
    %1686 = vmatprep.subr.mxu0 0.0
    %1687 = vmatpush1.msra.mxu0 0.0
    %1688 = vmatprep.subr.mxu0 0.0
    %1689 = vmatpush1.msra.mxu0 0.0
    %1690 = vmatprep.subr.mxu0 0.0
    %1691 = vmatpush1.msra.mxu0 0.0
    %1692 = vmatprep.subr.mxu0 0.0
    %1693 = vmatpush1.msra.mxu0 0.0
    %1694 = vmatprep.subr.mxu0 0.0
    %1695 = vmatpush1.msra.mxu0 0.0
    %1696 = vmatprep.subr.mxu0 0.0
    %1697 = vmatpush1.msra.mxu0 0.0
    %1698 = vmatprep.mubr.f32.mxu0 0.0
    %1699 = vmatmul.mubr.f32.gmra.mrb[0].mxu0 %v1632
    %v1700 = vpop.f32.mrb[0].mxu0
    %v1701 = vadd.f32 %v1626, %v1700
    %v1702 = vpop.f32.mrb[0].mxu0
    %1703 = vdwg.mxu0
    %v1704 = vadd.f32 %v1701, %v1430
    %v1705 = vxor.u32 %v1704, 2147483648
    %v1706 = vmul.f32 %v1705, 1.442695
    %v1707 = vpow.pop %v1706
    %v1708 = vadd.f32 %v1707, 1.0
    %v1709 = vrcp.pop %v1708
    %v1710 = vmul.f32 1.0, %v1709
    %v1711 = vtanh.pop %v1704
    %v1712 = vmul.f32 %v1710, %v1450
    %1714 = vrot.lane.b32.xlu0 %v1711, 64
    %v1715 = vpop.permute.xlu0 %1714
    %v1717 = vmul.f32 %v1710, %v1715
    %1719 = vrot.lane.b32.xlu0 %v1717, 32
    %v1720 = vpop.permute.xlu0 %1719
    %v1722 = vadd.f32 %v1712, %v1720
    %v1723 = vtanh.pop %v1722
    %1725 = vrot.lane.b32.xlu0 %v1723, 64
    %v1726 = vpop.permute.xlu0 %1725
    %v1728 = vmul.f32 %v1710, %v1726
    %1730 = vrot.lane.b32.xlu0 %v1728, 32
    %v1731 = vpop.permute.xlu0 %1730
    %1733 = vst.msk [vmem:[#allocation2 + $0x2] sm:$0x3] %vm963, %v1731
    %1734 = vmatprep.subr.mxu0 0.0
    %1735 = vmatpush1.msra.mxu0 %v1170
    %1736 = vmatprep.subr.mxu0 0.0
    %1737 = vmatpush1.msra.mxu0 %v1171
    %1738 = vmatprep.subr.mxu0 0.0
    %1739 = vmatpush1.msra.mxu0 %v1172
    %1740 = vmatprep.subr.mxu0 0.0
    %1741 = vmatpush1.msra.mxu0 %v1173
    %1742 = vmatprep.subr.mxu0 0.0
    %1743 = vmatpush1.msra.mxu0 0.0
    %1744 = vmatprep.subr.mxu0 0.0
    %1745 = vmatpush1.msra.mxu0 0.0
    %1746 = vmatprep.subr.mxu0 0.0
    %1747 = vmatpush1.msra.mxu0 0.0
    %1748 = vmatprep.subr.mxu0 0.0
    %1749 = vmatpush1.msra.mxu0 0.0
    %1750 = vmatprep.subr.mxu0 0.0
    %1751 = vmatpush1.msra.mxu0 0.0
    %1752 = vmatprep.subr.mxu0 0.0
    %1753 = vmatpush1.msra.mxu0 0.0
    %1754 = vmatprep.subr.mxu0 0.0
    %1755 = vmatpush1.msra.mxu0 0.0
    %1756 = vmatprep.subr.mxu0 0.0
    %1757 = vmatpush1.msra.mxu0 0.0
    %1758 = vmatprep.subr.mxu0 0.0
    %1759 = vmatpush1.msra.mxu0 0.0
    %1760 = vmatprep.subr.mxu0 0.0
    %1761 = vmatpush1.msra.mxu0 0.0
    %1762 = vmatprep.subr.mxu0 0.0
    %1763 = vmatpush1.msra.mxu0 0.0
    %1764 = vmatprep.subr.mxu0 0.0
    %1765 = vmatpush1.msra.mxu0 0.0
    %1766 = vmatprep.subr.mxu0 0.0
    %1767 = vmatpush1.msra.mxu0 0.0
    %1768 = vmatprep.subr.mxu0 0.0
    %1769 = vmatpush1.msra.mxu0 0.0
    %1770 = vmatprep.subr.mxu0 0.0
    %1771 = vmatpush1.msra.mxu0 0.0
    %1772 = vmatprep.subr.mxu0 0.0
    %1773 = vmatpush1.msra.mxu0 0.0
    %1774 = vmatprep.subr.mxu0 0.0
    %1775 = vmatpush1.msra.mxu0 0.0
    %1776 = vmatprep.subr.mxu0 0.0
    %1777 = vmatpush1.msra.mxu0 0.0
    %1778 = vmatprep.subr.mxu0 0.0
    %1779 = vmatpush1.msra.mxu0 0.0
    %1780 = vmatprep.subr.mxu0 0.0
    %1781 = vmatpush1.msra.mxu0 0.0
    %1782 = vmatprep.subr.mxu0 0.0
    %1783 = vmatpush1.msra.mxu0 0.0
    %1784 = vmatprep.subr.mxu0 0.0
    %1785 = vmatpush1.msra.mxu0 0.0
    %1786 = vmatprep.subr.mxu0 0.0
    %1787 = vmatpush1.msra.mxu0 0.0
    %1788 = vmatprep.subr.mxu0 0.0
    %1789 = vmatpush1.msra.mxu0 0.0
    %1790 = vmatprep.subr.mxu0 0.0
    %1791 = vmatpush1.msra.mxu0 0.0
    %1792 = vmatprep.subr.mxu0 0.0
    %1793 = vmatpush1.msra.mxu0 0.0
    %1794 = vmatprep.subr.mxu0 0.0
    %1795 = vmatpush1.msra.mxu0 0.0
    %1796 = vmatprep.subr.mxu0 0.0
    %1797 = vmatpush1.msra.mxu0 0.0
    %1798 = vmatprep.mubr.f32.mxu0 0.0
    %1799 = vmatmul.mubr.f32.gmra.mrb[0].mxu0 %v1632
    %v1800 = vpop.f32.mrb[0].mxu0
    %v1801 = vadd.f32 0.0, %v1800
    %v1802 = vpop.f32.mrb[0].mxu0
    %1803 = vdwg.mxu0
    %v1805 = vrot.slane %v1801, 6
    %v1807 = vadd.f32 %v1162, %v1805
    %v1808 = vxor.u32 %v1807, 2147483648
    %v1809 = vmul.f32 %v1808, 1.442695
    %v1810 = vpow.pop %v1809
    %v1811 = vadd.f32 %v1810, 1.0
    %v1812 = vrcp.pop %v1811
    %v1813 = vmul.f32 1.0, %v1812
    %v1814 = vtanh.pop %v1807
    %v1816 = vrot.slane %v1550, 6
    %v1818 = vmul.f32 %v1813, %v1816
    %1820 = vrot.lane.b32.xlu0 %v1814, 64
    %v1821 = vpop.permute.xlu0 %1820
    %v1823 = vmul.f32 %v1813, %v1821
    %1825 = vrot.lane.b32.xlu0 %v1823, 32
    %v1826 = vpop.permute.xlu0 %1825
    %v1828 = vadd.f32 %v1818, %v1826
    %v1829 = vtanh.pop %v1828
    %1831 = vrot.lane.b32.xlu0 %v1829, 64
    %v1832 = vpop.permute.xlu0 %1831
    %v1834 = vmul.f32 %v1813, %v1832
    %v1835 = vsel %vm1013, %v1731, 0
    %1837 = vmatprep.subr.mxu0 0.0
    %1838 = vmatpush1.msra.mxu0 %v1178
    %1839 = vmatprep.subr.mxu0 0.0
    %1840 = vmatpush1.msra.mxu0 %v1179
    %1841 = vmatprep.subr.mxu0 0.0
    %1842 = vmatpush1.msra.mxu0 %v1180
    %1843 = vmatprep.subr.mxu0 0.0
    %1844 = vmatpush1.msra.mxu0 %v1181
    %1845 = vmatprep.subr.mxu0 0.0
    %1846 = vmatpush1.msra.mxu0 0.0
    %1847 = vmatprep.subr.mxu0 0.0
    %1848 = vmatpush1.msra.mxu0 0.0
    %1849 = vmatprep.subr.mxu0 0.0
    %1850 = vmatpush1.msra.mxu0 0.0
    %1851 = vmatprep.subr.mxu0 0.0
    %1852 = vmatpush1.msra.mxu0 0.0
    %1853 = vmatprep.subr.mxu0 0.0
    %1854 = vmatpush1.msra.mxu0 0.0
    %1855 = vmatprep.subr.mxu0 0.0
    %1856 = vmatpush1.msra.mxu0 0.0
    %1857 = vmatprep.subr.mxu0 0.0
    %1858 = vmatpush1.msra.mxu0 0.0
    %1859 = vmatprep.subr.mxu0 0.0
    %1860 = vmatpush1.msra.mxu0 0.0
    %1861 = vmatprep.subr.mxu0 0.0
    %1862 = vmatpush1.msra.mxu0 0.0
    %1863 = vmatprep.subr.mxu0 0.0
    %1864 = vmatpush1.msra.mxu0 0.0
    %1865 = vmatprep.subr.mxu0 0.0
    %1866 = vmatpush1.msra.mxu0 0.0
    %1867 = vmatprep.subr.mxu0 0.0
    %1868 = vmatpush1.msra.mxu0 0.0
    %1869 = vmatprep.subr.mxu0 0.0
    %1870 = vmatpush1.msra.mxu0 0.0
    %1871 = vmatprep.subr.mxu0 0.0
    %1872 = vmatpush1.msra.mxu0 0.0
    %1873 = vmatprep.subr.mxu0 0.0
    %1874 = vmatpush1.msra.mxu0 0.0
    %1875 = vmatprep.subr.mxu0 0.0
    %1876 = vmatpush1.msra.mxu0 0.0
    %1877 = vmatprep.subr.mxu0 0.0
    %1878 = vmatpush1.msra.mxu0 0.0
    %1879 = vmatprep.subr.mxu0 0.0
    %1880 = vmatpush1.msra.mxu0 0.0
    %1881 = vmatprep.subr.mxu0 0.0
    %1882 = vmatpush1.msra.mxu0 0.0
    %1883 = vmatprep.subr.mxu0 0.0
    %1884 = vmatpush1.msra.mxu0 0.0
    %1885 = vmatprep.subr.mxu0 0.0
    %1886 = vmatpush1.msra.mxu0 0.0
    %1887 = vmatprep.subr.mxu0 0.0
    %1888 = vmatpush1.msra.mxu0 0.0
    %1889 = vmatprep.subr.mxu0 0.0
    %1890 = vmatpush1.msra.mxu0 0.0
    %1891 = vmatprep.subr.mxu0 0.0
    %1892 = vmatpush1.msra.mxu0 0.0
    %1893 = vmatprep.subr.mxu0 0.0
    %1894 = vmatpush1.msra.mxu0 0.0
    %1895 = vmatprep.subr.mxu0 0.0
    %1896 = vmatpush1.msra.mxu0 0.0
    %1897 = vmatprep.subr.mxu0 0.0
    %1898 = vmatpush1.msra.mxu0 0.0
    %1899 = vmatprep.subr.mxu0 0.0
    %1900 = vmatpush1.msra.mxu0 0.0
    %1901 = vmatprep.mubr.f32.mxu0 0.0
    %1902 = vmatmul.mubr.f32.gmra.mrb[0].mxu0 %v1835
    %v1903 = vpop.f32.mrb[0].mxu0
    %v1904 = vadd.f32 0.0, %v1903
    %v1905 = vpop.f32.mrb[0].mxu0
    %1906 = vdwg.mxu0
    %v1908 = vrot.slane %v1834, 2
    %1909 = vrot.lane.b32.xlu0 %v1908, 32
    %v1910 = vpop.permute.xlu0 %1909
    %v1911 = vsel %vm1013, %v1910, 0
    %1913 = vmatprep.subr.mxu0 0.0
    %1914 = vmatpush1.msra.mxu0 %v1174
    %1915 = vmatprep.subr.mxu0 0.0
    %1916 = vmatpush1.msra.mxu0 %v1175
    %1917 = vmatprep.subr.mxu0 0.0
    %1918 = vmatpush1.msra.mxu0 %v1176
    %1919 = vmatprep.subr.mxu0 0.0
    %1920 = vmatpush1.msra.mxu0 %v1177
    %1921 = vmatprep.subr.mxu0 0.0
    %1922 = vmatpush1.msra.mxu0 0.0
    %1923 = vmatprep.subr.mxu0 0.0
    %1924 = vmatpush1.msra.mxu0 0.0
    %1925 = vmatprep.subr.mxu0 0.0
    %1926 = vmatpush1.msra.mxu0 0.0
    %1927 = vmatprep.subr.mxu0 0.0
    %1928 = vmatpush1.msra.mxu0 0.0
    %1929 = vmatprep.subr.mxu0 0.0
    %1930 = vmatpush1.msra.mxu0 0.0
    %1931 = vmatprep.subr.mxu0 0.0
    %1932 = vmatpush1.msra.mxu0 0.0
    %1933 = vmatprep.subr.mxu0 0.0
    %1934 = vmatpush1.msra.mxu0 0.0
    %1935 = vmatprep.subr.mxu0 0.0
    %1936 = vmatpush1.msra.mxu0 0.0
    %1937 = vmatprep.subr.mxu0 0.0
    %1938 = vmatpush1.msra.mxu0 0.0
    %1939 = vmatprep.subr.mxu0 0.0
    %1940 = vmatpush1.msra.mxu0 0.0
    %1941 = vmatprep.subr.mxu0 0.0
    %1942 = vmatpush1.msra.mxu0 0.0
    %1943 = vmatprep.subr.mxu0 0.0
    %1944 = vmatpush1.msra.mxu0 0.0
    %1945 = vmatprep.subr.mxu0 0.0
    %1946 = vmatpush1.msra.mxu0 0.0
    %1947 = vmatprep.subr.mxu0 0.0
    %1948 = vmatpush1.msra.mxu0 0.0
    %1949 = vmatprep.subr.mxu0 0.0
    %1950 = vmatpush1.msra.mxu0 0.0
    %1951 = vmatprep.subr.mxu0 0.0
    %1952 = vmatpush1.msra.mxu0 0.0
    %1953 = vmatprep.subr.mxu0 0.0
    %1954 = vmatpush1.msra.mxu0 0.0
    %1955 = vmatprep.subr.mxu0 0.0
    %1956 = vmatpush1.msra.mxu0 0.0
    %1957 = vmatprep.subr.mxu0 0.0
    %1958 = vmatpush1.msra.mxu0 0.0
    %1959 = vmatprep.subr.mxu0 0.0
    %1960 = vmatpush1.msra.mxu0 0.0
    %1961 = vmatprep.subr.mxu0 0.0
    %1962 = vmatpush1.msra.mxu0 0.0
    %1963 = vmatprep.subr.mxu0 0.0
    %1964 = vmatpush1.msra.mxu0 0.0
    %1965 = vmatprep.subr.mxu0 0.0
    %1966 = vmatpush1.msra.mxu0 0.0
    %1967 = vmatprep.subr.mxu0 0.0
    %1968 = vmatpush1.msra.mxu0 0.0
    %1969 = vmatprep.subr.mxu0 0.0
    %1970 = vmatpush1.msra.mxu0 0.0
    %1971 = vmatprep.subr.mxu0 0.0
    %1972 = vmatpush1.msra.mxu0 0.0
    %1973 = vmatprep.subr.mxu0 0.0
    %1974 = vmatpush1.msra.mxu0 0.0
    %1975 = vmatprep.subr.mxu0 0.0
    %1976 = vmatpush1.msra.mxu0 0.0
    %1977 = vmatprep.mubr.f32.mxu0 0.0
    %1978 = vmatmul.mubr.f32.gmra.mrb[0].mxu0 %v1911
    %v1979 = vpop.f32.mrb[0].mxu0
    %v1980 = vadd.f32 %v1904, %v1979
    %v1981 = vpop.f32.mrb[0].mxu0
    %1982 = vdwg.mxu0
    %v1983 = vadd.f32 %v1980, %v1430
    %v1984 = vxor.u32 %v1983, 2147483648
    %v1985 = vmul.f32 %v1984, 1.442695
    %v1986 = vpow.pop %v1985
    %v1987 = vadd.f32 %v1986, 1.0
    %v1988 = vrcp.pop %v1987
    %v1989 = vmul.f32 1.0, %v1988
    %v1990 = vtanh.pop %v1983
    %v1991 = vmul.f32 %v1989, %v1722
    %1993 = vrot.lane.b32.xlu0 %v1990, 64
    %v1994 = vpop.permute.xlu0 %1993
    %v1996 = vmul.f32 %v1989, %v1994
    %1998 = vrot.lane.b32.xlu0 %v1996, 32
    %v1999 = vpop.permute.xlu0 %1998
    %v2001 = vadd.f32 %v1991, %v1999
    %v2002 = vtanh.pop %v2001
    %2004 = vrot.lane.b32.xlu0 %v2002, 64
    %v2005 = vpop.permute.xlu0 %2004
    %v2007 = vmul.f32 %v1989, %v2005
    %2009 = vrot.lane.b32.xlu0 %v2007, 32
    %v2010 = vpop.permute.xlu0 %2009
    %2012 = vst.msk [vmem:[#allocation2 + $0x4] sm:$0x3] %vm963, %v2010
    %2013 = vmatprep.subr.mxu0 0.0
    %2014 = vmatpush1.msra.mxu0 %v1170
    %2015 = vmatprep.subr.mxu0 0.0
    %2016 = vmatpush1.msra.mxu0 %v1171
    %2017 = vmatprep.subr.mxu0 0.0
    %2018 = vmatpush1.msra.mxu0 %v1172
    %2019 = vmatprep.subr.mxu0 0.0
    %2020 = vmatpush1.msra.mxu0 %v1173
    %2021 = vmatprep.subr.mxu0 0.0
    %2022 = vmatpush1.msra.mxu0 0.0
    %2023 = vmatprep.subr.mxu0 0.0
    %2024 = vmatpush1.msra.mxu0 0.0
    %2025 = vmatprep.subr.mxu0 0.0
    %2026 = vmatpush1.msra.mxu0 0.0
    %2027 = vmatprep.subr.mxu0 0.0
    %2028 = vmatpush1.msra.mxu0 0.0
    %2029 = vmatprep.subr.mxu0 0.0
    %2030 = vmatpush1.msra.mxu0 0.0
    %2031 = vmatprep.subr.mxu0 0.0
    %2032 = vmatpush1.msra.mxu0 0.0
    %2033 = vmatprep.subr.mxu0 0.0
    %2034 = vmatpush1.msra.mxu0 0.0
    %2035 = vmatprep.subr.mxu0 0.0
    %2036 = vmatpush1.msra.mxu0 0.0
    %2037 = vmatprep.subr.mxu0 0.0
    %2038 = vmatpush1.msra.mxu0 0.0
    %2039 = vmatprep.subr.mxu0 0.0
    %2040 = vmatpush1.msra.mxu0 0.0
    %2041 = vmatprep.subr.mxu0 0.0
    %2042 = vmatpush1.msra.mxu0 0.0
    %2043 = vmatprep.subr.mxu0 0.0
    %2044 = vmatpush1.msra.mxu0 0.0
    %2045 = vmatprep.subr.mxu0 0.0
    %2046 = vmatpush1.msra.mxu0 0.0
    %2047 = vmatprep.subr.mxu0 0.0
    %2048 = vmatpush1.msra.mxu0 0.0
    %2049 = vmatprep.subr.mxu0 0.0
    %2050 = vmatpush1.msra.mxu0 0.0
    %2051 = vmatprep.subr.mxu0 0.0
    %2052 = vmatpush1.msra.mxu0 0.0
    %2053 = vmatprep.subr.mxu0 0.0
    %2054 = vmatpush1.msra.mxu0 0.0
    %2055 = vmatprep.subr.mxu0 0.0
    %2056 = vmatpush1.msra.mxu0 0.0
    %2057 = vmatprep.subr.mxu0 0.0
    %2058 = vmatpush1.msra.mxu0 0.0
    %2059 = vmatprep.subr.mxu0 0.0
    %2060 = vmatpush1.msra.mxu0 0.0
    %2061 = vmatprep.subr.mxu0 0.0
    %2062 = vmatpush1.msra.mxu0 0.0
    %2063 = vmatprep.subr.mxu0 0.0
    %2064 = vmatpush1.msra.mxu0 0.0
    %2065 = vmatprep.subr.mxu0 0.0
    %2066 = vmatpush1.msra.mxu0 0.0
    %2067 = vmatprep.subr.mxu0 0.0
    %2068 = vmatpush1.msra.mxu0 0.0
    %2069 = vmatprep.subr.mxu0 0.0
    %2070 = vmatpush1.msra.mxu0 0.0
    %2071 = vmatprep.subr.mxu0 0.0
    %2072 = vmatpush1.msra.mxu0 0.0
    %2073 = vmatprep.subr.mxu0 0.0
    %2074 = vmatpush1.msra.mxu0 0.0
    %2075 = vmatprep.subr.mxu0 0.0
    %2076 = vmatpush1.msra.mxu0 0.0
    %2077 = vmatprep.mubr.f32.mxu0 0.0
    %2078 = vmatmul.mubr.f32.gmra.mrb[0].mxu0 %v1911
    %v2079 = vpop.f32.mrb[0].mxu0
    %v2080 = vadd.f32 0.0, %v2079
    %v2081 = vpop.f32.mrb[0].mxu0
    %2082 = vdwg.mxu0
    %v2084 = vrot.slane %v2080, 4
    %v2086 = vadd.f32 %v1162, %v2084
    %v2087 = vxor.u32 %v2086, 2147483648
    %v2088 = vmul.f32 %v2087, 1.442695
    %v2089 = vpow.pop %v2088
    %v2090 = vadd.f32 %v2089, 1.0
    %v2091 = vrcp.pop %v2090
    %v2092 = vmul.f32 1.0, %v2091
    %v2093 = vtanh.pop %v2086
    %v2095 = vrot.slane %v1828, 6
    %v2097 = vmul.f32 %v2092, %v2095
    %2099 = vrot.lane.b32.xlu0 %v2093, 64
    %v2100 = vpop.permute.xlu0 %2099
    %v2102 = vmul.f32 %v2092, %v2100
    %2104 = vrot.lane.b32.xlu0 %v2102, 32
    %v2105 = vpop.permute.xlu0 %2104
    %v2107 = vadd.f32 %v2097, %v2105
    %v2108 = vtanh.pop %v2107
    %2110 = vrot.lane.b32.xlu0 %v2108, 64
    %v2111 = vpop.permute.xlu0 %2110
    %v2113 = vmul.f32 %v2092, %v2111
    %v2114 = vsel %vm1013, %v2010, 0
    %2116 = vmatprep.subr.mxu0 0.0
    %2117 = vmatpush1.msra.mxu0 %v1178
    %2118 = vmatprep.subr.mxu0 0.0
    %2119 = vmatpush1.msra.mxu0 %v1179
    %2120 = vmatprep.subr.mxu0 0.0
    %2121 = vmatpush1.msra.mxu0 %v1180
    %2122 = vmatprep.subr.mxu0 0.0
    %2123 = vmatpush1.msra.mxu0 %v1181
    %2124 = vmatprep.subr.mxu0 0.0
    %2125 = vmatpush1.msra.mxu0 0.0
    %2126 = vmatprep.subr.mxu0 0.0
    %2127 = vmatpush1.msra.mxu0 0.0
    %2128 = vmatprep.subr.mxu0 0.0
    %2129 = vmatpush1.msra.mxu0 0.0
    %2130 = vmatprep.subr.mxu0 0.0
    %2131 = vmatpush1.msra.mxu0 0.0
    %2132 = vmatprep.subr.mxu0 0.0
    %2133 = vmatpush1.msra.mxu0 0.0
    %2134 = vmatprep.subr.mxu0 0.0
    %2135 = vmatpush1.msra.mxu0 0.0
    %2136 = vmatprep.subr.mxu0 0.0
    %2137 = vmatpush1.msra.mxu0 0.0
    %2138 = vmatprep.subr.mxu0 0.0
    %2139 = vmatpush1.msra.mxu0 0.0
    %2140 = vmatprep.subr.mxu0 0.0
    %2141 = vmatpush1.msra.mxu0 0.0
    %2142 = vmatprep.subr.mxu0 0.0
    %2143 = vmatpush1.msra.mxu0 0.0
    %2144 = vmatprep.subr.mxu0 0.0
    %2145 = vmatpush1.msra.mxu0 0.0
    %2146 = vmatprep.subr.mxu0 0.0
    %2147 = vmatpush1.msra.mxu0 0.0
    %2148 = vmatprep.subr.mxu0 0.0
    %2149 = vmatpush1.msra.mxu0 0.0
    %2150 = vmatprep.subr.mxu0 0.0
    %2151 = vmatpush1.msra.mxu0 0.0
    %2152 = vmatprep.subr.mxu0 0.0
    %2153 = vmatpush1.msra.mxu0 0.0
    %2154 = vmatprep.subr.mxu0 0.0
    %2155 = vmatpush1.msra.mxu0 0.0
    %2156 = vmatprep.subr.mxu0 0.0
    %2157 = vmatpush1.msra.mxu0 0.0
    %2158 = vmatprep.subr.mxu0 0.0
    %2159 = vmatpush1.msra.mxu0 0.0
    %2160 = vmatprep.subr.mxu0 0.0
    %2161 = vmatpush1.msra.mxu0 0.0
    %2162 = vmatprep.subr.mxu0 0.0
    %2163 = vmatpush1.msra.mxu0 0.0
    %2164 = vmatprep.subr.mxu0 0.0
    %2165 = vmatpush1.msra.mxu0 0.0
    %2166 = vmatprep.subr.mxu0 0.0
    %2167 = vmatpush1.msra.mxu0 0.0
    %2168 = vmatprep.subr.mxu0 0.0
    %2169 = vmatpush1.msra.mxu0 0.0
    %2170 = vmatprep.subr.mxu0 0.0
    %2171 = vmatpush1.msra.mxu0 0.0
    %2172 = vmatprep.subr.mxu0 0.0
    %2173 = vmatpush1.msra.mxu0 0.0
    %2174 = vmatprep.subr.mxu0 0.0
    %2175 = vmatpush1.msra.mxu0 0.0
    %2176 = vmatprep.subr.mxu0 0.0
    %2177 = vmatpush1.msra.mxu0 0.0
    %2178 = vmatprep.subr.mxu0 0.0
    %2179 = vmatpush1.msra.mxu0 0.0
    %2180 = vmatprep.mubr.f32.mxu0 0.0
    %2181 = vmatmul.mubr.f32.gmra.mrb[0].mxu0 %v2114
    %v2182 = vpop.f32.mrb[0].mxu0
    %v2183 = vadd.f32 0.0, %v2182
    %v2184 = vpop.f32.mrb[0].mxu0
    %2185 = vdwg.mxu0
    %v2187 = vrot.slane %v2113, 4
    %2188 = vrot.lane.b32.xlu0 %v2187, 32
    %v2189 = vpop.permute.xlu0 %2188
    %v2190 = vsel %vm1013, %v2189, 0
    %2192 = vmatprep.subr.mxu0 0.0
    %2193 = vmatpush1.msra.mxu0 %v1174
    %2194 = vmatprep.subr.mxu0 0.0
    %2195 = vmatpush1.msra.mxu0 %v1175
    %2196 = vmatprep.subr.mxu0 0.0
    %2197 = vmatpush1.msra.mxu0 %v1176
    %2198 = vmatprep.subr.mxu0 0.0
    %2199 = vmatpush1.msra.mxu0 %v1177
    %2200 = vmatprep.subr.mxu0 0.0
    %2201 = vmatpush1.msra.mxu0 0.0
    %2202 = vmatprep.subr.mxu0 0.0
    %2203 = vmatpush1.msra.mxu0 0.0
    %2204 = vmatprep.subr.mxu0 0.0
    %2205 = vmatpush1.msra.mxu0 0.0
    %2206 = vmatprep.subr.mxu0 0.0
    %2207 = vmatpush1.msra.mxu0 0.0
    %2208 = vmatprep.subr.mxu0 0.0
    %2209 = vmatpush1.msra.mxu0 0.0
    %2210 = vmatprep.subr.mxu0 0.0
    %2211 = vmatpush1.msra.mxu0 0.0
    %2212 = vmatprep.subr.mxu0 0.0
    %2213 = vmatpush1.msra.mxu0 0.0
    %2214 = vmatprep.subr.mxu0 0.0
    %2215 = vmatpush1.msra.mxu0 0.0
    %2216 = vmatprep.subr.mxu0 0.0
    %2217 = vmatpush1.msra.mxu0 0.0
    %2218 = vmatprep.subr.mxu0 0.0
    %2219 = vmatpush1.msra.mxu0 0.0
    %2220 = vmatprep.subr.mxu0 0.0
    %2221 = vmatpush1.msra.mxu0 0.0
    %2222 = vmatprep.subr.mxu0 0.0
    %2223 = vmatpush1.msra.mxu0 0.0
    %2224 = vmatprep.subr.mxu0 0.0
    %2225 = vmatpush1.msra.mxu0 0.0
    %2226 = vmatprep.subr.mxu0 0.0
    %2227 = vmatpush1.msra.mxu0 0.0
    %2228 = vmatprep.subr.mxu0 0.0
    %2229 = vmatpush1.msra.mxu0 0.0
    %2230 = vmatprep.subr.mxu0 0.0
    %2231 = vmatpush1.msra.mxu0 0.0
    %2232 = vmatprep.subr.mxu0 0.0
    %2233 = vmatpush1.msra.mxu0 0.0
    %2234 = vmatprep.subr.mxu0 0.0
    %2235 = vmatpush1.msra.mxu0 0.0
    %2236 = vmatprep.subr.mxu0 0.0
    %2237 = vmatpush1.msra.mxu0 0.0
    %2238 = vmatprep.subr.mxu0 0.0
    %2239 = vmatpush1.msra.mxu0 0.0
    %2240 = vmatprep.subr.mxu0 0.0
    %2241 = vmatpush1.msra.mxu0 0.0
    %2242 = vmatprep.subr.mxu0 0.0
    %2243 = vmatpush1.msra.mxu0 0.0
    %2244 = vmatprep.subr.mxu0 0.0
    %2245 = vmatpush1.msra.mxu0 0.0
    %2246 = vmatprep.subr.mxu0 0.0
    %2247 = vmatpush1.msra.mxu0 0.0
    %2248 = vmatprep.subr.mxu0 0.0
    %2249 = vmatpush1.msra.mxu0 0.0
    %2250 = vmatprep.subr.mxu0 0.0
    %2251 = vmatpush1.msra.mxu0 0.0
    %2252 = vmatprep.subr.mxu0 0.0
    %2253 = vmatpush1.msra.mxu0 0.0
    %2254 = vmatprep.subr.mxu0 0.0
    %2255 = vmatpush1.msra.mxu0 0.0
    %2256 = vmatprep.mubr.f32.mxu0 0.0
    %2257 = vmatmul.mubr.f32.gmra.mrb[0].mxu0 %v2190
    %v2258 = vpop.f32.mrb[0].mxu0
    %v2259 = vadd.f32 %v2183, %v2258
    %v2260 = vpop.f32.mrb[0].mxu0
    %2261 = vdwg.mxu0
    %v2262 = vadd.f32 %v2259, %v1430
    %v2263 = vxor.u32 %v2262, 2147483648
    %v2264 = vmul.f32 %v2263, 1.442695
    %v2265 = vpow.pop %v2264
    %v2266 = vadd.f32 %v2265, 1.0
    %v2267 = vrcp.pop %v2266
    %v2268 = vmul.f32 1.0, %v2267
    %v2269 = vtanh.pop %v2262
    %v2270 = vmul.f32 %v2268, %v2001
    %2272 = vrot.lane.b32.xlu0 %v2269, 64
    %v2273 = vpop.permute.xlu0 %2272
    %v2275 = vmul.f32 %v2268, %v2273
    %2277 = vrot.lane.b32.xlu0 %v2275, 32
    %v2278 = vpop.permute.xlu0 %2277
    %v2280 = vadd.f32 %v2270, %v2278
    %v2281 = vtanh.pop %v2280
    %2283 = vrot.lane.b32.xlu0 %v2281, 64
    %v2284 = vpop.permute.xlu0 %2283
    %v2286 = vmul.f32 %v2268, %v2284
    %2288 = vrot.lane.b32.xlu0 %v2286, 32
    %v2289 = vpop.permute.xlu0 %2288
    %2291 = vst.msk [vmem:[#allocation2 + $0x6] sm:$0x3] %vm963, %v2289
    %2292 = vmatprep.subr.mxu0 0.0
    %2293 = vmatpush1.msra.mxu0 %v1170
    %2294 = vmatprep.subr.mxu0 0.0
    %2295 = vmatpush1.msra.mxu0 %v1171
    %2296 = vmatprep.subr.mxu0 0.0
    %2297 = vmatpush1.msra.mxu0 %v1172
    %2298 = vmatprep.subr.mxu0 0.0
    %2299 = vmatpush1.msra.mxu0 %v1173
    %2300 = vmatprep.subr.mxu0 0.0
    %2301 = vmatpush1.msra.mxu0 0.0
    %2302 = vmatprep.subr.mxu0 0.0
    %2303 = vmatpush1.msra.mxu0 0.0
    %2304 = vmatprep.subr.mxu0 0.0
    %2305 = vmatpush1.msra.mxu0 0.0
    %2306 = vmatprep.subr.mxu0 0.0
    %2307 = vmatpush1.msra.mxu0 0.0
    %2308 = vmatprep.subr.mxu0 0.0
    %2309 = vmatpush1.msra.mxu0 0.0
    %2310 = vmatprep.subr.mxu0 0.0
    %2311 = vmatpush1.msra.mxu0 0.0
    %2312 = vmatprep.subr.mxu0 0.0
    %2313 = vmatpush1.msra.mxu0 0.0
    %2314 = vmatprep.subr.mxu0 0.0
    %2315 = vmatpush1.msra.mxu0 0.0
    %2316 = vmatprep.subr.mxu0 0.0
    %2317 = vmatpush1.msra.mxu0 0.0
    %2318 = vmatprep.subr.mxu0 0.0
    %2319 = vmatpush1.msra.mxu0 0.0
    %2320 = vmatprep.subr.mxu0 0.0
    %2321 = vmatpush1.msra.mxu0 0.0
    %2322 = vmatprep.subr.mxu0 0.0
    %2323 = vmatpush1.msra.mxu0 0.0
    %2324 = vmatprep.subr.mxu0 0.0
    %2325 = vmatpush1.msra.mxu0 0.0
    %2326 = vmatprep.subr.mxu0 0.0
    %2327 = vmatpush1.msra.mxu0 0.0
    %2328 = vmatprep.subr.mxu0 0.0
    %2329 = vmatpush1.msra.mxu0 0.0
    %2330 = vmatprep.subr.mxu0 0.0
    %2331 = vmatpush1.msra.mxu0 0.0
    %2332 = vmatprep.subr.mxu0 0.0
    %2333 = vmatpush1.msra.mxu0 0.0
    %2334 = vmatprep.subr.mxu0 0.0
    %2335 = vmatpush1.msra.mxu0 0.0
    %2336 = vmatprep.subr.mxu0 0.0
    %2337 = vmatpush1.msra.mxu0 0.0
    %2338 = vmatprep.subr.mxu0 0.0
    %2339 = vmatpush1.msra.mxu0 0.0
    %2340 = vmatprep.subr.mxu0 0.0
    %2341 = vmatpush1.msra.mxu0 0.0
    %2342 = vmatprep.subr.mxu0 0.0
    %2343 = vmatpush1.msra.mxu0 0.0
    %2344 = vmatprep.subr.mxu0 0.0
    %2345 = vmatpush1.msra.mxu0 0.0
    %2346 = vmatprep.subr.mxu0 0.0
    %2347 = vmatpush1.msra.mxu0 0.0
    %2348 = vmatprep.subr.mxu0 0.0
    %2349 = vmatpush1.msra.mxu0 0.0
    %2350 = vmatprep.subr.mxu0 0.0
    %2351 = vmatpush1.msra.mxu0 0.0
    %2352 = vmatprep.subr.mxu0 0.0
    %2353 = vmatpush1.msra.mxu0 0.0
    %2354 = vmatprep.subr.mxu0 0.0
    %2355 = vmatpush1.msra.mxu0 0.0
    %2356 = vmatprep.mubr.f32.mxu0 0.0
    %2357 = vmatmul.mubr.f32.gmra.mrb[0].mxu0 %v2190
    %v2358 = vpop.f32.mrb[0].mxu0
    %v2359 = vadd.f32 0.0, %v2358
    %v2360 = vpop.f32.mrb[0].mxu0
    %2361 = vdwg.mxu0
    %v2363 = vrot.slane %v2359, 2
    %v2365 = vadd.f32 %v1162, %v2363
    %v2366 = vxor.u32 %v2365, 2147483648
    %v2367 = vmul.f32 %v2366, 1.442695
    %v2368 = vpow.pop %v2367
    %v2369 = vadd.f32 %v2368, 1.0
    %v2370 = vrcp.pop %v2369
    %v2371 = vmul.f32 1.0, %v2370
    %v2372 = vtanh.pop %v2365
    %v2374 = vrot.slane %v2107, 6
    %v2376 = vmul.f32 %v2371, %v2374
    %2378 = vrot.lane.b32.xlu0 %v2372, 64
    %v2379 = vpop.permute.xlu0 %2378
    %v2381 = vmul.f32 %v2371, %v2379
    %2383 = vrot.lane.b32.xlu0 %v2381, 32
    %v2384 = vpop.permute.xlu0 %2383
    %v2386 = vadd.f32 %v2376, %v2384
    %v2387 = vtanh.pop %v2386
    %2389 = vrot.lane.b32.xlu0 %v2387, 64
    %v2390 = vpop.permute.xlu0 %2389
    %v2392 = vmul.f32 %v2371, %v2390
    %v2393 = vsel %vm1013, %v2289, 0
    %2395 = vmatprep.subr.mxu0 0.0
    %2396 = vmatpush1.msra.mxu0 %v1178
    %2397 = vmatprep.subr.mxu0 0.0
    %2398 = vmatpush1.msra.mxu0 %v1179
    %2399 = vmatprep.subr.mxu0 0.0
    %2400 = vmatpush1.msra.mxu0 %v1180
    %2401 = vmatprep.subr.mxu0 0.0
    %2402 = vmatpush1.msra.mxu0 %v1181
    %2403 = vmatprep.subr.mxu0 0.0
    %2404 = vmatpush1.msra.mxu0 0.0
    %2405 = vmatprep.subr.mxu0 0.0
    %2406 = vmatpush1.msra.mxu0 0.0
    %2407 = vmatprep.subr.mxu0 0.0
    %2408 = vmatpush1.msra.mxu0 0.0
    %2409 = vmatprep.subr.mxu0 0.0
    %2410 = vmatpush1.msra.mxu0 0.0
    %2411 = vmatprep.subr.mxu0 0.0
    %2412 = vmatpush1.msra.mxu0 0.0
    %2413 = vmatprep.subr.mxu0 0.0
    %2414 = vmatpush1.msra.mxu0 0.0
    %2415 = vmatprep.subr.mxu0 0.0
    %2416 = vmatpush1.msra.mxu0 0.0
    %2417 = vmatprep.subr.mxu0 0.0
    %2418 = vmatpush1.msra.mxu0 0.0
    %2419 = vmatprep.subr.mxu0 0.0
    %2420 = vmatpush1.msra.mxu0 0.0
    %2421 = vmatprep.subr.mxu0 0.0
    %2422 = vmatpush1.msra.mxu0 0.0
    %2423 = vmatprep.subr.mxu0 0.0
    %2424 = vmatpush1.msra.mxu0 0.0
    %2425 = vmatprep.subr.mxu0 0.0
    %2426 = vmatpush1.msra.mxu0 0.0
    %2427 = vmatprep.subr.mxu0 0.0
    %2428 = vmatpush1.msra.mxu0 0.0
    %2429 = vmatprep.subr.mxu0 0.0
    %2430 = vmatpush1.msra.mxu0 0.0
    %2431 = vmatprep.subr.mxu0 0.0
    %2432 = vmatpush1.msra.mxu0 0.0
    %2433 = vmatprep.subr.mxu0 0.0
    %2434 = vmatpush1.msra.mxu0 0.0
    %2435 = vmatprep.subr.mxu0 0.0
    %2436 = vmatpush1.msra.mxu0 0.0
    %2437 = vmatprep.subr.mxu0 0.0
    %2438 = vmatpush1.msra.mxu0 0.0
    %2439 = vmatprep.subr.mxu0 0.0
    %2440 = vmatpush1.msra.mxu0 0.0
    %2441 = vmatprep.subr.mxu0 0.0
    %2442 = vmatpush1.msra.mxu0 0.0
    %2443 = vmatprep.subr.mxu0 0.0
    %2444 = vmatpush1.msra.mxu0 0.0
    %2445 = vmatprep.subr.mxu0 0.0
    %2446 = vmatpush1.msra.mxu0 0.0
    %2447 = vmatprep.subr.mxu0 0.0
    %2448 = vmatpush1.msra.mxu0 0.0
    %2449 = vmatprep.subr.mxu0 0.0
    %2450 = vmatpush1.msra.mxu0 0.0
    %2451 = vmatprep.subr.mxu0 0.0
    %2452 = vmatpush1.msra.mxu0 0.0
    %2453 = vmatprep.subr.mxu0 0.0
    %2454 = vmatpush1.msra.mxu0 0.0
    %2455 = vmatprep.subr.mxu0 0.0
    %2456 = vmatpush1.msra.mxu0 0.0
    %2457 = vmatprep.subr.mxu0 0.0
    %2458 = vmatpush1.msra.mxu0 0.0
    %2459 = vmatprep.mubr.f32.mxu0 0.0
    %2460 = vmatmul.mubr.f32.gmra.mrb[0].mxu0 %v2393
    %v2461 = vpop.f32.mrb[0].mxu0
    %v2462 = vadd.f32 0.0, %v2461
    %v2463 = vpop.f32.mrb[0].mxu0
    %2464 = vdwg.mxu0
    %v2466 = vrot.slane %v2392, 6
    %2467 = vrot.lane.b32.xlu0 %v2466, 32
    %v2468 = vpop.permute.xlu0 %2467
    %v2469 = vsel %vm1013, %v2468, 0
    %2471 = vmatprep.subr.mxu0 0.0
    %2472 = vmatpush1.msra.mxu0 %v1174
    %2473 = vmatprep.subr.mxu0 0.0
    %2474 = vmatpush1.msra.mxu0 %v1175
    %2475 = vmatprep.subr.mxu0 0.0
    %2476 = vmatpush1.msra.mxu0 %v1176
    %2477 = vmatprep.subr.mxu0 0.0
    %2478 = vmatpush1.msra.mxu0 %v1177
    %2479 = vmatprep.subr.mxu0 0.0
    %2480 = vmatpush1.msra.mxu0 0.0
    %2481 = vmatprep.subr.mxu0 0.0
    %2482 = vmatpush1.msra.mxu0 0.0
    %2483 = vmatprep.subr.mxu0 0.0
    %2484 = vmatpush1.msra.mxu0 0.0
    %2485 = vmatprep.subr.mxu0 0.0
    %2486 = vmatpush1.msra.mxu0 0.0
    %2487 = vmatprep.subr.mxu0 0.0
    %2488 = vmatpush1.msra.mxu0 0.0
    %2489 = vmatprep.subr.mxu0 0.0
    %2490 = vmatpush1.msra.mxu0 0.0
    %2491 = vmatprep.subr.mxu0 0.0
    %2492 = vmatpush1.msra.mxu0 0.0
    %2493 = vmatprep.subr.mxu0 0.0
    %2494 = vmatpush1.msra.mxu0 0.0
    %2495 = vmatprep.subr.mxu0 0.0
    %2496 = vmatpush1.msra.mxu0 0.0
    %2497 = vmatprep.subr.mxu0 0.0
    %2498 = vmatpush1.msra.mxu0 0.0
    %2499 = vmatprep.subr.mxu0 0.0
    %2500 = vmatpush1.msra.mxu0 0.0
    %2501 = vmatprep.subr.mxu0 0.0
    %2502 = vmatpush1.msra.mxu0 0.0
    %2503 = vmatprep.subr.mxu0 0.0
    %2504 = vmatpush1.msra.mxu0 0.0
    %2505 = vmatprep.subr.mxu0 0.0
    %2506 = vmatpush1.msra.mxu0 0.0
    %2507 = vmatprep.subr.mxu0 0.0
    %2508 = vmatpush1.msra.mxu0 0.0
    %2509 = vmatprep.subr.mxu0 0.0
    %2510 = vmatpush1.msra.mxu0 0.0
    %2511 = vmatprep.subr.mxu0 0.0
    %2512 = vmatpush1.msra.mxu0 0.0
    %2513 = vmatprep.subr.mxu0 0.0
    %2514 = vmatpush1.msra.mxu0 0.0
    %2515 = vmatprep.subr.mxu0 0.0
    %2516 = vmatpush1.msra.mxu0 0.0
    %2517 = vmatprep.subr.mxu0 0.0
    %2518 = vmatpush1.msra.mxu0 0.0
    %2519 = vmatprep.subr.mxu0 0.0
    %2520 = vmatpush1.msra.mxu0 0.0
    %2521 = vmatprep.subr.mxu0 0.0
    %2522 = vmatpush1.msra.mxu0 0.0
    %2523 = vmatprep.subr.mxu0 0.0
    %2524 = vmatpush1.msra.mxu0 0.0
    %2525 = vmatprep.subr.mxu0 0.0
    %2526 = vmatpush1.msra.mxu0 0.0
    %2527 = vmatprep.subr.mxu0 0.0
    %2528 = vmatpush1.msra.mxu0 0.0
    %2529 = vmatprep.subr.mxu0 0.0
    %2530 = vmatpush1.msra.mxu0 0.0
    %2531 = vmatprep.subr.mxu0 0.0
    %2532 = vmatpush1.msra.mxu0 0.0
    %2533 = vmatprep.subr.mxu0 0.0
    %2534 = vmatpush1.msra.mxu0 0.0
    %2535 = vmatprep.mubr.f32.mxu0 0.0
    %2536 = vmatmul.mubr.f32.gmra.mrb[0].mxu0 %v2469
    %v2537 = vpop.f32.mrb[0].mxu0
    %v2538 = vadd.f32 %v2462, %v2537
    %v2539 = vpop.f32.mrb[0].mxu0
    %2540 = vdwg.mxu0
    %v2541 = vadd.f32 %v2538, %v1430
    %v2542 = vxor.u32 %v2541, 2147483648
    %v2543 = vmul.f32 %v2542, 1.442695
    %v2544 = vpow.pop %v2543
    %v2545 = vadd.f32 %v2544, 1.0
    %v2546 = vrcp.pop %v2545
    %v2547 = vmul.f32 1.0, %v2546
    %v2548 = vtanh.pop %v2541
    %v2549 = vmul.f32 %v2547, %v2280
    %2551 = vrot.lane.b32.xlu0 %v2548, 64
    %v2552 = vpop.permute.xlu0 %2551
    %v2554 = vmul.f32 %v2547, %v2552
    %2556 = vrot.lane.b32.xlu0 %v2554, 32
    %v2557 = vpop.permute.xlu0 %2556
    %v2559 = vadd.f32 %v2549, %v2557
    %v2560 = vtanh.pop %v2559
    %2562 = vrot.lane.b32.xlu0 %v2560, 64
    %v2563 = vpop.permute.xlu0 %2562
    %v2565 = vmul.f32 %v2547, %v2563
    %2567 = vrot.lane.b32.xlu0 %v2565, 32
    %v2568 = vpop.permute.xlu0 %2567
    %2570 = vst.msk [vmem:[#allocation2 + $0x8] sm:$0x3] %vm963, %v2568
    %2571 = vmatprep.subr.mxu0 0.0
    %2572 = vmatpush1.msra.mxu0 %v1170
    %2573 = vmatprep.subr.mxu0 0.0
    %2574 = vmatpush1.msra.mxu0 %v1171
    %2575 = vmatprep.subr.mxu0 0.0
    %2576 = vmatpush1.msra.mxu0 %v1172
    %2577 = vmatprep.subr.mxu0 0.0
    %2578 = vmatpush1.msra.mxu0 %v1173
    %2579 = vmatprep.subr.mxu0 0.0
    %2580 = vmatpush1.msra.mxu0 0.0
    %2581 = vmatprep.subr.mxu0 0.0
    %2582 = vmatpush1.msra.mxu0 0.0
    %2583 = vmatprep.subr.mxu0 0.0
    %2584 = vmatpush1.msra.mxu0 0.0
    %2585 = vmatprep.subr.mxu0 0.0
    %2586 = vmatpush1.msra.mxu0 0.0
    %2587 = vmatprep.subr.mxu0 0.0
    %2588 = vmatpush1.msra.mxu0 0.0
    %2589 = vmatprep.subr.mxu0 0.0
    %2590 = vmatpush1.msra.mxu0 0.0
    %2591 = vmatprep.subr.mxu0 0.0
    %2592 = vmatpush1.msra.mxu0 0.0
    %2593 = vmatprep.subr.mxu0 0.0
    %2594 = vmatpush1.msra.mxu0 0.0
    %2595 = vmatprep.subr.mxu0 0.0
    %2596 = vmatpush1.msra.mxu0 0.0
    %2597 = vmatprep.subr.mxu0 0.0
    %2598 = vmatpush1.msra.mxu0 0.0
    %2599 = vmatprep.subr.mxu0 0.0
    %2600 = vmatpush1.msra.mxu0 0.0
    %2601 = vmatprep.subr.mxu0 0.0
    %2602 = vmatpush1.msra.mxu0 0.0
    %2603 = vmatprep.subr.mxu0 0.0
    %2604 = vmatpush1.msra.mxu0 0.0
    %2605 = vmatprep.subr.mxu0 0.0
    %2606 = vmatpush1.msra.mxu0 0.0
    %2607 = vmatprep.subr.mxu0 0.0
    %2608 = vmatpush1.msra.mxu0 0.0
    %2609 = vmatprep.subr.mxu0 0.0
    %2610 = vmatpush1.msra.mxu0 0.0
    %2611 = vmatprep.subr.mxu0 0.0
    %2612 = vmatpush1.msra.mxu0 0.0
    %2613 = vmatprep.subr.mxu0 0.0
    %2614 = vmatpush1.msra.mxu0 0.0
    %2615 = vmatprep.subr.mxu0 0.0
    %2616 = vmatpush1.msra.mxu0 0.0
    %2617 = vmatprep.subr.mxu0 0.0
    %2618 = vmatpush1.msra.mxu0 0.0
    %2619 = vmatprep.subr.mxu0 0.0
    %2620 = vmatpush1.msra.mxu0 0.0
    %2621 = vmatprep.subr.mxu0 0.0
    %2622 = vmatpush1.msra.mxu0 0.0
    %2623 = vmatprep.subr.mxu0 0.0
    %2624 = vmatpush1.msra.mxu0 0.0
    %2625 = vmatprep.subr.mxu0 0.0
    %2626 = vmatpush1.msra.mxu0 0.0
    %2627 = vmatprep.subr.mxu0 0.0
    %2628 = vmatpush1.msra.mxu0 0.0
    %2629 = vmatprep.subr.mxu0 0.0
    %2630 = vmatpush1.msra.mxu0 0.0
    %2631 = vmatprep.subr.mxu0 0.0
    %2632 = vmatpush1.msra.mxu0 0.0
    %2633 = vmatprep.subr.mxu0 0.0
    %2634 = vmatpush1.msra.mxu0 0.0
    %2635 = vmatprep.mubr.f32.mxu0 0.0
    %2636 = vmatmul.mubr.f32.gmra.mrb[0].mxu0 %v2469
    %v2637 = vpop.f32.mrb[0].mxu0
    %v2638 = vadd.f32 0.0, %v2637
    %v2639 = vpop.f32.mrb[0].mxu0
    %2640 = vdwg.mxu0
    %v2641 = vadd.f32 %v1167, %v2638
    %v2642 = vxor.u32 %v2641, 2147483648
    %v2643 = vmul.f32 %v2642, 1.442695
    %v2644 = vpow.pop %v2643
    %v2645 = vadd.f32 %v2644, 1.0
    %v2646 = vrcp.pop %v2645
    %v2647 = vmul.f32 1.0, %v2646
    %v2648 = vtanh.pop %v2641
    %v2650 = vrot.slane %v2386, 6
    %v2652 = vmul.f32 %v2647, %v2650
    %2654 = vrot.lane.b32.xlu0 %v2648, 64
    %v2655 = vpop.permute.xlu0 %2654
    %v2657 = vmul.f32 %v2647, %v2655
    %2659 = vrot.lane.b32.xlu0 %v2657, 32
    %v2660 = vpop.permute.xlu0 %2659
    %v2662 = vadd.f32 %v2652, %v2660
    %v2663 = vtanh.pop %v2662
    %2665 = vrot.lane.b32.xlu0 %v2663, 64
    %v2666 = vpop.permute.xlu0 %2665
    %v2668 = vmul.f32 %v2647, %v2666
    %v2669 = vsel %vm1013, %v2568, 0
    %2671 = vmatprep.subr.mxu0 0.0
    %2672 = vmatpush1.msra.mxu0 %v1178
    %2673 = vmatprep.subr.mxu0 0.0
    %2674 = vmatpush1.msra.mxu0 %v1179
    %2675 = vmatprep.subr.mxu0 0.0
    %2676 = vmatpush1.msra.mxu0 %v1180
    %2677 = vmatprep.subr.mxu0 0.0
    %2678 = vmatpush1.msra.mxu0 %v1181
    %2679 = vmatprep.subr.mxu0 0.0
    %2680 = vmatpush1.msra.mxu0 0.0
    %2681 = vmatprep.subr.mxu0 0.0
    %2682 = vmatpush1.msra.mxu0 0.0
    %2683 = vmatprep.subr.mxu0 0.0
    %2684 = vmatpush1.msra.mxu0 0.0
    %2685 = vmatprep.subr.mxu0 0.0
    %2686 = vmatpush1.msra.mxu0 0.0
    %2687 = vmatprep.subr.mxu0 0.0
    %2688 = vmatpush1.msra.mxu0 0.0
    %2689 = vmatprep.subr.mxu0 0.0
    %2690 = vmatpush1.msra.mxu0 0.0
    %2691 = vmatprep.subr.mxu0 0.0
    %2692 = vmatpush1.msra.mxu0 0.0
    %2693 = vmatprep.subr.mxu0 0.0
    %2694 = vmatpush1.msra.mxu0 0.0
    %2695 = vmatprep.subr.mxu0 0.0
    %2696 = vmatpush1.msra.mxu0 0.0
    %2697 = vmatprep.subr.mxu0 0.0
    %2698 = vmatpush1.msra.mxu0 0.0
    %2699 = vmatprep.subr.mxu0 0.0
    %2700 = vmatpush1.msra.mxu0 0.0
    %2701 = vmatprep.subr.mxu0 0.0
    %2702 = vmatpush1.msra.mxu0 0.0
    %2703 = vmatprep.subr.mxu0 0.0
    %2704 = vmatpush1.msra.mxu0 0.0
    %2705 = vmatprep.subr.mxu0 0.0
    %2706 = vmatpush1.msra.mxu0 0.0
    %2707 = vmatprep.subr.mxu0 0.0
    %2708 = vmatpush1.msra.mxu0 0.0
    %2709 = vmatprep.subr.mxu0 0.0
    %2710 = vmatpush1.msra.mxu0 0.0
    %2711 = vmatprep.subr.mxu0 0.0
    %2712 = vmatpush1.msra.mxu0 0.0
    %2713 = vmatprep.subr.mxu0 0.0
    %2714 = vmatpush1.msra.mxu0 0.0
    %2715 = vmatprep.subr.mxu0 0.0
    %2716 = vmatpush1.msra.mxu0 0.0
    %2717 = vmatprep.subr.mxu0 0.0
    %2718 = vmatpush1.msra.mxu0 0.0
    %2719 = vmatprep.subr.mxu0 0.0
    %2720 = vmatpush1.msra.mxu0 0.0
    %2721 = vmatprep.subr.mxu0 0.0
    %2722 = vmatpush1.msra.mxu0 0.0
    %2723 = vmatprep.subr.mxu0 0.0
    %2724 = vmatpush1.msra.mxu0 0.0
    %2725 = vmatprep.subr.mxu0 0.0
    %2726 = vmatpush1.msra.mxu0 0.0
    %2727 = vmatprep.subr.mxu0 0.0
    %2728 = vmatpush1.msra.mxu0 0.0
    %2729 = vmatprep.subr.mxu0 0.0
    %2730 = vmatpush1.msra.mxu0 0.0
    %2731 = vmatprep.subr.mxu0 0.0
    %2732 = vmatpush1.msra.mxu0 0.0
    %2733 = vmatprep.subr.mxu0 0.0
    %2734 = vmatpush1.msra.mxu0 0.0
    %2735 = vmatprep.mubr.f32.mxu0 0.0
    %2736 = vmatmul.mubr.f32.gmra.mrb[0].mxu0 %v2669
    %v2737 = vpop.f32.mrb[0].mxu0
    %v2738 = vadd.f32 0.0, %v2737
    %v2739 = vpop.f32.mrb[0].mxu0
    %2740 = vdwg.mxu0
    %2742 = vrot.lane.b32.xlu0 %v2668, 32
    %v2743 = vpop.permute.xlu0 %2742
    %v2744 = vsel %vm1013, %v2743, 0
    %2746 = vmatprep.subr.mxu0 0.0
    %2747 = vmatpush1.msra.mxu0 %v1174
    %2748 = vmatprep.subr.mxu0 0.0
    %2749 = vmatpush1.msra.mxu0 %v1175
    %2750 = vmatprep.subr.mxu0 0.0
    %2751 = vmatpush1.msra.mxu0 %v1176
    %2752 = vmatprep.subr.mxu0 0.0
    %2753 = vmatpush1.msra.mxu0 %v1177
    %2754 = vmatprep.subr.mxu0 0.0
    %2755 = vmatpush1.msra.mxu0 0.0
    %2756 = vmatprep.subr.mxu0 0.0
    %2757 = vmatpush1.msra.mxu0 0.0
    %2758 = vmatprep.subr.mxu0 0.0
    %2759 = vmatpush1.msra.mxu0 0.0
    %2760 = vmatprep.subr.mxu0 0.0
    %2761 = vmatpush1.msra.mxu0 0.0
    %2762 = vmatprep.subr.mxu0 0.0
    %2763 = vmatpush1.msra.mxu0 0.0
    %2764 = vmatprep.subr.mxu0 0.0
    %2765 = vmatpush1.msra.mxu0 0.0
    %2766 = vmatprep.subr.mxu0 0.0
    %2767 = vmatpush1.msra.mxu0 0.0
    %2768 = vmatprep.subr.mxu0 0.0
    %2769 = vmatpush1.msra.mxu0 0.0
    %2770 = vmatprep.subr.mxu0 0.0
    %2771 = vmatpush1.msra.mxu0 0.0
    %2772 = vmatprep.subr.mxu0 0.0
    %2773 = vmatpush1.msra.mxu0 0.0
    %2774 = vmatprep.subr.mxu0 0.0
    %2775 = vmatpush1.msra.mxu0 0.0
    %2776 = vmatprep.subr.mxu0 0.0
    %2777 = vmatpush1.msra.mxu0 0.0
    %2778 = vmatprep.subr.mxu0 0.0
    %2779 = vmatpush1.msra.mxu0 0.0
    %2780 = vmatprep.subr.mxu0 0.0
    %2781 = vmatpush1.msra.mxu0 0.0
    %2782 = vmatprep.subr.mxu0 0.0
    %2783 = vmatpush1.msra.mxu0 0.0
    %2784 = vmatprep.subr.mxu0 0.0
    %2785 = vmatpush1.msra.mxu0 0.0
    %2786 = vmatprep.subr.mxu0 0.0
    %2787 = vmatpush1.msra.mxu0 0.0
    %2788 = vmatprep.subr.mxu0 0.0
    %2789 = vmatpush1.msra.mxu0 0.0
    %2790 = vmatprep.subr.mxu0 0.0
    %2791 = vmatpush1.msra.mxu0 0.0
    %2792 = vmatprep.subr.mxu0 0.0
    %2793 = vmatpush1.msra.mxu0 0.0
    %2794 = vmatprep.subr.mxu0 0.0
    %2795 = vmatpush1.msra.mxu0 0.0
    %2796 = vmatprep.subr.mxu0 0.0
    %2797 = vmatpush1.msra.mxu0 0.0
    %2798 = vmatprep.subr.mxu0 0.0
    %2799 = vmatpush1.msra.mxu0 0.0
    %2800 = vmatprep.subr.mxu0 0.0
    %2801 = vmatpush1.msra.mxu0 0.0
    %2802 = vmatprep.subr.mxu0 0.0
    %2803 = vmatpush1.msra.mxu0 0.0
    %2804 = vmatprep.subr.mxu0 0.0
    %2805 = vmatpush1.msra.mxu0 0.0
    %2806 = vmatprep.subr.mxu0 0.0
    %2807 = vmatpush1.msra.mxu0 0.0
    %2808 = vmatprep.subr.mxu0 0.0
    %2809 = vmatpush1.msra.mxu0 0.0
    %2810 = vmatprep.mubr.f32.mxu0 0.0
    %2811 = vmatmul.mubr.f32.gmra.mrb[0].mxu0 %v2744
    %v2812 = vpop.f32.mrb[0].mxu0
    %v2813 = vadd.f32 %v2738, %v2812
    %v2814 = vpop.f32.mrb[0].mxu0
    %2815 = vdwg.mxu0
    %v2816 = vadd.f32 %v2813, %v1430
    %v2817 = vxor.u32 %v2816, 2147483648
    %v2818 = vmul.f32 %v2817, 1.442695
    %v2819 = vpow.pop %v2818
    %v2820 = vadd.f32 %v2819, 1.0
    %v2821 = vrcp.pop %v2820
    %v2822 = vmul.f32 1.0, %v2821
    %v2823 = vtanh.pop %v2816
    %v2824 = vmul.f32 %v2822, %v2559
    %2826 = vrot.lane.b32.xlu0 %v2823, 64
    %v2827 = vpop.permute.xlu0 %2826
    %v2829 = vmul.f32 %v2822, %v2827
    %2831 = vrot.lane.b32.xlu0 %v2829, 32
    %v2832 = vpop.permute.xlu0 %2831
    %v2834 = vadd.f32 %v2824, %v2832
    %v2835 = vtanh.pop %v2834
    %2837 = vrot.lane.b32.xlu0 %v2835, 64
    %v2838 = vpop.permute.xlu0 %2837
    %v2840 = vmul.f32 %v2822, %v2838
    %2842 = vrot.lane.b32.xlu0 %v2840, 32
    %v2843 = vpop.permute.xlu0 %2842
    %2845 = vst.msk [vmem:[#allocation2 + $0xa] sm:$0x3] %vm963, %v2843
    %2846 = vmatprep.subr.mxu0 0.0
    %2847 = vmatpush1.msra.mxu0 %v1170
    %2848 = vmatprep.subr.mxu0 0.0
    %2849 = vmatpush1.msra.mxu0 %v1171
    %2850 = vmatprep.subr.mxu0 0.0
    %2851 = vmatpush1.msra.mxu0 %v1172
    %2852 = vmatprep.subr.mxu0 0.0
    %2853 = vmatpush1.msra.mxu0 %v1173
    %2854 = vmatprep.subr.mxu0 0.0
    %2855 = vmatpush1.msra.mxu0 0.0
    %2856 = vmatprep.subr.mxu0 0.0
    %2857 = vmatpush1.msra.mxu0 0.0
    %2858 = vmatprep.subr.mxu0 0.0
    %2859 = vmatpush1.msra.mxu0 0.0
    %2860 = vmatprep.subr.mxu0 0.0
    %2861 = vmatpush1.msra.mxu0 0.0
    %2862 = vmatprep.subr.mxu0 0.0
    %2863 = vmatpush1.msra.mxu0 0.0
    %2864 = vmatprep.subr.mxu0 0.0
    %2865 = vmatpush1.msra.mxu0 0.0
    %2866 = vmatprep.subr.mxu0 0.0
    %2867 = vmatpush1.msra.mxu0 0.0
    %2868 = vmatprep.subr.mxu0 0.0
    %2869 = vmatpush1.msra.mxu0 0.0
    %2870 = vmatprep.subr.mxu0 0.0
    %2871 = vmatpush1.msra.mxu0 0.0
    %2872 = vmatprep.subr.mxu0 0.0
    %2873 = vmatpush1.msra.mxu0 0.0
    %2874 = vmatprep.subr.mxu0 0.0
    %2875 = vmatpush1.msra.mxu0 0.0
    %2876 = vmatprep.subr.mxu0 0.0
    %2877 = vmatpush1.msra.mxu0 0.0
    %2878 = vmatprep.subr.mxu0 0.0
    %2879 = vmatpush1.msra.mxu0 0.0
    %2880 = vmatprep.subr.mxu0 0.0
    %2881 = vmatpush1.msra.mxu0 0.0
    %2882 = vmatprep.subr.mxu0 0.0
    %2883 = vmatpush1.msra.mxu0 0.0
    %2884 = vmatprep.subr.mxu0 0.0
    %2885 = vmatpush1.msra.mxu0 0.0
    %2886 = vmatprep.subr.mxu0 0.0
    %2887 = vmatpush1.msra.mxu0 0.0
    %2888 = vmatprep.subr.mxu0 0.0
    %2889 = vmatpush1.msra.mxu0 0.0
    %2890 = vmatprep.subr.mxu0 0.0
    %2891 = vmatpush1.msra.mxu0 0.0
    %2892 = vmatprep.subr.mxu0 0.0
    %2893 = vmatpush1.msra.mxu0 0.0
    %2894 = vmatprep.subr.mxu0 0.0
    %2895 = vmatpush1.msra.mxu0 0.0
    %2896 = vmatprep.subr.mxu0 0.0
    %2897 = vmatpush1.msra.mxu0 0.0
    %2898 = vmatprep.subr.mxu0 0.0
    %2899 = vmatpush1.msra.mxu0 0.0
    %2900 = vmatprep.subr.mxu0 0.0
    %2901 = vmatpush1.msra.mxu0 0.0
    %2902 = vmatprep.subr.mxu0 0.0
    %2903 = vmatpush1.msra.mxu0 0.0
    %2904 = vmatprep.subr.mxu0 0.0
    %2905 = vmatpush1.msra.mxu0 0.0
    %2906 = vmatprep.subr.mxu0 0.0
    %2907 = vmatpush1.msra.mxu0 0.0
    %2908 = vmatprep.subr.mxu0 0.0
    %2909 = vmatpush1.msra.mxu0 0.0
    %2910 = vmatprep.mubr.f32.mxu0 0.0
    %2911 = vmatmul.mubr.f32.gmra.mrb[0].mxu0 %v2744
    %v2912 = vpop.f32.mrb[0].mxu0
    %v2913 = vadd.f32 0.0, %v2912
    %v2914 = vpop.f32.mrb[0].mxu0
    %2915 = vdwg.mxu0
    %v2917 = vrot.slane %v2913, 6
    %v2919 = vadd.f32 %v1167, %v2917
    %v2920 = vxor.u32 %v2919, 2147483648
    %v2921 = vmul.f32 %v2920, 1.442695
    %v2922 = vpow.pop %v2921
    %v2923 = vadd.f32 %v2922, 1.0
    %v2924 = vrcp.pop %v2923
    %v2925 = vmul.f32 1.0, %v2924
    %v2926 = vtanh.pop %v2919
    %v2928 = vrot.slane %v2662, 6
    %v2930 = vmul.f32 %v2925, %v2928
    %2932 = vrot.lane.b32.xlu0 %v2926, 64
    %v2933 = vpop.permute.xlu0 %2932
    %v2935 = vmul.f32 %v2925, %v2933
    %2937 = vrot.lane.b32.xlu0 %v2935, 32
    %v2938 = vpop.permute.xlu0 %2937
    %v2940 = vadd.f32 %v2930, %v2938
    %v2941 = vtanh.pop %v2940
    %2943 = vrot.lane.b32.xlu0 %v2941, 64
    %v2944 = vpop.permute.xlu0 %2943
    %v2946 = vmul.f32 %v2925, %v2944
    %v2947 = vsel %vm1013, %v2843, 0
    %2949 = vmatprep.subr.mxu0 0.0
    %2950 = vmatpush1.msra.mxu0 %v1178
    %2951 = vmatprep.subr.mxu0 0.0
    %2952 = vmatpush1.msra.mxu0 %v1179
    %2953 = vmatprep.subr.mxu0 0.0
    %2954 = vmatpush1.msra.mxu0 %v1180
    %2955 = vmatprep.subr.mxu0 0.0
    %2956 = vmatpush1.msra.mxu0 %v1181
    %2957 = vmatprep.subr.mxu0 0.0
    %2958 = vmatpush1.msra.mxu0 0.0
    %2959 = vmatprep.subr.mxu0 0.0
    %2960 = vmatpush1.msra.mxu0 0.0
    %2961 = vmatprep.subr.mxu0 0.0
    %2962 = vmatpush1.msra.mxu0 0.0
    %2963 = vmatprep.subr.mxu0 0.0
    %2964 = vmatpush1.msra.mxu0 0.0
    %2965 = vmatprep.subr.mxu0 0.0
    %2966 = vmatpush1.msra.mxu0 0.0
    %2967 = vmatprep.subr.mxu0 0.0
    %2968 = vmatpush1.msra.mxu0 0.0
    %2969 = vmatprep.subr.mxu0 0.0
    %2970 = vmatpush1.msra.mxu0 0.0
    %2971 = vmatprep.subr.mxu0 0.0
    %2972 = vmatpush1.msra.mxu0 0.0
    %2973 = vmatprep.subr.mxu0 0.0
    %2974 = vmatpush1.msra.mxu0 0.0
    %2975 = vmatprep.subr.mxu0 0.0
    %2976 = vmatpush1.msra.mxu0 0.0
    %2977 = vmatprep.subr.mxu0 0.0
    %2978 = vmatpush1.msra.mxu0 0.0
    %2979 = vmatprep.subr.mxu0 0.0
    %2980 = vmatpush1.msra.mxu0 0.0
    %2981 = vmatprep.subr.mxu0 0.0
    %2982 = vmatpush1.msra.mxu0 0.0
    %2983 = vmatprep.subr.mxu0 0.0
    %2984 = vmatpush1.msra.mxu0 0.0
    %2985 = vmatprep.subr.mxu0 0.0
    %2986 = vmatpush1.msra.mxu0 0.0
    %2987 = vmatprep.subr.mxu0 0.0
    %2988 = vmatpush1.msra.mxu0 0.0
    %2989 = vmatprep.subr.mxu0 0.0
    %2990 = vmatpush1.msra.mxu0 0.0
    %2991 = vmatprep.subr.mxu0 0.0
    %2992 = vmatpush1.msra.mxu0 0.0
    %2993 = vmatprep.subr.mxu0 0.0
    %2994 = vmatpush1.msra.mxu0 0.0
    %2995 = vmatprep.subr.mxu0 0.0
    %2996 = vmatpush1.msra.mxu0 0.0
    %2997 = vmatprep.subr.mxu0 0.0
    %2998 = vmatpush1.msra.mxu0 0.0
    %2999 = vmatprep.subr.mxu0 0.0
    %3000 = vmatpush1.msra.mxu0 0.0
    %3001 = vmatprep.subr.mxu0 0.0
    %3002 = vmatpush1.msra.mxu0 0.0
    %3003 = vmatprep.subr.mxu0 0.0
    %3004 = vmatpush1.msra.mxu0 0.0
    %3005 = vmatprep.subr.mxu0 0.0
    %3006 = vmatpush1.msra.mxu0 0.0
    %3007 = vmatprep.subr.mxu0 0.0
    %3008 = vmatpush1.msra.mxu0 0.0
    %3009 = vmatprep.subr.mxu0 0.0
    %3010 = vmatpush1.msra.mxu0 0.0
    %3011 = vmatprep.subr.mxu0 0.0
    %3012 = vmatpush1.msra.mxu0 0.0
    %3013 = vmatprep.mubr.f32.mxu0 0.0
    %3014 = vmatmul.mubr.f32.gmra.mrb[0].mxu0 %v2947
    %v3015 = vpop.f32.mrb[0].mxu0
    %v3016 = vadd.f32 0.0, %v3015
    %v3017 = vpop.f32.mrb[0].mxu0
    %3018 = vdwg.mxu0
    %v3020 = vrot.slane %v2946, 2
    %3021 = vrot.lane.b32.xlu0 %v3020, 32
    %v3022 = vpop.permute.xlu0 %3021
    %v3023 = vsel %vm1013, %v3022, 0
    %3025 = vmatprep.subr.mxu0 0.0
    %3026 = vmatpush1.msra.mxu0 %v1174
    %3027 = vmatprep.subr.mxu0 0.0
    %3028 = vmatpush1.msra.mxu0 %v1175
    %3029 = vmatprep.subr.mxu0 0.0
    %3030 = vmatpush1.msra.mxu0 %v1176
    %3031 = vmatprep.subr.mxu0 0.0
    %3032 = vmatpush1.msra.mxu0 %v1177
    %3033 = vmatprep.subr.mxu0 0.0
    %3034 = vmatpush1.msra.mxu0 0.0
    %3035 = vmatprep.subr.mxu0 0.0
    %3036 = vmatpush1.msra.mxu0 0.0
    %3037 = vmatprep.subr.mxu0 0.0
    %3038 = vmatpush1.msra.mxu0 0.0
    %3039 = vmatprep.subr.mxu0 0.0
    %3040 = vmatpush1.msra.mxu0 0.0
    %3041 = vmatprep.subr.mxu0 0.0
    %3042 = vmatpush1.msra.mxu0 0.0
    %3043 = vmatprep.subr.mxu0 0.0
    %3044 = vmatpush1.msra.mxu0 0.0
    %3045 = vmatprep.subr.mxu0 0.0
    %3046 = vmatpush1.msra.mxu0 0.0
    %3047 = vmatprep.subr.mxu0 0.0
    %3048 = vmatpush1.msra.mxu0 0.0
    %3049 = vmatprep.subr.mxu0 0.0
    %3050 = vmatpush1.msra.mxu0 0.0
    %3051 = vmatprep.subr.mxu0 0.0
    %3052 = vmatpush1.msra.mxu0 0.0
    %3053 = vmatprep.subr.mxu0 0.0
    %3054 = vmatpush1.msra.mxu0 0.0
    %3055 = vmatprep.subr.mxu0 0.0
    %3056 = vmatpush1.msra.mxu0 0.0
    %3057 = vmatprep.subr.mxu0 0.0
    %3058 = vmatpush1.msra.mxu0 0.0
    %3059 = vmatprep.subr.mxu0 0.0
    %3060 = vmatpush1.msra.mxu0 0.0
    %3061 = vmatprep.subr.mxu0 0.0
    %3062 = vmatpush1.msra.mxu0 0.0
    %3063 = vmatprep.subr.mxu0 0.0
    %3064 = vmatpush1.msra.mxu0 0.0
    %3065 = vmatprep.subr.mxu0 0.0
    %3066 = vmatpush1.msra.mxu0 0.0
    %3067 = vmatprep.subr.mxu0 0.0
    %3068 = vmatpush1.msra.mxu0 0.0
    %3069 = vmatprep.subr.mxu0 0.0
    %3070 = vmatpush1.msra.mxu0 0.0
    %3071 = vmatprep.subr.mxu0 0.0
    %3072 = vmatpush1.msra.mxu0 0.0
    %3073 = vmatprep.subr.mxu0 0.0
    %3074 = vmatpush1.msra.mxu0 0.0
    %3075 = vmatprep.subr.mxu0 0.0
    %3076 = vmatpush1.msra.mxu0 0.0
    %3077 = vmatprep.subr.mxu0 0.0
    %3078 = vmatpush1.msra.mxu0 0.0
    %3079 = vmatprep.subr.mxu0 0.0
    %3080 = vmatpush1.msra.mxu0 0.0
    %3081 = vmatprep.subr.mxu0 0.0
    %3082 = vmatpush1.msra.mxu0 0.0
    %3083 = vmatprep.subr.mxu0 0.0
    %3084 = vmatpush1.msra.mxu0 0.0
    %3085 = vmatprep.subr.mxu0 0.0
    %3086 = vmatpush1.msra.mxu0 0.0
    %3087 = vmatprep.subr.mxu0 0.0
    %3088 = vmatpush1.msra.mxu0 0.0
    %3089 = vmatprep.mubr.f32.mxu0 0.0
    %3090 = vmatmul.mubr.f32.gmra.mrb[0].mxu0 %v3023
    %v3091 = vpop.f32.mrb[0].mxu0
    %v3092 = vadd.f32 %v3016, %v3091
    %v3093 = vpop.f32.mrb[0].mxu0
    %3094 = vdwg.mxu0
    %v3095 = vadd.f32 %v3092, %v1430
    %v3096 = vxor.u32 %v3095, 2147483648
    %v3097 = vmul.f32 %v3096, 1.442695
    %v3098 = vpow.pop %v3097
    %v3099 = vadd.f32 %v3098, 1.0
    %v3100 = vrcp.pop %v3099
    %v3101 = vmul.f32 1.0, %v3100
    %v3102 = vtanh.pop %v3095
    %v3103 = vmul.f32 %v3101, %v2834
    %3105 = vrot.lane.b32.xlu0 %v3102, 64
    %v3106 = vpop.permute.xlu0 %3105
    %v3108 = vmul.f32 %v3101, %v3106
    %3110 = vrot.lane.b32.xlu0 %v3108, 32
    %v3111 = vpop.permute.xlu0 %3110
    %v3113 = vadd.f32 %v3103, %v3111
    %v3114 = vtanh.pop %v3113
    %3116 = vrot.lane.b32.xlu0 %v3114, 64
    %v3117 = vpop.permute.xlu0 %3116
    %v3119 = vmul.f32 %v3101, %v3117
    %3121 = vrot.lane.b32.xlu0 %v3119, 32
    %v3122 = vpop.permute.xlu0 %3121
    %3124 = vst.msk [vmem:[#allocation2 + $0xc] sm:$0x3] %vm963, %v3122
    %3125 = vmatprep.subr.mxu0 0.0
    %3126 = vmatpush1.msra.mxu0 %v1170
    %3127 = vmatprep.subr.mxu0 0.0
    %3128 = vmatpush1.msra.mxu0 %v1171
    %3129 = vmatprep.subr.mxu0 0.0
    %3130 = vmatpush1.msra.mxu0 %v1172
    %3131 = vmatprep.subr.mxu0 0.0
    %3132 = vmatpush1.msra.mxu0 %v1173
    %3133 = vmatprep.subr.mxu0 0.0
    %3134 = vmatpush1.msra.mxu0 0.0
    %3135 = vmatprep.subr.mxu0 0.0
    %3136 = vmatpush1.msra.mxu0 0.0
    %3137 = vmatprep.subr.mxu0 0.0
    %3138 = vmatpush1.msra.mxu0 0.0
    %3139 = vmatprep.subr.mxu0 0.0
    %3140 = vmatpush1.msra.mxu0 0.0
    %3141 = vmatprep.subr.mxu0 0.0
    %3142 = vmatpush1.msra.mxu0 0.0
    %3143 = vmatprep.subr.mxu0 0.0
    %3144 = vmatpush1.msra.mxu0 0.0
    %3145 = vmatprep.subr.mxu0 0.0
    %3146 = vmatpush1.msra.mxu0 0.0
    %3147 = vmatprep.subr.mxu0 0.0
    %3148 = vmatpush1.msra.mxu0 0.0
    %3149 = vmatprep.subr.mxu0 0.0
    %3150 = vmatpush1.msra.mxu0 0.0
    %3151 = vmatprep.subr.mxu0 0.0
    %3152 = vmatpush1.msra.mxu0 0.0
    %3153 = vmatprep.subr.mxu0 0.0
    %3154 = vmatpush1.msra.mxu0 0.0
    %3155 = vmatprep.subr.mxu0 0.0
    %3156 = vmatpush1.msra.mxu0 0.0
    %3157 = vmatprep.subr.mxu0 0.0
    %3158 = vmatpush1.msra.mxu0 0.0
    %3159 = vmatprep.subr.mxu0 0.0
    %3160 = vmatpush1.msra.mxu0 0.0
    %3161 = vmatprep.subr.mxu0 0.0
    %3162 = vmatpush1.msra.mxu0 0.0
    %3163 = vmatprep.subr.mxu0 0.0
    %3164 = vmatpush1.msra.mxu0 0.0
    %3165 = vmatprep.subr.mxu0 0.0
    %3166 = vmatpush1.msra.mxu0 0.0
    %3167 = vmatprep.subr.mxu0 0.0
    %3168 = vmatpush1.msra.mxu0 0.0
    %3169 = vmatprep.subr.mxu0 0.0
    %3170 = vmatpush1.msra.mxu0 0.0
    %3171 = vmatprep.subr.mxu0 0.0
    %3172 = vmatpush1.msra.mxu0 0.0
    %3173 = vmatprep.subr.mxu0 0.0
    %3174 = vmatpush1.msra.mxu0 0.0
    %3175 = vmatprep.subr.mxu0 0.0
    %3176 = vmatpush1.msra.mxu0 0.0
    %3177 = vmatprep.subr.mxu0 0.0
    %3178 = vmatpush1.msra.mxu0 0.0
    %3179 = vmatprep.subr.mxu0 0.0
    %3180 = vmatpush1.msra.mxu0 0.0
    %3181 = vmatprep.subr.mxu0 0.0
    %3182 = vmatpush1.msra.mxu0 0.0
    %3183 = vmatprep.subr.mxu0 0.0
    %3184 = vmatpush1.msra.mxu0 0.0
    %3185 = vmatprep.subr.mxu0 0.0
    %3186 = vmatpush1.msra.mxu0 0.0
    %3187 = vmatprep.subr.mxu0 0.0
    %3188 = vmatpush1.msra.mxu0 0.0
    %3189 = vmatprep.mubr.f32.mxu0 0.0
    %3190 = vmatmul.mubr.f32.gmra.mrb[0].mxu0 %v3023
    %v3191 = vpop.f32.mrb[0].mxu0
    %v3192 = vadd.f32 0.0, %v3191
    %v3193 = vpop.f32.mrb[0].mxu0
    %3194 = vdwg.mxu0
    %v3196 = vrot.slane %v3192, 4
    %v3198 = vadd.f32 %v1167, %v3196
    %v3199 = vxor.u32 %v3198, 2147483648
    %v3200 = vmul.f32 %v3199, 1.442695
    %v3201 = vpow.pop %v3200
    %v3202 = vadd.f32 %v3201, 1.0
    %v3203 = vrcp.pop %v3202
    %v3204 = vmul.f32 1.0, %v3203
    %v3205 = vtanh.pop %v3198
    %v3207 = vrot.slane %v2940, 6
    %v3209 = vmul.f32 %v3204, %v3207
    %3211 = vrot.lane.b32.xlu0 %v3205, 64
    %v3212 = vpop.permute.xlu0 %3211
    %v3214 = vmul.f32 %v3204, %v3212
    %3216 = vrot.lane.b32.xlu0 %v3214, 32
    %v3217 = vpop.permute.xlu0 %3216
    %v3219 = vadd.f32 %v3209, %v3217
    %v3220 = vtanh.pop %v3219
    %3222 = vrot.lane.b32.xlu0 %v3220, 64
    %v3223 = vpop.permute.xlu0 %3222
    %v3225 = vmul.f32 %v3204, %v3223
    %v3226 = vsel %vm1013, %v3122, 0
    %3228 = vmatprep.subr.mxu0 0.0
    %3229 = vmatpush1.msra.mxu0 %v1178
    %3230 = vmatprep.subr.mxu0 0.0
    %3231 = vmatpush1.msra.mxu0 %v1179
    %3232 = vmatprep.subr.mxu0 0.0
    %3233 = vmatpush1.msra.mxu0 %v1180
    %3234 = vmatprep.subr.mxu0 0.0
    %3235 = vmatpush1.msra.mxu0 %v1181
    %3236 = vmatprep.subr.mxu0 0.0
    %3237 = vmatpush1.msra.mxu0 0.0
    %3238 = vmatprep.subr.mxu0 0.0
    %3239 = vmatpush1.msra.mxu0 0.0
    %3240 = vmatprep.subr.mxu0 0.0
    %3241 = vmatpush1.msra.mxu0 0.0
    %3242 = vmatprep.subr.mxu0 0.0
    %3243 = vmatpush1.msra.mxu0 0.0
    %3244 = vmatprep.subr.mxu0 0.0
    %3245 = vmatpush1.msra.mxu0 0.0
    %3246 = vmatprep.subr.mxu0 0.0
    %3247 = vmatpush1.msra.mxu0 0.0
    %3248 = vmatprep.subr.mxu0 0.0
    %3249 = vmatpush1.msra.mxu0 0.0
    %3250 = vmatprep.subr.mxu0 0.0
    %3251 = vmatpush1.msra.mxu0 0.0
    %3252 = vmatprep.subr.mxu0 0.0
    %3253 = vmatpush1.msra.mxu0 0.0
    %3254 = vmatprep.subr.mxu0 0.0
    %3255 = vmatpush1.msra.mxu0 0.0
    %3256 = vmatprep.subr.mxu0 0.0
    %3257 = vmatpush1.msra.mxu0 0.0
    %3258 = vmatprep.subr.mxu0 0.0
    %3259 = vmatpush1.msra.mxu0 0.0
    %3260 = vmatprep.subr.mxu0 0.0
    %3261 = vmatpush1.msra.mxu0 0.0
    %3262 = vmatprep.subr.mxu0 0.0
    %3263 = vmatpush1.msra.mxu0 0.0
    %3264 = vmatprep.subr.mxu0 0.0
    %3265 = vmatpush1.msra.mxu0 0.0
    %3266 = vmatprep.subr.mxu0 0.0
    %3267 = vmatpush1.msra.mxu0 0.0
    %3268 = vmatprep.subr.mxu0 0.0
    %3269 = vmatpush1.msra.mxu0 0.0
    %3270 = vmatprep.subr.mxu0 0.0
    %3271 = vmatpush1.msra.mxu0 0.0
    %3272 = vmatprep.subr.mxu0 0.0
    %3273 = vmatpush1.msra.mxu0 0.0
    %3274 = vmatprep.subr.mxu0 0.0
    %3275 = vmatpush1.msra.mxu0 0.0
    %3276 = vmatprep.subr.mxu0 0.0
    %3277 = vmatpush1.msra.mxu0 0.0
    %3278 = vmatprep.subr.mxu0 0.0
    %3279 = vmatpush1.msra.mxu0 0.0
    %3280 = vmatprep.subr.mxu0 0.0
    %3281 = vmatpush1.msra.mxu0 0.0
    %3282 = vmatprep.subr.mxu0 0.0
    %3283 = vmatpush1.msra.mxu0 0.0
    %3284 = vmatprep.subr.mxu0 0.0
    %3285 = vmatpush1.msra.mxu0 0.0
    %3286 = vmatprep.subr.mxu0 0.0
    %3287 = vmatpush1.msra.mxu0 0.0
    %3288 = vmatprep.subr.mxu0 0.0
    %3289 = vmatpush1.msra.mxu0 0.0
    %3290 = vmatprep.subr.mxu0 0.0
    %3291 = vmatpush1.msra.mxu0 0.0
    %3292 = vmatprep.mubr.f32.mxu0 0.0
    %3293 = vmatmul.mubr.f32.gmra.mrb[0].mxu0 %v3226
    %v3294 = vpop.f32.mrb[0].mxu0
    %v3295 = vadd.f32 0.0, %v3294
    %v3296 = vpop.f32.mrb[0].mxu0
    %3297 = vdwg.mxu0
    %v3299 = vrot.slane %v3225, 4
    %3300 = vrot.lane.b32.xlu0 %v3299, 32
    %v3301 = vpop.permute.xlu0 %3300
    %v3302 = vsel %vm1013, %v3301, 0
    %3304 = vmatprep.subr.mxu0 0.0
    %3305 = vmatpush1.msra.mxu0 %v1174
    %3306 = vmatprep.subr.mxu0 0.0
    %3307 = vmatpush1.msra.mxu0 %v1175
    %3308 = vmatprep.subr.mxu0 0.0
    %3309 = vmatpush1.msra.mxu0 %v1176
    %3310 = vmatprep.subr.mxu0 0.0
    %3311 = vmatpush1.msra.mxu0 %v1177
    %3312 = vmatprep.subr.mxu0 0.0
    %3313 = vmatpush1.msra.mxu0 0.0
    %3314 = vmatprep.subr.mxu0 0.0
    %3315 = vmatpush1.msra.mxu0 0.0
    %3316 = vmatprep.subr.mxu0 0.0
    %3317 = vmatpush1.msra.mxu0 0.0
    %3318 = vmatprep.subr.mxu0 0.0
    %3319 = vmatpush1.msra.mxu0 0.0
    %3320 = vmatprep.subr.mxu0 0.0
    %3321 = vmatpush1.msra.mxu0 0.0
    %3322 = vmatprep.subr.mxu0 0.0
    %3323 = vmatpush1.msra.mxu0 0.0
    %3324 = vmatprep.subr.mxu0 0.0
    %3325 = vmatpush1.msra.mxu0 0.0
    %3326 = vmatprep.subr.mxu0 0.0
    %3327 = vmatpush1.msra.mxu0 0.0
    %3328 = vmatprep.subr.mxu0 0.0
    %3329 = vmatpush1.msra.mxu0 0.0
    %3330 = vmatprep.subr.mxu0 0.0
    %3331 = vmatpush1.msra.mxu0 0.0
    %3332 = vmatprep.subr.mxu0 0.0
    %3333 = vmatpush1.msra.mxu0 0.0
    %3334 = vmatprep.subr.mxu0 0.0
    %3335 = vmatpush1.msra.mxu0 0.0
    %3336 = vmatprep.subr.mxu0 0.0
    %3337 = vmatpush1.msra.mxu0 0.0
    %3338 = vmatprep.subr.mxu0 0.0
    %3339 = vmatpush1.msra.mxu0 0.0
    %3340 = vmatprep.subr.mxu0 0.0
    %3341 = vmatpush1.msra.mxu0 0.0
    %3342 = vmatprep.subr.mxu0 0.0
    %3343 = vmatpush1.msra.mxu0 0.0
    %3344 = vmatprep.subr.mxu0 0.0
    %3345 = vmatpush1.msra.mxu0 0.0
    %3346 = vmatprep.subr.mxu0 0.0
    %3347 = vmatpush1.msra.mxu0 0.0
    %3348 = vmatprep.subr.mxu0 0.0
    %3349 = vmatpush1.msra.mxu0 0.0
    %3350 = vmatprep.subr.mxu0 0.0
    %3351 = vmatpush1.msra.mxu0 0.0
    %3352 = vmatprep.subr.mxu0 0.0
    %3353 = vmatpush1.msra.mxu0 0.0
    %3354 = vmatprep.subr.mxu0 0.0
    %3355 = vmatpush1.msra.mxu0 0.0
    %3356 = vmatprep.subr.mxu0 0.0
    %3357 = vmatpush1.msra.mxu0 0.0
    %3358 = vmatprep.subr.mxu0 0.0
    %3359 = vmatpush1.msra.mxu0 0.0
    %3360 = vmatprep.subr.mxu0 0.0
    %3361 = vmatpush1.msra.mxu0 0.0
    %3362 = vmatprep.subr.mxu0 0.0
    %3363 = vmatpush1.msra.mxu0 0.0
    %3364 = vmatprep.subr.mxu0 0.0
    %3365 = vmatpush1.msra.mxu0 0.0
    %3366 = vmatprep.subr.mxu0 0.0
    %3367 = vmatpush1.msra.mxu0 0.0
    %3368 = vmatprep.mubr.f32.mxu0 0.0
    %3369 = vmatmul.mubr.f32.gmra.mrb[0].mxu0 %v3302
    %v3370 = vpop.f32.mrb[0].mxu0
    %v3371 = vadd.f32 %v3295, %v3370
    %v3372 = vpop.f32.mrb[0].mxu0
    %3373 = vdwg.mxu0
    %v3374 = vadd.f32 %v3371, %v1430
    %v3375 = vxor.u32 %v3374, 2147483648
    %v3376 = vmul.f32 %v3375, 1.442695
    %v3377 = vpow.pop %v3376
    %v3378 = vadd.f32 %v3377, 1.0
    %v3379 = vrcp.pop %v3378
    %v3380 = vmul.f32 1.0, %v3379
    %v3381 = vtanh.pop %v3374
    %v3382 = vmul.f32 %v3380, %v3113
    %3384 = vrot.lane.b32.xlu0 %v3381, 64
    %v3385 = vpop.permute.xlu0 %3384
    %v3387 = vmul.f32 %v3380, %v3385
    %3389 = vrot.lane.b32.xlu0 %v3387, 32
    %v3390 = vpop.permute.xlu0 %3389
    %v3392 = vadd.f32 %v3382, %v3390
    %v3393 = vtanh.pop %v3392
    %3395 = vrot.lane.b32.xlu0 %v3393, 64
    %v3396 = vpop.permute.xlu0 %3395
    %v3398 = vmul.f32 %v3380, %v3396
    %3400 = vrot.lane.b32.xlu0 %v3398, 32
    %v3401 = vpop.permute.xlu0 %3400
    %3403 = vst.msk [vmem:[#allocation2 + $0xe] sm:$0x3] %vm963, %v3401
    %v3404 = vld [vmem:[#allocation2] sm:$0xff]
    %v3405 = vld [vmem:[#allocation2 + $0x8] sm:$0xff]
    %v3406 = vld [vmem:[%s12] sm:$0xff]
    %v3407 = vld [vmem:[%s12 + $0x8] sm:$0xff]
    %v3408 = vld [vmem:[%s12 + $0x10] sm:$0xff]
    %v3409 = vld [vmem:[%s12 + $0x18] sm:$0xff]
    %v3410 = vld [vmem:[%s13] sm:$0x1]
    %v3412 = vlaneseq
    %v3413 = vshrl.u32 %v3412, 7
    %v3414 = vsub.s32 0, %v3413
    %v3415 = vrot.slane %v3410, %v3414
    %v3418 = vsel %vm1013, %v3404, 0
    %v3421 = vsel %vm1013, %v3405, 0
    %3423 = vmatprep.subr.mxu0 0.0
    %3424 = vmatpush1.msra.mxu0 %v3406
    %3425 = vmatprep.subr.mxu0 0.0
    %3426 = vmatpush1.msra.mxu0 %v3407
    %3427 = vmatprep.subr.mxu0 0.0
    %3428 = vmatpush1.msra.mxu0 %v3408
    %3429 = vmatprep.subr.mxu0 0.0
    %3430 = vmatpush1.msra.mxu0 %v3409
    %3431 = vmatprep.subr.mxu0 0.0
    %3432 = vmatpush1.msra.mxu0 0.0
    %3433 = vmatprep.subr.mxu0 0.0
    %3434 = vmatpush1.msra.mxu0 0.0
    %3435 = vmatprep.subr.mxu0 0.0
    %3436 = vmatpush1.msra.mxu0 0.0
    %3437 = vmatprep.subr.mxu0 0.0
    %3438 = vmatpush1.msra.mxu0 0.0
    %3439 = vmatprep.subr.mxu0 0.0
    %3440 = vmatpush1.msra.mxu0 0.0
    %3441 = vmatprep.subr.mxu0 0.0
    %3442 = vmatpush1.msra.mxu0 0.0
    %3443 = vmatprep.subr.mxu0 0.0
    %3444 = vmatpush1.msra.mxu0 0.0
    %3445 = vmatprep.subr.mxu0 0.0
    %3446 = vmatpush1.msra.mxu0 0.0
    %3447 = vmatprep.subr.mxu0 0.0
    %3448 = vmatpush1.msra.mxu0 0.0
    %3449 = vmatprep.subr.mxu0 0.0
    %3450 = vmatpush1.msra.mxu0 0.0
    %3451 = vmatprep.subr.mxu0 0.0
    %3452 = vmatpush1.msra.mxu0 0.0
    %3453 = vmatprep.subr.mxu0 0.0
    %3454 = vmatpush1.msra.mxu0 0.0
    %3455 = vmatprep.subr.mxu0 0.0
    %3456 = vmatpush1.msra.mxu0 0.0
    %3457 = vmatprep.subr.mxu0 0.0
    %3458 = vmatpush1.msra.mxu0 0.0
    %3459 = vmatprep.subr.mxu0 0.0
    %3460 = vmatpush1.msra.mxu0 0.0
    %3461 = vmatprep.subr.mxu0 0.0
    %3462 = vmatpush1.msra.mxu0 0.0
    %3463 = vmatprep.subr.mxu0 0.0
    %3464 = vmatpush1.msra.mxu0 0.0
    %3465 = vmatprep.subr.mxu0 0.0
    %3466 = vmatpush1.msra.mxu0 0.0
    %3467 = vmatprep.subr.mxu0 0.0
    %3468 = vmatpush1.msra.mxu0 0.0
    %3469 = vmatprep.subr.mxu0 0.0
    %3470 = vmatpush1.msra.mxu0 0.0
    %3471 = vmatprep.subr.mxu0 0.0
    %3472 = vmatpush1.msra.mxu0 0.0
    %3473 = vmatprep.subr.mxu0 0.0
    %3474 = vmatpush1.msra.mxu0 0.0
    %3475 = vmatprep.subr.mxu0 0.0
    %3476 = vmatpush1.msra.mxu0 0.0
    %3477 = vmatprep.subr.mxu0 0.0
    %3478 = vmatpush1.msra.mxu0 0.0
    %3479 = vmatprep.subr.mxu0 0.0
    %3480 = vmatpush1.msra.mxu0 0.0
    %3481 = vmatprep.subr.mxu0 0.0
    %3482 = vmatpush1.msra.mxu0 0.0
    %3483 = vmatprep.subr.mxu0 0.0
    %3484 = vmatpush1.msra.mxu0 0.0
    %3485 = vmatprep.subr.mxu0 0.0
    %3486 = vmatpush1.msra.mxu0 0.0
    %3487 = vmatprep.mubr.f32.mxu0 0.0
    %3488 = vmatmul.mubr.f32.gmra.mrb[0].mxu0 %v3418
    %v3489 = vpop.f32.mrb[0].mxu0
    %v3490 = vadd.f32 %v3415, %v3489
    %v3491 = vpop.f32.mrb[0].mxu0
    %3492 = vmatprep.mubr.f32.mxu0 0.0
    %3493 = vmatmul.mubr.f32.gmra.mrb[0].mxu0 %v3421
    %v3494 = vpop.f32.mrb[0].mxu0
    %v3495 = vadd.f32 %v3415, %v3494
    %v3496 = vpop.f32.mrb[0].mxu0
    %3497 = vdwg.mxu0
    %vm3498 = vcmask 523264
    %3499 = vst.msk [vmem:[#allocation3] sm:$0xff] %vm3498, %v3490
    %3500 = vst.msk [vmem:[#allocation3 + $0x8] sm:$0xff] %vm3498, %v3495
    // Predicated region
    $region58: #{tpu_custom_call.1} parent=1 // pred_check
      _
    $region59: #{tpu_custom_call.1} parent=1 // pred_check_branch
      %3502 = sbr.rel (0) target = $region61
    $region60: #{tpu_custom_call.1} parent=1 // pred_region
      %s3504 = ssub.s32 256, 256
      %3505 = vsyncadd [#allocation4], %s3504
      %s3506 = sshll.u32 [#allocation3], 4
      %s3507 = int_to_ptr.vmem [resolvable:$true] %s3506
      %3512 = dma.vmem_to_hbm [thread:$0]  %s3507, 256, %s14, [#allocation4], 128, 128, 8
    $region61: #{tpu_custom_call.1} parent=1 // pred_fallthru
      _
    // Predicated region
    $region62: #{tpu_custom_call.1} parent=1 // pred_check
      _
    $region63: #{tpu_custom_call.1} parent=1 // pred_check_branch
      %3514 = sbr.rel (0) target = $region65
    $region64: #{tpu_custom_call.1} parent=1 // pred_region
      %3515 = dma.done [#allocation4], 256
    $region65: #{tpu_custom_call.1} parent=1 // pred_fallthru
      _
    %3516 = vsyncpa [#allocation4], 1

</llo_original>
